<compile_context>
chip_gen: v5e
topology: v5e:2x2
jax: 0.10.0
libtpu: 0.0.40
codegen_flags: <defaults>
</compile_context>

<pallas_src>
import functools

import jax
import jax.numpy as jnp
import numpy as np
from jax.experimental import pallas as pl
from jax.experimental.pallas import tpu as pltpu


# -----------------------------------------------------------------------------
# Model constants
# -----------------------------------------------------------------------------
N_BINS = 128
N_DIFF_BINS = 10
MAX_DEPTH = None          # UDFNet(__init__) default
MAX_DIFF_DEPTH = 1.0

ENC_C = 1280              # encoder output channels
DEC_C = 46                # decoder output channels (48 - prior_channels)
EMB_C = 48                # mViT embedding dim (stand-in)
SEG_C = 29                # segms channels used
DIFF_C = 76               # diff mViT embedding dim (stand-in)

K_CHUNK = 256             # K-chunk for streaming the 1280-ch enc intermediate
VMEM_LIMIT = 32 * 1024 * 1024   # explicit scoped-VMEM budget (safe v5e/v6e/v7x)


def _pick_tm(m, target=1024):
    """Largest power-of-two tile <= target that divides M (multiple of 8)."""
    for cand in (1024, 512, 256, 128, 64, 32, 16, 8):
        if cand <= target and cand <= m and m % cand == 0:
            return cand
    start = min(target, m)
    start -= start % 8
    for cand in range(start, 7, -8):
        if m % cand == 0:
            return cand
    raise ValueError(f"M={m} has no multiple-of-8 tile <= {target}")


def _choose_tm(m, n, target=1024):
    tm = _pick_tm(m, target)
    # v7x megacore guard: keep >= ~4 grid points so both TCs have work.
    while n * (m // tm) < 4 and tm >= 16:
        tm //= 2
    return tm


def _use_bf16_exp():
    try:
        kind = jax.devices()[0].device_kind.lower()
        return ("v6" in kind) or ("v7" in kind)
    except Exception:  # pragma: no cover
        return False


def _cparams():
    return pltpu.CompilerParams(
        dimension_semantics=("parallel", "parallel"),
        vmem_limit_bytes=VMEM_LIMIT,
    )


# -----------------------------------------------------------------------------
# Layout helpers (plain-JAX glue)
# -----------------------------------------------------------------------------
def nchw_to_pix(x):
    n, c, h, w = x.shape
    return jnp.transpose(x, (0, 2, 3, 1)).reshape(n, h * w, c)


def pix_to_nchw(x, h, w):
    n, m, c = x.shape
    return jnp.transpose(x.reshape(n, h, w, c), (0, 3, 1, 2))


def fold_pool(rgb):
    """2x2 avg-pool of the encoder stand-in folded into channels: 3 -> 12."""
    n, c, h, w = rgb.shape
    x = rgb.reshape(n, c, h // 2, 2, w // 2, 2)
    return jnp.transpose(x, (0, 2, 4, 1, 3, 5)).reshape(n, (h // 2) * (w // 2), c * 4)


# -----------------------------------------------------------------------------
# Kernel 1: fused encoder conv + decoder (K-chunked) + mViT embedding conv
#           with per-tile partial sums for the global mean pooling.
# -----------------------------------------------------------------------------
def _enc_dec_embed_kernel(x12_ref, pri_ref, ew_ref, eb_ref, wd1_ref, wd2_ref,
                          bd_ref, we1_ref, we2_ref, be_ref, dec_ref, ep_ref,
                          *, k_chunk):
    x12 = x12_ref[0]                                   # (TM, 12) bf16
    pri = pri_ref[0].astype(jnp.float32)               # (TM, 2)  f32

    # prior contribution + bias via VPU broadcast madds (no K=2 MXU pass)
    acc = (pri[:, 0:1] * wd2_ref[0:1, :]
           + pri[:, 1:2] * wd2_ref[1:2, :]
           + bd_ref[...])                              # (TM, 46) f32

    # Stream the 1280-ch encoder intermediate in K-chunks: never hits HBM and
    # the live intermediate stays (TM, k_chunk).
    for k in range(0, ENC_C, k_chunk):
        e = jnp.dot(x12, ew_ref[:, k:k + k_chunk],
                    preferred_element_type=jnp.float32)
        e = jnp.maximum(e + eb_ref[:, k:k + k_chunk], 0.0).astype(jnp.bfloat16)
        acc = acc + jnp.dot(e, wd1_ref[k:k + k_chunk, :],
                            preferred_element_type=jnp.float32)

    d = jnp.maximum(acc, 0.0)                          # (TM, 46) f32
    d_bf = d.astype(dec_ref.dtype)
    dec_ref[0] = d_bf

    # mViT embedding on mvit_in = [decoder_out | prior]  (split matmul)
    emb = jnp.dot(d_bf, we1_ref[...], preferred_element_type=jnp.float32)
    emb = emb + pri[:, 0:1] * we2_ref[0:1, :] + pri[:, 1:2] * we2_ref[1:2, :]
    emb = jnp.maximum(emb + be_ref[...], 0.0)          # (TM, 48) f32
    ep_ref[0, 0] = jnp.sum(emb, axis=0, keepdims=True)  # (1, 48) partial pool


def enc_dec_embed(x12, prior_pix, p, tm):
    N, M, _ = x12.shape
    mt = M // tm
    kernel = functools.partial(_enc_dec_embed_kernel, k_chunk=K_CHUNK)
    return pl.pallas_call(
        kernel,
        out_shape=(
            jax.ShapeDtypeStruct((N, M, DEC_C), jnp.bfloat16),
            jax.ShapeDtypeStruct((N, mt, 1, EMB_C), jnp.float32),
        ),
        grid=(N, mt),
        in_specs=[
            pl.BlockSpec((1, tm, 12), lambda n, m: (n, m, 0)),
            pl.BlockSpec((1, tm, 2), lambda n, m: (n, m, 0)),
            pl.BlockSpec((12, ENC_C), lambda n, m: (0, 0)),
            pl.BlockSpec((1, ENC_C), lambda n, m: (0, 0)),
            pl.BlockSpec((ENC_C, DEC_C), lambda n, m: (0, 0)),
            pl.BlockSpec((2, DEC_C), lambda n, m: (0, 0)),
            pl.BlockSpec((1, DEC_C), lambda n, m: (0, 0)),
            pl.BlockSpec((DEC_C, EMB_C), lambda n, m: (0, 0)),
            pl.BlockSpec((2, EMB_C), lambda n, m: (0, 0)),
            pl.BlockSpec((1, EMB_C), lambda n, m: (0, 0)),
        ],
        out_specs=(
            pl.BlockSpec((1, tm, DEC_C), lambda n, m: (n, m, 0)),
            pl.BlockSpec((1, 1, 1, EMB_C), lambda n, m: (n, m, 0, 0)),
        ),
        compiler_params=_cparams(),
    )(x12, prior_pix, p["enc_w12"], p["enc_b"], p["wd1"], p["wd2"], p["bd"],
      p["we1"], p["we2"], p["be"])


# -----------------------------------------------------------------------------
# Kernel 2: fused (Wa o conv_out) logits -> softmax -> bin-center weighted sum
#           (main depth), + diff-mViT embedding partial pool, + hoisted diff
#           logits (they do not depend on the diff bin centers).
# -----------------------------------------------------------------------------
def _binsum_kernel(dec_ref, pri_ref, seg_ref,
                   wm_dec_ref, wm_pri_ref, bm_ref, cen_ref,
                   wde_p_ref, wde_dec_ref, wde_seg_ref, bed_ref,
                   wdf_p_ref, wdf_dec_ref, wdf_seg_ref, bdf_ref,
                   pred_ref, dlog_ref, dep_ref, *, bf16_exp):
    dec = dec_ref[0]                                   # (TM, 46) bf16
    pri = pri_ref[0].astype(jnp.float32)               # (TM, 2)  f32
    seg = seg_ref[0]                                   # (TM, 29) bf16

    logits = jnp.dot(dec, wm_dec_ref[...], preferred_element_type=jnp.float32)
    logits = logits + pri[:, 0:1] * wm_pri_ref[0:1, :] \
                    + pri[:, 1:2] * wm_pri_ref[1:2, :]
    logits = logits + bm_ref[...]                      # (TM, 128) f32
    mx = jnp.max(logits, axis=-1, keepdims=True)
    z = logits - mx
    if bf16_exp:                                       # bf16 EUP on v6e/v7x
        e = jnp.exp(z.astype(jnp.bfloat16)).astype(jnp.float32)
    else:
        e = jnp.exp(z)
    s = jnp.sum(e, axis=-1, keepdims=True)
    # bin-center weighted sum via VPU mul + lane reduce (no N=1 f32 MXU pass)
    wsum = jnp.sum(e * cen_ref[0], axis=-1, keepdims=True)        # (TM, 1)
    pred = wsum * pl.reciprocal(s, approx=True)                   # (TM, 1)
    pred_ref[0] = pred

    # diff-mViT embedding on [pred | decoder_out | segms]  (split matmul)
    ed = pred * wde_p_ref[...]                                    # (TM, 76)
    ed = ed + jnp.dot(dec, wde_dec_ref[...], preferred_element_type=jnp.float32)
    ed = ed + jnp.dot(seg, wde_seg_ref[...], preferred_element_type=jnp.float32)
    ed = jnp.maximum(ed + bed_ref[...], 0.0)
    dep_ref[0, 0] = jnp.sum(ed, axis=0, keepdims=True)            # (1, 76)

    # hoisted diff logits (fused Wa o diff_conv_out) on [pred | dec | segms]
    dl = pred * wdf_p_ref[...]                                    # (TM, 10)
    dl = dl + jnp.dot(dec, wdf_dec_ref[...], preferred_element_type=jnp.float32)
    dl = dl + jnp.dot(seg, wdf_seg_ref[...], preferred_element_type=jnp.float32)
    dl = dl + bdf_ref[...]
    dlog_ref[0] = dl.astype(dlog_ref.dtype)


def binsum(dec_pix, prior_pix, segms_pix, centers_row, p, tm, bf16_exp):
    N, M, _ = dec_pix.shape
    mt = M // tm
    kernel = functools.partial(_binsum_kernel, bf16_exp=bf16_exp)
    return pl.pallas_call(
        kernel,
        out_shape=(
            jax.ShapeDtypeStruct((N, M, 1), jnp.float32),
            jax.ShapeDtypeStruct((N, M, N_DIFF_BINS), jnp.bfloat16),
            jax.ShapeDtypeStruct((N, mt, 1, DIFF_C), jnp.float32),
        ),
        grid=(N, mt),
        in_specs=[
            pl.BlockSpec((1, tm, DEC_C), lambda n, m: (n, m, 0)),
            pl.BlockSpec((1, tm, 2), lambda n, m: (n, m, 0)),
            pl.BlockSpec((1, tm, SEG_C), lambda n, m: (n, m, 0)),
            pl.BlockSpec((DEC_C, N_BINS), lambda n, m: (0, 0)),
            pl.BlockSpec((2, N_BINS), lambda n, m: (0, 0)),
            pl.BlockSpec((1, N_BINS), lambda n, m: (0, 0)),
            pl.BlockSpec((1, 1, N_BINS), lambda n, m: (n, 0, 0)),
            pl.BlockSpec((1, DIFF_C), lambda n, m: (0, 0)),
            pl.BlockSpec((DEC_C, DIFF_C), lambda n, m: (0, 0)),
            pl.BlockSpec((SEG_C, DIFF_C), lambda n, m: (0, 0)),
            pl.BlockSpec((1, DIFF_C), lambda n, m: (0, 0)),
            pl.BlockSpec((1, N_DIFF_BINS), lambda n, m: (0, 0)),
            pl.BlockSpec((DEC_C, N_DIFF_BINS), lambda n, m: (0, 0)),
            pl.BlockSpec((SEG_C, N_DIFF_BINS), lambda n, m: (0, 0)),
            pl.BlockSpec((1, N_DIFF_BINS), lambda n, m: (0, 0)),
        ],
        out_specs=(
            pl.BlockSpec((1, tm, 1), lambda n, m: (n, m, 0)),
            pl.BlockSpec((1, tm, N_DIFF_BINS), lambda n, m: (n, m, 0)),
            pl.BlockSpec((1, 1, 1, DIFF_C), lambda n, m: (n, m, 0, 0)),
        ),
        compiler_params=_cparams(),
    )(dec_pix, prior_pix, segms_pix,
      p["wm_dec"], p["wm_pri"], p["bm"], centers_row,
      p["wde_p"], p["wde_dec"], p["wde_seg"], p["bed"],
      p["wdf_p"], p["wdf_dec"], p["wdf_seg"], p["bdf"])


# -----------------------------------------------------------------------------
# Kernel 3: diff softmax over the hoisted logits -> diff bin-center weighted
#           sum + residual add.  Tiny, reads only pred + dlogits.
# -----------------------------------------------------------------------------
def _diff_binsum_kernel(pred_ref, dlog_ref, dcen_ref, o_ref):
    dl = dlog_ref[0].astype(jnp.float32)               # (TM, 10)
    mx = jnp.max(dl, axis=-1, keepdims=True)
    e = jnp.exp(dl - mx)
    s = jnp.sum(e, axis=-1, keepdims=True)
    wsum = jnp.sum(e * dcen_ref[0], axis=-1, keepdims=True)       # (TM, 1)
    o_ref[0] = pred_ref[0] + wsum * pl.reciprocal(s, approx=True)


def diff_binsum(pred, dlogits, dcenters_row, tm):
    N, M, _ = pred.shape
    mt = M // tm
    return pl.pallas_call(
        _diff_binsum_kernel,
        out_shape=jax.ShapeDtypeStruct((N, M, 1), jnp.float32),
        grid=(N, mt),
        in_specs=[
            pl.BlockSpec((1, tm, 1), lambda n, m: (n, m, 0)),
            pl.BlockSpec((1, tm, N_DIFF_BINS), lambda n, m: (n, m, 0)),
            pl.BlockSpec((1, 1, N_DIFF_BINS), lambda n, m: (n, 0, 0)),
        ],
        out_specs=pl.BlockSpec((1, tm, 1), lambda n, m: (n, m, 0)),
        compiler_params=_cparams(),
    )(pred, dlogits, dcenters_row)


# -----------------------------------------------------------------------------
# UDFNet forward
# -----------------------------------------------------------------------------
def udfnet_forward(p, rgb, prior_parametrization, segms, tm=None):
    n, _, hp, wp = prior_parametrization.shape
    M = hp * wp
    tm = _choose_tm(M, n) if tm is None else tm
    assert M % tm == 0 and tm % 8 == 0, (M, tm)
    bf16_exp = _use_bf16_exp()

    bf = jnp.bfloat16
    prior_pix = nchw_to_pix(prior_parametrization).astype(bf)     # (N, M, 2)
    segms_pix = nchw_to_pix(segms[:, :SEG_C]).astype(bf)          # (N, M, 29)
    x12 = fold_pool(rgb).astype(bf)                               # (N, M, 12)

    # Fused encoder + decoder + mViT embedding pooling
    dec_pix, emb_part = enc_dec_embed(x12, prior_pix, p, tm)
    emb_mean = emb_part.sum(axis=(1, 2)) / M                      # (N, 48) f32

    # main mViT heads (tiny per-batch math, plain JAX)
    pred_max_depth = jax.nn.softplus(emb_mean @ p["m_wd"] + p["m_bd"])    # (N,1)
    bin_widths_normed = jax.nn.softmax(emb_mean @ p["m_wb"] + p["m_bb"], axis=-1)
    bin_edges_normed = jnp.pad(jnp.cumsum(bin_widths_normed, axis=1), ((0, 0), (1, 0)))
    bin_edges = bin_edges_normed * (pred_max_depth if MAX_DEPTH is None else MAX_DEPTH)
    bin_centers = 0.5 * (bin_edges[:, :-1] + bin_edges[:, 1:])            # (N,128)

    prediction, dlogits, demb_part = binsum(
        dec_pix, prior_pix, segms_pix,
        bin_centers[:, None, :].astype(jnp.float32), p, tm, bf16_exp)
    demb_mean = demb_part.sum(axis=(1, 2)) / M                    # (N, 76) f32

    # diff heads (zero-initialised modules); pred_diff_max_depth is computed
    # but unused because max_diff_depth is not None — matches the reference.
    _pred_diff_max_depth = jax.nn.softplus(demb_mean @ p["d_wd"] + p["d_bd"])
    diff_bin_widths = jax.nn.softmax(demb_mean @ p["d_wb"] + p["d_bb"], axis=-1)
    diff_edges = jnp.pad(jnp.cumsum(diff_bin_widths, axis=1), ((0, 0), (1, 0)))
    diff_edges = diff_edges * (pred_max_depth if MAX_DIFF_DEPTH is None else MAX_DIFF_DEPTH)
    diff_edges = diff_edges - 0.5
    diff_centers = 0.5 * (diff_edges[:, :-1] + diff_edges[:, 1:])         # (N,10)

    final = diff_binsum(prediction, dlogits,
                        diff_centers[:, None, :].astype(jnp.float32), tm)
    return pix_to_nchw(final, hp, wp), bin_edges


# -----------------------------------------------------------------------------
# Deterministic parameter initialisation + kernel-ready preparation
# -----------------------------------------------------------------------------
def init_params(key):
    ks = jax.random.split(key, 8)

    def w(k, shape, fan_in):
        return jax.random.normal(k, shape, jnp.float32) / np.sqrt(fan_in)

    def z(*shape):
        return jnp.zeros(shape, jnp.float32)

    return {
        "enc_w": w(ks[0], (3, ENC_C), 3), "enc_b": z(ENC_C),
        "dec_w": w(ks[1], (ENC_C + 2, DEC_C), ENC_C + 2), "dec_b": z(DEC_C),
        "mvit": {
            "We": w(ks[2], (EMB_C, EMB_C), EMB_C), "be": z(EMB_C),
            "Wd": w(ks[3], (EMB_C, 1), EMB_C), "bd": z(1),
            "Wb": w(ks[4], (EMB_C, N_BINS), EMB_C), "bb": z(N_BINS),
            "Wa": w(ks[5], (EMB_C, EMB_C), EMB_C), "ba": z(EMB_C),
        },
        "conv_out_w": w(ks[6], (EMB_C, N_BINS), EMB_C), "conv_out_b": z(N_BINS),
        # diff_mViT / diff_conv_out are zero_module(...) -> all zeros
        "diff_mvit": {
            "We": z(DIFF_C, DIFF_C), "be": z(DIFF_C),
            "Wd": z(DIFF_C, 1), "bd": z(1),
            "Wb": z(DIFF_C, N_DIFF_BINS), "bb": z(N_DIFF_BINS),
            "Wa": z(DIFF_C, DIFF_C), "ba": z(DIFF_C),
        },
        "diff_conv_out_w": z(DIFF_C, N_DIFF_BINS), "diff_conv_out_b": z(N_DIFF_BINS),
    }


def prepare_params(raw):
    """Fold pooling / linear fusion / split-for-concat-avoidance / dtype casts."""
    bf = jnp.bfloat16
    p = {}
    # encoder: fold 2x2 avg-pool into channels (3 -> 12)
    p["enc_w12"] = (jnp.repeat(raw["enc_w"], 4, axis=0) * 0.25).astype(bf)
    p["enc_b"] = raw["enc_b"].reshape(1, -1)
    # decoder split over [enc 1280 | prior 2]
    p["wd1"] = raw["dec_w"][:ENC_C].astype(bf)
    p["wd2"] = raw["dec_w"][ENC_C:]                     # (2,46) f32 — VPU path
    p["bd"] = raw["dec_b"].reshape(1, -1)
    # main mViT embedding split over mvit_in = [decoder 46 | prior 2]
    We = raw["mvit"]["We"]
    p["we1"], p["we2"] = We[:DEC_C].astype(bf), We[DEC_C:]        # (2,48) f32
    p["be"] = raw["mvit"]["be"].reshape(1, -1)
    p["m_wd"], p["m_bd"] = raw["mvit"]["Wd"], raw["mvit"]["bd"]
    p["m_wb"], p["m_bb"] = raw["mvit"]["Wb"], raw["mvit"]["bb"]
    # fuse linear Wa conv with conv_out: logits = x @ (Wa@Wc) + (ba@Wc + bc)
    Wm = raw["mvit"]["Wa"] @ raw["conv_out_w"]
    bm = raw["mvit"]["ba"] @ raw["conv_out_w"] + raw["conv_out_b"]
    p["wm_dec"], p["wm_pri"] = Wm[:DEC_C].astype(bf), Wm[DEC_C:]  # (2,128) f32
    p["bm"] = bm.reshape(1, -1)
    # diff branch split over diff_mvit_in = [pred 1 | decoder 46 | segms 29]
    WeD = raw["diff_mvit"]["We"]
    p["wde_p"] = WeD[0:1]                               # (1,76) f32 — VPU path
    p["wde_dec"] = WeD[1:1 + DEC_C].astype(bf)
    p["wde_seg"] = WeD[1 + DEC_C:].astype(bf)
    p["bed"] = raw["diff_mvit"]["be"].reshape(1, -1)
    p["d_wd"], p["d_bd"] = raw["diff_mvit"]["Wd"], raw["diff_mvit"]["bd"]
    p["d_wb"], p["d_bb"] = raw["diff_mvit"]["Wb"], raw["diff_mvit"]["bb"]
    Wdf = raw["diff_mvit"]["Wa"] @ raw["diff_conv_out_w"]
    bdf = raw["diff_mvit"]["ba"] @ raw["diff_conv_out_w"] + raw["diff_conv_out_b"]
    p["wdf_p"] = Wdf[0:1]                               # (1,10) f32 — VPU path
    p["wdf_dec"] = Wdf[1:1 + DEC_C].astype(bf)
    p["wdf_seg"] = Wdf[1 + DEC_C:].astype(bf)
    p["bdf"] = bdf.reshape(1, -1)
    return p


# -----------------------------------------------------------------------------
# Pure-JAX reference mirroring the kernel math (for correctness check)
# -----------------------------------------------------------------------------
def _forward_reference(p, rgb, prior, segms):
    f32, bf = jnp.float32, jnp.bfloat16
    hp, wp = prior.shape[2], prior.shape[3]

    def mm(a, b):
        return jnp.einsum("nmc,ck->nmk", a, b, preferred_element_type=f32)

    x12 = fold_pool(rgb).astype(bf)
    pri = nchw_to_pix(prior).astype(bf).astype(f32)
    seg = nchw_to_pix(segms[:, :SEG_C]).astype(bf)

    enc = jax.nn.relu(mm(x12, p["enc_w12"]) + p["enc_b"]).astype(bf)
    d = jax.nn.relu(mm(enc, p["wd1"])
                    + pri[..., 0:1] * p["wd2"][0:1] + pri[..., 1:2] * p["wd2"][1:2]
                    + p["bd"]).astype(bf)
    e = jax.nn.relu(mm(d, p["we1"])
                    + pri[..., 0:1] * p["we2"][0:1] + pri[..., 1:2] * p["we2"][1:2]
                    + p["be"])
    emb_mean = e.mean(axis=1)
    pred_max_depth = jax.nn.softplus(emb_mean @ p["m_wd"] + p["m_bd"])
    widths = jax.nn.softmax(emb_mean @ p["m_wb"] + p["m_bb"], axis=-1)
    edges = jnp.pad(jnp.cumsum(widths, axis=1), ((0, 0), (1, 0))) * pred_max_depth
    centers = 0.5 * (edges[:, :-1] + edges[:, 1:])

    logits = (mm(d, p["wm_dec"])
              + pri[..., 0:1] * p["wm_pri"][0:1] + pri[..., 1:2] * p["wm_pri"][1:2]
              + p["bm"])
    probs = jax.nn.softmax(logits, axis=-1)
    pred = jnp.sum(probs * centers[:, None, :], axis=-1, keepdims=True)

    ed = jax.nn.relu(pred * p["wde_p"] + mm(d, p["wde_dec"])
                     + mm(seg, p["wde_seg"]) + p["bed"])
    demb_mean = ed.mean(axis=1)
    dwidths = jax.nn.softmax(demb_mean @ p["d_wb"] + p["d_bb"], axis=-1)
    dedges = jnp.pad(jnp.cumsum(dwidths, axis=1), ((0, 0), (1, 0))) * MAX_DIFF_DEPTH - 0.5
    dcenters = 0.5 * (dedges[:, :-1] + dedges[:, 1:])
    dlogits = pred * p["wdf_p"] + mm(d, p["wdf_dec"]) + mm(seg, p["wdf_seg"]) + p["bdf"]
    dprobs = jax.nn.softmax(dlogits, axis=-1)
    dpred = jnp.sum(dprobs * dcenters[:, None, :], axis=-1, keepdims=True)
    return pix_to_nchw(pred + dpred, hp, wp), edges


# -----------------------------------------------------------------------------
if __name__ == "__main__":
    key = jax.random.PRNGKey(0)
    k_par, k_rgb, k_prior, k_segms = jax.random.split(key, 4)

    # Small shapes consistent with the module: rgb at 2x the prior resolution.
    rgb = jax.random.normal(k_rgb, (2, 3, 32, 32), jnp.float32)
    prior = jax.random.normal(k_prior, (2, 2, 16, 16), jnp.float32)
    segms = jax.random.normal(k_segms, (2, 30, 16, 16), jnp.float32)

    params = prepare_params(init_params(k_par))

    fwd = jax.jit(udfnet_forward)   # tm auto-chosen (128 here -> 4 grid points)
    prediction, bin_edges = fwd(params, rgb, prior, segms)
    jax.block_until_ready((prediction, bin_edges))

    assert prediction.shape == (2, 1, 16, 16), prediction.shape
    assert bin_edges.shape == (2, N_BINS + 1), bin_edges.shape
    assert bool(jnp.all(jnp.isfinite(prediction)))
    assert bool(jnp.all(jnp.isfinite(bin_edges)))

    ref_pred, ref_edges = _forward_reference(params, rgb, prior, segms)
    assert float(jnp.max(jnp.abs(prediction - ref_pred))) < 2e-2
    assert float(jnp.max(jnp.abs(bin_edges - ref_edges))) < 2e-2

    print("KERNEL_OK")
</pallas_src>

<mosaic_0001>
module attributes {stable_mosaic.version = 11 : i64} {
  func.func @_enc_dec_embed_kernel(%arg0: i32, %arg1: i32, %arg2: memref<1x128x12xbf16, #tpu.memory_space<vmem>>, %arg3: memref<1x128x2xbf16, #tpu.memory_space<vmem>>, %arg4: memref<12x1280xbf16, #tpu.memory_space<vmem>>, %arg5: memref<1x1280xf32, #tpu.memory_space<vmem>>, %arg6: memref<1280x46xbf16, #tpu.memory_space<vmem>>, %arg7: memref<2x46xf32, #tpu.memory_space<vmem>>, %arg8: memref<1x46xf32, #tpu.memory_space<vmem>>, %arg9: memref<46x48xbf16, #tpu.memory_space<vmem>>, %arg10: memref<2x48xf32, #tpu.memory_space<vmem>>, %arg11: memref<1x48xf32, #tpu.memory_space<vmem>>, %arg12: memref<1x128x46xbf16, #tpu.memory_space<vmem>>, %arg13: memref<1x1x1x48xf32, #tpu.memory_space<vmem>>) attributes {dimension_semantics = [#tpu.dimension_semantics<parallel>, #tpu.dimension_semantics<parallel>], iteration_bounds = array<i64: 2, 2>, scalar_prefetch = 0 : i64, scratch_operands = 0 : i64, tpu.core_type = #tpu.core_type<tc>, window_params = [{transform_indices = @transform_0, window_bounds = array<i64: 1, 128, 12>}, {transform_indices = @transform_1, window_bounds = array<i64: 1, 128, 2>}, {pipeline_mode = #tpu.pipeline_mode<synchronous>, transform_indices = @transform_2, window_bounds = array<i64: 12, 1280>}, {pipeline_mode = #tpu.pipeline_mode<synchronous>, transform_indices = @transform_3, window_bounds = array<i64: 1, 1280>}, {pipeline_mode = #tpu.pipeline_mode<synchronous>, transform_indices = @transform_4, window_bounds = array<i64: 1280, 46>}, {pipeline_mode = #tpu.pipeline_mode<synchronous>, transform_indices = @transform_5, window_bounds = array<i64: 2, 46>}, {pipeline_mode = #tpu.pipeline_mode<synchronous>, transform_indices = @transform_6, window_bounds = array<i64: 1, 46>}, {pipeline_mode = #tpu.pipeline_mode<synchronous>, transform_indices = @transform_7, window_bounds = array<i64: 46, 48>}, {pipeline_mode = #tpu.pipeline_mode<synchronous>, transform_indices = @transform_8, window_bounds = array<i64: 2, 48>}, {pipeline_mode = #tpu.pipeline_mode<synchronous>, transform_indices = @transform_9, window_bounds = array<i64: 1, 48>}, {transform_indices = @transform_10, window_bounds = array<i64: 1, 128, 46>}, {transform_indices = @transform_11, window_bounds = array<i64: 1, 1, 1, 48>}]} {
    %c0 = arith.constant 0 : index
    %c0_0 = arith.constant 0 : index
    %c0_1 = arith.constant 0 : index
    %0 = vector.load %arg2[%c0, %c0_0, %c0_1] : memref<1x128x12xbf16, #tpu.memory_space<vmem>>, vector<1x128x12xbf16>
    %1 = vector.shape_cast %0 : vector<1x128x12xbf16> to vector<128x12xbf16>
    %c0_2 = arith.constant 0 : index
    %c0_3 = arith.constant 0 : index
    %c0_4 = arith.constant 0 : index
    %2 = vector.load %arg3[%c0_2, %c0_3, %c0_4] : memref<1x128x2xbf16, #tpu.memory_space<vmem>>, vector<1x128x2xbf16>
    %3 = vector.shape_cast %2 : vector<1x128x2xbf16> to vector<128x2xbf16>
    %4 = arith.extf %3 : vector<128x2xbf16> to vector<128x2xf32>
    %5 = vector.extract_strided_slice %4 {offsets = [0, 0], sizes = [128, 1], strides = [1, 1]} : vector<128x2xf32> to vector<128x1xf32>
    %c0_5 = arith.constant 0 : index
    %c0_6 = arith.constant 0 : index
    %6 = vector.load %arg7[%c0_5, %c0_6] : memref<2x46xf32, #tpu.memory_space<vmem>>, vector<1x46xf32>
    %7 = vector.broadcast %5 : vector<128x1xf32> to vector<128x46xf32>
    %8 = vector.broadcast %6 : vector<1x46xf32> to vector<128x46xf32>
    %9 = arith.mulf %7, %8 : vector<128x46xf32>
    %10 = vector.extract_strided_slice %4 {offsets = [0, 1], sizes = [128, 1], strides = [1, 1]} : vector<128x2xf32> to vector<128x1xf32>
    %c1 = arith.constant 1 : index
    %c0_7 = arith.constant 0 : index
    %11 = vector.load %arg7[%c1, %c0_7] : memref<2x46xf32, #tpu.memory_space<vmem>>, vector<1x46xf32>
    %12 = vector.broadcast %10 : vector<128x1xf32> to vector<128x46xf32>
    %13 = vector.broadcast %11 : vector<1x46xf32> to vector<128x46xf32>
    %14 = arith.mulf %12, %13 : vector<128x46xf32>
    %15 = arith.addf %9, %14 : vector<128x46xf32>
    %c0_8 = arith.constant 0 : index
    %c0_9 = arith.constant 0 : index
    %16 = vector.load %arg8[%c0_8, %c0_9] : memref<1x46xf32, #tpu.memory_space<vmem>>, vector<1x46xf32>
    %17 = vector.broadcast %16 : vector<1x46xf32> to vector<128x46xf32>
    %18 = arith.addf %15, %17 : vector<128x46xf32>
    %c0_10 = arith.constant 0 : index
    %c0_11 = arith.constant 0 : index
    %19 = vector.load %arg4[%c0_10, %c0_11] : memref<12x1280xbf16, #tpu.memory_space<vmem>>, vector<12x256xbf16>
    %cst = arith.constant dense<0.000000e+00> : vector<128x256xf32>
    %20 = tpu.matmul %1, %19, %cst {dimension_numbers = #tpu.dot_dimension_numbers<[1], [0], [0], [1], [0, 0, 1, 1], [], []>} : vector<128x12xbf16>, vector<12x256xbf16>, vector<128x256xf32> -> vector<128x256xf32>
    %c0_12 = arith.constant 0 : index
    %c0_13 = arith.constant 0 : index
    %21 = vector.load %arg5[%c0_12, %c0_13] : memref<1x1280xf32, #tpu.memory_space<vmem>>, vector<1x256xf32>
    %22 = vector.broadcast %21 : vector<1x256xf32> to vector<128x256xf32>
    %23 = arith.addf %20, %22 : vector<128x256xf32>
    %cst_14 = arith.constant 0.000000e+00 : f32
    %24 = vector.broadcast %cst_14 : f32 to vector<128x256xf32>
    %25 = arith.maximumf %23, %24 : vector<128x256xf32>
    %26 = arith.truncf %25 : vector<128x256xf32> to vector<128x256xbf16>
    %c0_15 = arith.constant 0 : index
    %c0_16 = arith.constant 0 : index
    %27 = vector.load %arg6[%c0_15, %c0_16] : memref<1280x46xbf16, #tpu.memory_space<vmem>>, vector<256x46xbf16>
    %cst_17 = arith.constant dense<0.000000e+00> : vector<128x46xf32>
    %28 = tpu.matmul %26, %27, %cst_17 {dimension_numbers = #tpu.dot_dimension_numbers<[1], [0], [0], [1], [0, 0, 1, 1], [], []>} : vector<128x256xbf16>, vector<256x46xbf16>, vector<128x46xf32> -> vector<128x46xf32>
    %29 = arith.addf %18, %28 : vector<128x46xf32>
    %c0_18 = arith.constant 0 : index
    %c256 = arith.constant 256 : index
    %30 = vector.load %arg4[%c0_18, %c256] : memref<12x1280xbf16, #tpu.memory_space<vmem>>, vector<12x256xbf16>
    %cst_19 = arith.constant dense<0.000000e+00> : vector<128x256xf32>
    %31 = tpu.matmul %1, %30, %cst_19 {dimension_numbers = #tpu.dot_dimension_numbers<[1], [0], [0], [1], [0, 0, 1, 1], [], []>} : vector<128x12xbf16>, vector<12x256xbf16>, vector<128x256xf32> -> vector<128x256xf32>
    %c0_20 = arith.constant 0 : index
    %c256_21 = arith.constant 256 : index
    %32 = vector.load %arg5[%c0_20, %c256_21] : memref<1x1280xf32, #tpu.memory_space<vmem>>, vector<1x256xf32>
    %33 = vector.broadcast %32 : vector<1x256xf32> to vector<128x256xf32>
    %34 = arith.addf %31, %33 : vector<128x256xf32>
    %cst_22 = arith.constant 0.000000e+00 : f32
    %35 = vector.broadcast %cst_22 : f32 to vector<128x256xf32>
    %36 = arith.maximumf %34, %35 : vector<128x256xf32>
    %37 = arith.truncf %36 : vector<128x256xf32> to vector<128x256xbf16>
    %c256_23 = arith.constant 256 : index
    %c0_24 = arith.constant 0 : index
    %38 = vector.load %arg6[%c256_23, %c0_24] : memref<1280x46xbf16, #tpu.memory_space<vmem>>, vector<256x46xbf16>
    %cst_25 = arith.constant dense<0.000000e+00> : vector<128x46xf32>
    %39 = tpu.matmul %37, %38, %cst_25 {dimension_numbers = #tpu.dot_dimension_numbers<[1], [0], [0], [1], [0, 0, 1, 1], [], []>} : vector<128x256xbf16>, vector<256x46xbf16>, vector<128x46xf32> -> vector<128x46xf32>
    %40 = arith.addf %29, %39 : vector<128x46xf32>
    %c0_26 = arith.constant 0 : index
    %c512 = arith.constant 512 : index
    %41 = vector.load %arg4[%c0_26, %c512] : memref<12x1280xbf16, #tpu.memory_space<vmem>>, vector<12x256xbf16>
    %cst_27 = arith.constant dense<0.000000e+00> : vector<128x256xf32>
    %42 = tpu.matmul %1, %41, %cst_27 {dimension_numbers = #tpu.dot_dimension_numbers<[1], [0], [0], [1], [0, 0, 1, 1], [], []>} : vector<128x12xbf16>, vector<12x256xbf16>, vector<128x256xf32> -> vector<128x256xf32>
    %c0_28 = arith.constant 0 : index
    %c512_29 = arith.constant 512 : index
    %43 = vector.load %arg5[%c0_28, %c512_29] : memref<1x1280xf32, #tpu.memory_space<vmem>>, vector<1x256xf32>
    %44 = vector.broadcast %43 : vector<1x256xf32> to vector<128x256xf32>
    %45 = arith.addf %42, %44 : vector<128x256xf32>
    %cst_30 = arith.constant 0.000000e+00 : f32
    %46 = vector.broadcast %cst_30 : f32 to vector<128x256xf32>
    %47 = arith.maximumf %45, %46 : vector<128x256xf32>
    %48 = arith.truncf %47 : vector<128x256xf32> to vector<128x256xbf16>
    %c512_31 = arith.constant 512 : index
    %c0_32 = arith.constant 0 : index
    %49 = vector.load %arg6[%c512_31, %c0_32] : memref<1280x46xbf16, #tpu.memory_space<vmem>>, vector<256x46xbf16>
    %cst_33 = arith.constant dense<0.000000e+00> : vector<128x46xf32>
    %50 = tpu.matmul %48, %49, %cst_33 {dimension_numbers = #tpu.dot_dimension_numbers<[1], [0], [0], [1], [0, 0, 1, 1], [], []>} : vector<128x256xbf16>, vector<256x46xbf16>, vector<128x46xf32> -> vector<128x46xf32>
    %51 = arith.addf %40, %50 : vector<128x46xf32>
    %c0_34 = arith.constant 0 : index
    %c768 = arith.constant 768 : index
    %52 = vector.load %arg4[%c0_34, %c768] : memref<12x1280xbf16, #tpu.memory_space<vmem>>, vector<12x256xbf16>
    %cst_35 = arith.constant dense<0.000000e+00> : vector<128x256xf32>
    %53 = tpu.matmul %1, %52, %cst_35 {dimension_numbers = #tpu.dot_dimension_numbers<[1], [0], [0], [1], [0, 0, 1, 1], [], []>} : vector<128x12xbf16>, vector<12x256xbf16>, vector<128x256xf32> -> vector<128x256xf32>
    %c0_36 = arith.constant 0 : index
    %c768_37 = arith.constant 768 : index
    %54 = vector.load %arg5[%c0_36, %c768_37] : memref<1x1280xf32, #tpu.memory_space<vmem>>, vector<1x256xf32>
    %55 = vector.broadcast %54 : vector<1x256xf32> to vector<128x256xf32>
    %56 = arith.addf %53, %55 : vector<128x256xf32>
    %cst_38 = arith.constant 0.000000e+00 : f32
    %57 = vector.broadcast %cst_38 : f32 to vector<128x256xf32>
    %58 = arith.maximumf %56, %57 : vector<128x256xf32>
    %59 = arith.truncf %58 : vector<128x256xf32> to vector<128x256xbf16>
    %c768_39 = arith.constant 768 : index
    %c0_40 = arith.constant 0 : index
    %60 = vector.load %arg6[%c768_39, %c0_40] : memref<1280x46xbf16, #tpu.memory_space<vmem>>, vector<256x46xbf16>
    %cst_41 = arith.constant dense<0.000000e+00> : vector<128x46xf32>
    %61 = tpu.matmul %59, %60, %cst_41 {dimension_numbers = #tpu.dot_dimension_numbers<[1], [0], [0], [1], [0, 0, 1, 1], [], []>} : vector<128x256xbf16>, vector<256x46xbf16>, vector<128x46xf32> -> vector<128x46xf32>
    %62 = arith.addf %51, %61 : vector<128x46xf32>
    %c0_42 = arith.constant 0 : index
    %c1024 = arith.constant 1024 : index
    %63 = vector.load %arg4[%c0_42, %c1024] : memref<12x1280xbf16, #tpu.memory_space<vmem>>, vector<12x256xbf16>
    %cst_43 = arith.constant dense<0.000000e+00> : vector<128x256xf32>
    %64 = tpu.matmul %1, %63, %cst_43 {dimension_numbers = #tpu.dot_dimension_numbers<[1], [0], [0], [1], [0, 0, 1, 1], [], []>} : vector<128x12xbf16>, vector<12x256xbf16>, vector<128x256xf32> -> vector<128x256xf32>
    %c0_44 = arith.constant 0 : index
    %c1024_45 = arith.constant 1024 : index
    %65 = vector.load %arg5[%c0_44, %c1024_45] : memref<1x1280xf32, #tpu.memory_space<vmem>>, vector<1x256xf32>
    %66 = vector.broadcast %65 : vector<1x256xf32> to vector<128x256xf32>
    %67 = arith.addf %64, %66 : vector<128x256xf32>
    %cst_46 = arith.constant 0.000000e+00 : f32
    %68 = vector.broadcast %cst_46 : f32 to vector<128x256xf32>
    %69 = arith.maximumf %67, %68 : vector<128x256xf32>
    %70 = arith.truncf %69 : vector<128x256xf32> to vector<128x256xbf16>
    %c1024_47 = arith.constant 1024 : index
    %c0_48 = arith.constant 0 : index
    %71 = vector.load %arg6[%c1024_47, %c0_48] : memref<1280x46xbf16, #tpu.memory_space<vmem>>, vector<256x46xbf16>
    %cst_49 = arith.constant dense<0.000000e+00> : vector<128x46xf32>
    %72 = tpu.matmul %70, %71, %cst_49 {dimension_numbers = #tpu.dot_dimension_numbers<[1], [0], [0], [1], [0, 0, 1, 1], [], []>} : vector<128x256xbf16>, vector<256x46xbf16>, vector<128x46xf32> -> vector<128x46xf32>
    %73 = arith.addf %62, %72 : vector<128x46xf32>
    %cst_50 = arith.constant 0.000000e+00 : f32
    %74 = vector.broadcast %cst_50 : f32 to vector<128x46xf32>
    %75 = arith.maximumf %73, %74 : vector<128x46xf32>
    %76 = arith.truncf %75 : vector<128x46xf32> to vector<128x46xbf16>
    %c0_51 = arith.constant 0 : index
    %c0_52 = arith.constant 0 : index
    %c0_53 = arith.constant 0 : index
    %77 = vector.load %arg12[%c0_51, %c0_52, %c0_53] : memref<1x128x46xbf16, #tpu.memory_space<vmem>>, vector<1x128x46xbf16>
    %78 = vector.shape_cast %77 : vector<1x128x46xbf16> to vector<128x46xbf16>
    %79 = vector.shape_cast %76 : vector<128x46xbf16> to vector<1x128x46xbf16>
    tpu.vector_store %arg12[%c0_51, %c0_52, %c0_53], %79 {strides = array<i32>} : memref<1x128x46xbf16, #tpu.memory_space<vmem>>, vector<1x128x46xbf16>,
    %c0_54 = arith.constant 0 : index
    %c0_55 = arith.constant 0 : index
    %80 = vector.load %arg9[%c0_54, %c0_55] : memref<46x48xbf16, #tpu.memory_space<vmem>>, vector<46x48xbf16>
    %cst_56 = arith.constant dense<0.000000e+00> : vector<128x48xf32>
    %81 = tpu.matmul %76, %80, %cst_56 {dimension_numbers = #tpu.dot_dimension_numbers<[1], [0], [0], [1], [0, 0, 1, 1], [], []>} : vector<128x46xbf16>, vector<46x48xbf16>, vector<128x48xf32> -> vector<128x48xf32>
    %82 = vector.extract_strided_slice %4 {offsets = [0, 0], sizes = [128, 1], strides = [1, 1]} : vector<128x2xf32> to vector<128x1xf32>
    %c0_57 = arith.constant 0 : index
    %c0_58 = arith.constant 0 : index
    %83 = vector.load %arg10[%c0_57, %c0_58] : memref<2x48xf32, #tpu.memory_space<vmem>>, vector<1x48xf32>
    %84 = vector.broadcast %82 : vector<128x1xf32> to vector<128x48xf32>
    %85 = vector.broadcast %83 : vector<1x48xf32> to vector<128x48xf32>
    %86 = arith.mulf %84, %85 : vector<128x48xf32>
    %87 = arith.addf %81, %86 : vector<128x48xf32>
    %88 = vector.extract_strided_slice %4 {offsets = [0, 1], sizes = [128, 1], strides = [1, 1]} : vector<128x2xf32> to vector<128x1xf32>
    %c1_59 = arith.constant 1 : index
    %c0_60 = arith.constant 0 : index
    %89 = vector.load %arg10[%c1_59, %c0_60] : memref<2x48xf32, #tpu.memory_space<vmem>>, vector<1x48xf32>
    %90 = vector.broadcast %88 : vector<128x1xf32> to vector<128x48xf32>
    %91 = vector.broadcast %89 : vector<1x48xf32> to vector<128x48xf32>
    %92 = arith.mulf %90, %91 : vector<128x48xf32>
    %93 = arith.addf %87, %92 : vector<128x48xf32>
    %c0_61 = arith.constant 0 : index
    %c0_62 = arith.constant 0 : index
    %94 = vector.load %arg11[%c0_61, %c0_62] : memref<1x48xf32, #tpu.memory_space<vmem>>, vector<1x48xf32>
    %95 = vector.broadcast %94 : vector<1x48xf32> to vector<128x48xf32>
    %96 = arith.addf %93, %95 : vector<128x48xf32>
    %cst_63 = arith.constant 0.000000e+00 : f32
    %97 = vector.broadcast %cst_63 : f32 to vector<128x48xf32>
    %98 = arith.maximumf %96, %97 : vector<128x48xf32>
    %cst_64 = arith.constant dense<0.000000e+00> : vector<48xf32>
    %99 = vector.multi_reduction <add>, %98, %cst_64 [0] : vector<128x48xf32> to vector<48xf32>
    %100 = vector.shape_cast %99 : vector<48xf32> to vector<1x48xf32>
    %c0_65 = arith.constant 0 : index
    %c0_66 = arith.constant 0 : index
    %c0_67 = arith.constant 0 : index
    %c0_68 = arith.constant 0 : index
    %101 = vector.load %arg13[%c0_65, %c0_66, %c0_67, %c0_68] : memref<1x1x1x48xf32, #tpu.memory_space<vmem>>, vector<1x1x1x48xf32>
    %102 = vector.shape_cast %101 : vector<1x1x1x48xf32> to vector<1x48xf32>
    %103 = vector.shape_cast %100 : vector<1x48xf32> to vector<1x1x1x48xf32>
    tpu.vector_store %arg13[%c0_65, %c0_66, %c0_67, %c0_68], %103 {strides = array<i32>} : memref<1x1x1x48xf32, #tpu.memory_space<vmem>>, vector<1x1x1x48xf32>,
    return
  }
  func.func @transform_0(%arg0: i32, %arg1: i32) -> (i32, i32, i32) {
    %c0_i32 = arith.constant 0 : i32
    %c0_i32_0 = arith.constant 0 : i32
    return %arg0, %arg1, %c0_i32 : i32, i32, i32
  }
  func.func @transform_1(%arg0: i32, %arg1: i32) -> (i32, i32, i32) {
    %c0_i32 = arith.constant 0 : i32
    %c0_i32_0 = arith.constant 0 : i32
    return %arg0, %arg1, %c0_i32 : i32, i32, i32
  }
  func.func @transform_2(%arg0: i32, %arg1: i32) -> (i32, i32) {
    %c0_i32 = arith.constant 0 : i32
    %c0_i32_0 = arith.constant 0 : i32
    %c0_i32_1 = arith.constant 0 : i32
    return %c0_i32, %c0_i32_0 : i32, i32
  }
  func.func @transform_3(%arg0: i32, %arg1: i32) -> (i32, i32) {
    %c0_i32 = arith.constant 0 : i32
    %c0_i32_0 = arith.constant 0 : i32
    %c0_i32_1 = arith.constant 0 : i32
    return %c0_i32, %c0_i32_0 : i32, i32
  }
  func.func @transform_4(%arg0: i32, %arg1: i32) -> (i32, i32) {
    %c0_i32 = arith.constant 0 : i32
    %c0_i32_0 = arith.constant 0 : i32
    %c0_i32_1 = arith.constant 0 : i32
    return %c0_i32, %c0_i32_0 : i32, i32
  }
  func.func @transform_5(%arg0: i32, %arg1: i32) -> (i32, i32) {
    %c0_i32 = arith.constant 0 : i32
    %c0_i32_0 = arith.constant 0 : i32
    %c0_i32_1 = arith.constant 0 : i32
    return %c0_i32, %c0_i32_0 : i32, i32
  }
  func.func @transform_6(%arg0: i32, %arg1: i32) -> (i32, i32) {
    %c0_i32 = arith.constant 0 : i32
    %c0_i32_0 = arith.constant 0 : i32
    %c0_i32_1 = arith.constant 0 : i32
    return %c0_i32, %c0_i32_0 : i32, i32
  }
  func.func @transform_7(%arg0: i32, %arg1: i32) -> (i32, i32) {
    %c0_i32 = arith.constant 0 : i32
    %c0_i32_0 = arith.constant 0 : i32
    %c0_i32_1 = arith.constant 0 : i32
    return %c0_i32, %c0_i32_0 : i32, i32
  }
  func.func @transform_8(%arg0: i32, %arg1: i32) -> (i32, i32) {
    %c0_i32 = arith.constant 0 : i32
    %c0_i32_0 = arith.constant 0 : i32
    %c0_i32_1 = arith.constant 0 : i32
    return %c0_i32, %c0_i32_0 : i32, i32
  }
  func.func @transform_9(%arg0: i32, %arg1: i32) -> (i32, i32) {
    %c0_i32 = arith.constant 0 : i32
    %c0_i32_0 = arith.constant 0 : i32
    %c0_i32_1 = arith.constant 0 : i32
    return %c0_i32, %c0_i32_0 : i32, i32
  }
  func.func @transform_10(%arg0: i32, %arg1: i32) -> (i32, i32, i32) {
    %c0_i32 = arith.constant 0 : i32
    %c0_i32_0 = arith.constant 0 : i32
    return %arg0, %arg1, %c0_i32 : i32, i32, i32
  }
  func.func @transform_11(%arg0: i32, %arg1: i32) -> (i32, i32, i32, i32) {
    %c0_i32 = arith.constant 0 : i32
    %c0_i32_0 = arith.constant 0 : i32
    %c0_i32_1 = arith.constant 0 : i32
    return %arg0, %arg1, %c0_i32, %c0_i32_0 : i32, i32, i32, i32
  }
}

module attributes {stable_mosaic.version = 11 : i64} {
  func.func @_binsum_kernel(%arg0: i32, %arg1: i32, %arg2: memref<1x128x46xbf16, #tpu.memory_space<vmem>>, %arg3: memref<1x128x2xbf16, #tpu.memory_space<vmem>>, %arg4: memref<1x128x29xbf16, #tpu.memory_space<vmem>>, %arg5: memref<46x128xbf16, #tpu.memory_space<vmem>>, %arg6: memref<2x128xf32, #tpu.memory_space<vmem>>, %arg7: memref<1x128xf32, #tpu.memory_space<vmem>>, %arg8: memref<1x1x128xf32, #tpu.memory_space<vmem>>, %arg9: memref<1x76xf32, #tpu.memory_space<vmem>>, %arg10: memref<46x76xbf16, #tpu.memory_space<vmem>>, %arg11: memref<29x76xbf16, #tpu.memory_space<vmem>>, %arg12: memref<1x76xf32, #tpu.memory_space<vmem>>, %arg13: memref<1x10xf32, #tpu.memory_space<vmem>>, %arg14: memref<46x10xbf16, #tpu.memory_space<vmem>>, %arg15: memref<29x10xbf16, #tpu.memory_space<vmem>>, %arg16: memref<1x10xf32, #tpu.memory_space<vmem>>, %arg17: memref<1x128x1xf32, #tpu.memory_space<vmem>>, %arg18: memref<1x128x10xbf16, #tpu.memory_space<vmem>>, %arg19: memref<1x1x1x76xf32, #tpu.memory_space<vmem>>) attributes {dimension_semantics = [#tpu.dimension_semantics<parallel>, #tpu.dimension_semantics<parallel>], iteration_bounds = array<i64: 2, 2>, scalar_prefetch = 0 : i64, scratch_operands = 0 : i64, tpu.core_type = #tpu.core_type<tc>, window_params = [{transform_indices = @transform_0, window_bounds = array<i64: 1, 128, 46>}, {transform_indices = @transform_1, window_bounds = array<i64: 1, 128, 2>}, {transform_indices = @transform_2, window_bounds = array<i64: 1, 128, 29>}, {pipeline_mode = #tpu.pipeline_mode<synchronous>, transform_indices = @transform_3, window_bounds = array<i64: 46, 128>}, {pipeline_mode = #tpu.pipeline_mode<synchronous>, transform_indices = @transform_4, window_bounds = array<i64: 2, 128>}, {pipeline_mode = #tpu.pipeline_mode<synchronous>, transform_indices = @transform_5, window_bounds = array<i64: 1, 128>}, {transform_indices = @transform_6, window_bounds = array<i64: 1, 1, 128>}, {pipeline_mode = #tpu.pipeline_mode<synchronous>, transform_indices = @transform_7, window_bounds = array<i64: 1, 76>}, {pipeline_mode = #tpu.pipeline_mode<synchronous>, transform_indices = @transform_8, window_bounds = array<i64: 46, 76>}, {pipeline_mode = #tpu.pipeline_mode<synchronous>, transform_indices = @transform_9, window_bounds = array<i64: 29, 76>}, {pipeline_mode = #tpu.pipeline_mode<synchronous>, transform_indices = @transform_10, window_bounds = array<i64: 1, 76>}, {pipeline_mode = #tpu.pipeline_mode<synchronous>, transform_indices = @transform_11, window_bounds = array<i64: 1, 10>}, {pipeline_mode = #tpu.pipeline_mode<synchronous>, transform_indices = @transform_12, window_bounds = array<i64: 46, 10>}, {pipeline_mode = #tpu.pipeline_mode<synchronous>, transform_indices = @transform_13, window_bounds = array<i64: 29, 10>}, {pipeline_mode = #tpu.pipeline_mode<synchronous>, transform_indices = @transform_14, window_bounds = array<i64: 1, 10>}, {transform_indices = @transform_15, window_bounds = array<i64: 1, 128, 1>}, {transform_indices = @transform_16, window_bounds = array<i64: 1, 128, 10>}, {transform_indices = @transform_17, window_bounds = array<i64: 1, 1, 1, 76>}]} {
    %c0 = arith.constant 0 : index
    %c0_0 = arith.constant 0 : index
    %c0_1 = arith.constant 0 : index
    %0 = vector.load %arg2[%c0, %c0_0, %c0_1] : memref<1x128x46xbf16, #tpu.memory_space<vmem>>, vector<1x128x46xbf16>
    %1 = vector.shape_cast %0 : vector<1x128x46xbf16> to vector<128x46xbf16>
    %c0_2 = arith.constant 0 : index
    %c0_3 = arith.constant 0 : index
    %c0_4 = arith.constant 0 : index
    %2 = vector.load %arg3[%c0_2, %c0_3, %c0_4] : memref<1x128x2xbf16, #tpu.memory_space<vmem>>, vector<1x128x2xbf16>
    %3 = vector.shape_cast %2 : vector<1x128x2xbf16> to vector<128x2xbf16>
    %4 = arith.extf %3 : vector<128x2xbf16> to vector<128x2xf32>
    %c0_5 = arith.constant 0 : index
    %c0_6 = arith.constant 0 : index
    %c0_7 = arith.constant 0 : index
    %5 = vector.load %arg4[%c0_5, %c0_6, %c0_7] : memref<1x128x29xbf16, #tpu.memory_space<vmem>>, vector<1x128x29xbf16>
    %6 = vector.shape_cast %5 : vector<1x128x29xbf16> to vector<128x29xbf16>
    %c0_8 = arith.constant 0 : index
    %c0_9 = arith.constant 0 : index
    %7 = vector.load %arg5[%c0_8, %c0_9] : memref<46x128xbf16, #tpu.memory_space<vmem>>, vector<46x128xbf16>
    %cst = arith.constant dense<0.000000e+00> : vector<128x128xf32>
    %8 = tpu.matmul %1, %7, %cst {dimension_numbers = #tpu.dot_dimension_numbers<[1], [0], [0], [1], [0, 0, 1, 1], [], []>} : vector<128x46xbf16>, vector<46x128xbf16>, vector<128x128xf32> -> vector<128x128xf32>
    %9 = vector.extract_strided_slice %4 {offsets = [0, 0], sizes = [128, 1], strides = [1, 1]} : vector<128x2xf32> to vector<128x1xf32>
    %c0_10 = arith.constant 0 : index
    %c0_11 = arith.constant 0 : index
    %10 = vector.load %arg6[%c0_10, %c0_11] : memref<2x128xf32, #tpu.memory_space<vmem>>, vector<1x128xf32>
    %11 = vector.broadcast %9 : vector<128x1xf32> to vector<128x128xf32>
    %12 = vector.broadcast %10 : vector<1x128xf32> to vector<128x128xf32>
    %13 = arith.mulf %11, %12 : vector<128x128xf32>
    %14 = arith.addf %8, %13 : vector<128x128xf32>
    %15 = vector.extract_strided_slice %4 {offsets = [0, 1], sizes = [128, 1], strides = [1, 1]} : vector<128x2xf32> to vector<128x1xf32>
    %c1 = arith.constant 1 : index
    %c0_12 = arith.constant 0 : index
    %16 = vector.load %arg6[%c1, %c0_12] : memref<2x128xf32, #tpu.memory_space<vmem>>, vector<1x128xf32>
    %17 = vector.broadcast %15 : vector<128x1xf32> to vector<128x128xf32>
    %18 = vector.broadcast %16 : vector<1x128xf32> to vector<128x128xf32>
    %19 = arith.mulf %17, %18 : vector<128x128xf32>
    %20 = arith.addf %14, %19 : vector<128x128xf32>
    %c0_13 = arith.constant 0 : index
    %c0_14 = arith.constant 0 : index
    %21 = vector.load %arg7[%c0_13, %c0_14] : memref<1x128xf32, #tpu.memory_space<vmem>>, vector<1x128xf32>
    %22 = vector.broadcast %21 : vector<1x128xf32> to vector<128x128xf32>
    %23 = arith.addf %20, %22 : vector<128x128xf32>
    %cst_15 = arith.constant dense<0xFF800000> : vector<128xf32>
    %24 = vector.multi_reduction <maximumf>, %23, %cst_15 [1] : vector<128x128xf32> to vector<128xf32>
    %25 = vector.shape_cast %24 : vector<128xf32> to vector<128x1xf32>
    %26 = vector.broadcast %25 : vector<128x1xf32> to vector<128x128xf32>
    %27 = arith.subf %23, %26 : vector<128x128xf32>
    %28 = math.exp %27 : vector<128x128xf32>
    %cst_16 = arith.constant dense<0.000000e+00> : vector<128xf32>
    %29 = vector.multi_reduction <add>, %28, %cst_16 [1] : vector<128x128xf32> to vector<128xf32>
    %30 = vector.shape_cast %29 : vector<128xf32> to vector<128x1xf32>
    %c0_17 = arith.constant 0 : index
    %c0_18 = arith.constant 0 : index
    %c0_19 = arith.constant 0 : index
    %31 = vector.load %arg8[%c0_17, %c0_18, %c0_19] : memref<1x1x128xf32, #tpu.memory_space<vmem>>, vector<1x1x128xf32>
    %32 = vector.shape_cast %31 : vector<1x1x128xf32> to vector<1x128xf32>
    %33 = vector.broadcast %32 : vector<1x128xf32> to vector<128x128xf32>
    %34 = arith.mulf %28, %33 : vector<128x128xf32>
    %cst_20 = arith.constant dense<0.000000e+00> : vector<128xf32>
    %35 = vector.multi_reduction <add>, %34, %cst_20 [1] : vector<128x128xf32> to vector<128xf32>
    %36 = vector.shape_cast %35 : vector<128xf32> to vector<128x1xf32>
    %37 = tpu.reciprocal %30 {approx = true} : vector<128x1xf32> -> vector<128x1xf32>
    %38 = arith.mulf %36, %37 : vector<128x1xf32>
    %c0_21 = arith.constant 0 : index
    %c0_22 = arith.constant 0 : index
    %c0_23 = arith.constant 0 : index
    %39 = vector.load %arg17[%c0_21, %c0_22, %c0_23] : memref<1x128x1xf32, #tpu.memory_space<vmem>>, vector<1x128x1xf32>
    %40 = vector.shape_cast %39 : vector<1x128x1xf32> to vector<128x1xf32>
    %41 = vector.shape_cast %38 : vector<128x1xf32> to vector<1x128x1xf32>
    tpu.vector_store %arg17[%c0_21, %c0_22, %c0_23], %41 {strides = array<i32>} : memref<1x128x1xf32, #tpu.memory_space<vmem>>, vector<1x128x1xf32>,
    %c0_24 = arith.constant 0 : index
    %c0_25 = arith.constant 0 : index
    %42 = vector.load %arg9[%c0_24, %c0_25] : memref<1x76xf32, #tpu.memory_space<vmem>>, vector<1x76xf32>
    %43 = vector.broadcast %38 : vector<128x1xf32> to vector<128x76xf32>
    %44 = vector.broadcast %42 : vector<1x76xf32> to vector<128x76xf32>
    %45 = arith.mulf %43, %44 : vector<128x76xf32>
    %c0_26 = arith.constant 0 : index
    %c0_27 = arith.constant 0 : index
    %46 = vector.load %arg10[%c0_26, %c0_27] : memref<46x76xbf16, #tpu.memory_space<vmem>>, vector<46x76xbf16>
    %cst_28 = arith.constant dense<0.000000e+00> : vector<128x76xf32>
    %47 = tpu.matmul %1, %46, %cst_28 {dimension_numbers = #tpu.dot_dimension_numbers<[1], [0], [0], [1], [0, 0, 1, 1], [], []>} : vector<128x46xbf16>, vector<46x76xbf16>, vector<128x76xf32> -> vector<128x76xf32>
    %48 = arith.addf %45, %47 : vector<128x76xf32>
    %c0_29 = arith.constant 0 : index
    %c0_30 = arith.constant 0 : index
    %49 = vector.load %arg11[%c0_29, %c0_30] : memref<29x76xbf16, #tpu.memory_space<vmem>>, vector<29x76xbf16>
    %cst_31 = arith.constant dense<0.000000e+00> : vector<128x76xf32>
    %50 = tpu.matmul %6, %49, %cst_31 {dimension_numbers = #tpu.dot_dimension_numbers<[1], [0], [0], [1], [0, 0, 1, 1], [], []>} : vector<128x29xbf16>, vector<29x76xbf16>, vector<128x76xf32> -> vector<128x76xf32>
    %51 = arith.addf %48, %50 : vector<128x76xf32>
    %c0_32 = arith.constant 0 : index
    %c0_33 = arith.constant 0 : index
    %52 = vector.load %arg12[%c0_32, %c0_33] : memref<1x76xf32, #tpu.memory_space<vmem>>, vector<1x76xf32>
    %53 = vector.broadcast %52 : vector<1x76xf32> to vector<128x76xf32>
    %54 = arith.addf %51, %53 : vector<128x76xf32>
    %cst_34 = arith.constant 0.000000e+00 : f32
    %55 = vector.broadcast %cst_34 : f32 to vector<128x76xf32>
    %56 = arith.maximumf %54, %55 : vector<128x76xf32>
    %cst_35 = arith.constant dense<0.000000e+00> : vector<76xf32>
    %57 = vector.multi_reduction <add>, %56, %cst_35 [0] : vector<128x76xf32> to vector<76xf32>
    %58 = vector.shape_cast %57 : vector<76xf32> to vector<1x76xf32>
    %c0_36 = arith.constant 0 : index
    %c0_37 = arith.constant 0 : index
    %c0_38 = arith.constant 0 : index
    %c0_39 = arith.constant 0 : index
    %59 = vector.load %arg19[%c0_36, %c0_37, %c0_38, %c0_39] : memref<1x1x1x76xf32, #tpu.memory_space<vmem>>, vector<1x1x1x76xf32>
    %60 = vector.shape_cast %59 : vector<1x1x1x76xf32> to vector<1x76xf32>
    %61 = vector.shape_cast %58 : vector<1x76xf32> to vector<1x1x1x76xf32>
    tpu.vector_store %arg19[%c0_36, %c0_37, %c0_38, %c0_39], %61 {strides = array<i32>} : memref<1x1x1x76xf32, #tpu.memory_space<vmem>>, vector<1x1x1x76xf32>,
    %c0_40 = arith.constant 0 : index
    %c0_41 = arith.constant 0 : index
    %62 = vector.load %arg13[%c0_40, %c0_41] : memref<1x10xf32, #tpu.memory_space<vmem>>, vector<1x10xf32>
    %63 = vector.broadcast %38 : vector<128x1xf32> to vector<128x10xf32>
    %64 = vector.broadcast %62 : vector<1x10xf32> to vector<128x10xf32>
    %65 = arith.mulf %63, %64 : vector<128x10xf32>
    %c0_42 = arith.constant 0 : index
    %c0_43 = arith.constant 0 : index
    %66 = vector.load %arg14[%c0_42, %c0_43] : memref<46x10xbf16, #tpu.memory_space<vmem>>, vector<46x10xbf16>
    %cst_44 = arith.constant dense<0.000000e+00> : vector<128x10xf32>
    %67 = tpu.matmul %1, %66, %cst_44 {dimension_numbers = #tpu.dot_dimension_numbers<[1], [0], [0], [1], [0, 0, 1, 1], [], []>} : vector<128x46xbf16>, vector<46x10xbf16>, vector<128x10xf32> -> vector<128x10xf32>
    %68 = arith.addf %65, %67 : vector<128x10xf32>
    %c0_45 = arith.constant 0 : index
    %c0_46 = arith.constant 0 : index
    %69 = vector.load %arg15[%c0_45, %c0_46] : memref<29x10xbf16, #tpu.memory_space<vmem>>, vector<29x10xbf16>
    %cst_47 = arith.constant dense<0.000000e+00> : vector<128x10xf32>
    %70 = tpu.matmul %6, %69, %cst_47 {dimension_numbers = #tpu.dot_dimension_numbers<[1], [0], [0], [1], [0, 0, 1, 1], [], []>} : vector<128x29xbf16>, vector<29x10xbf16>, vector<128x10xf32> -> vector<128x10xf32>
    %71 = arith.addf %68, %70 : vector<128x10xf32>
    %c0_48 = arith.constant 0 : index
    %c0_49 = arith.constant 0 : index
    %72 = vector.load %arg16[%c0_48, %c0_49] : memref<1x10xf32, #tpu.memory_space<vmem>>, vector<1x10xf32>
    %73 = vector.broadcast %72 : vector<1x10xf32> to vector<128x10xf32>
    %74 = arith.addf %71, %73 : vector<128x10xf32>
    %75 = arith.truncf %74 : vector<128x10xf32> to vector<128x10xbf16>
    %c0_50 = arith.constant 0 : index
    %c0_51 = arith.constant 0 : index
    %c0_52 = arith.constant 0 : index
    %76 = vector.load %arg18[%c0_50, %c0_51, %c0_52] : memref<1x128x10xbf16, #tpu.memory_space<vmem>>, vector<1x128x10xbf16>
    %77 = vector.shape_cast %76 : vector<1x128x10xbf16> to vector<128x10xbf16>
    %78 = vector.shape_cast %75 : vector<128x10xbf16> to vector<1x128x10xbf16>
    tpu.vector_store %arg18[%c0_50, %c0_51, %c0_52], %78 {strides = array<i32>} : memref<1x128x10xbf16, #tpu.memory_space<vmem>>, vector<1x128x10xbf16>,
    return
  }
  func.func @transform_0(%arg0: i32, %arg1: i32) -> (i32, i32, i32) {
    %c0_i32 = arith.constant 0 : i32
    %c0_i32_0 = arith.constant 0 : i32
    return %arg0, %arg1, %c0_i32 : i32, i32, i32
  }
  func.func @transform_1(%arg0: i32, %arg1: i32) -> (i32, i32, i32) {
    %c0_i32 = arith.constant 0 : i32
    %c0_i32_0 = arith.constant 0 : i32
    return %arg0, %arg1, %c0_i32 : i32, i32, i32
  }
  func.func @transform_2(%arg0: i32, %arg1: i32) -> (i32, i32, i32) {
    %c0_i32 = arith.constant 0 : i32
    %c0_i32_0 = arith.constant 0 : i32
    return %arg0, %arg1, %c0_i32 : i32, i32, i32
  }
  func.func @transform_3(%arg0: i32, %arg1: i32) -> (i32, i32) {
    %c0_i32 = arith.constant 0 : i32
    %c0_i32_0 = arith.constant 0 : i32
    %c0_i32_1 = arith.constant 0 : i32
    return %c0_i32, %c0_i32_0 : i32, i32
  }
  func.func @transform_4(%arg0: i32, %arg1: i32) -> (i32, i32) {
    %c0_i32 = arith.constant 0 : i32
    %c0_i32_0 = arith.constant 0 : i32
    %c0_i32_1 = arith.constant 0 : i32
    return %c0_i32, %c0_i32_0 : i32, i32
  }
  func.func @transform_5(%arg0: i32, %arg1: i32) -> (i32, i32) {
    %c0_i32 = arith.constant 0 : i32
    %c0_i32_0 = arith.constant 0 : i32
    %c0_i32_1 = arith.constant 0 : i32
    return %c0_i32, %c0_i32_0 : i32, i32
  }
  func.func @transform_6(%arg0: i32, %arg1: i32) -> (i32, i32, i32) {
    %c0_i32 = arith.constant 0 : i32
    %c0_i32_0 = arith.constant 0 : i32
    %c0_i32_1 = arith.constant 0 : i32
    return %arg0, %c0_i32, %c0_i32_0 : i32, i32, i32
  }
  func.func @transform_7(%arg0: i32, %arg1: i32) -> (i32, i32) {
    %c0_i32 = arith.constant 0 : i32
    %c0_i32_0 = arith.constant 0 : i32
    %c0_i32_1 = arith.constant 0 : i32
    return %c0_i32, %c0_i32_0 : i32, i32
  }
  func.func @transform_8(%arg0: i32, %arg1: i32) -> (i32, i32) {
    %c0_i32 = arith.constant 0 : i32
    %c0_i32_0 = arith.constant 0 : i32
    %c0_i32_1 = arith.constant 0 : i32
    return %c0_i32, %c0_i32_0 : i32, i32
  }
  func.func @transform_9(%arg0: i32, %arg1: i32) -> (i32, i32) {
    %c0_i32 = arith.constant 0 : i32
    %c0_i32_0 = arith.constant 0 : i32
    %c0_i32_1 = arith.constant 0 : i32
    return %c0_i32, %c0_i32_0 : i32, i32
  }
  func.func @transform_10(%arg0: i32, %arg1: i32) -> (i32, i32) {
    %c0_i32 = arith.constant 0 : i32
    %c0_i32_0 = arith.constant 0 : i32
    %c0_i32_1 = arith.constant 0 : i32
    return %c0_i32, %c0_i32_0 : i32, i32
  }
  func.func @transform_11(%arg0: i32, %arg1: i32) -> (i32, i32) {
    %c0_i32 = arith.constant 0 : i32
    %c0_i32_0 = arith.constant 0 : i32
    %c0_i32_1 = arith.constant 0 : i32
    return %c0_i32, %c0_i32_0 : i32, i32
  }
  func.func @transform_12(%arg0: i32, %arg1: i32) -> (i32, i32) {
    %c0_i32 = arith.constant 0 : i32
    %c0_i32_0 = arith.constant 0 : i32
    %c0_i32_1 = arith.constant 0 : i32
    return %c0_i32, %c0_i32_0 : i32, i32
  }
  func.func @transform_13(%arg0: i32, %arg1: i32) -> (i32, i32) {
    %c0_i32 = arith.constant 0 : i32
    %c0_i32_0 = arith.constant 0 : i32
    %c0_i32_1 = arith.constant 0 : i32
    return %c0_i32, %c0_i32_0 : i32, i32
  }
  func.func @transform_14(%arg0: i32, %arg1: i32) -> (i32, i32) {
    %c0_i32 = arith.constant 0 : i32
    %c0_i32_0 = arith.constant 0 : i32
    %c0_i32_1 = arith.constant 0 : i32
    return %c0_i32, %c0_i32_0 : i32, i32
  }
  func.func @transform_15(%arg0: i32, %arg1: i32) -> (i32, i32, i32) {
    %c0_i32 = arith.constant 0 : i32
    %c0_i32_0 = arith.constant 0 : i32
    return %arg0, %arg1, %c0_i32 : i32, i32, i32
  }
  func.func @transform_16(%arg0: i32, %arg1: i32) -> (i32, i32, i32) {
    %c0_i32 = arith.constant 0 : i32
    %c0_i32_0 = arith.constant 0 : i32
    return %arg0, %arg1, %c0_i32 : i32, i32, i32
  }
  func.func @transform_17(%arg0: i32, %arg1: i32) -> (i32, i32, i32, i32) {
    %c0_i32 = arith.constant 0 : i32
    %c0_i32_0 = arith.constant 0 : i32
    %c0_i32_1 = arith.constant 0 : i32
    return %arg0, %arg1, %c0_i32, %c0_i32_0 : i32, i32, i32, i32
  }
}

module attributes {stable_mosaic.version = 11 : i64} {
  func.func @_diff_binsum_kernel(%arg0: i32, %arg1: i32, %arg2: memref<1x128x1xf32, #tpu.memory_space<vmem>>, %arg3: memref<1x128x10xbf16, #tpu.memory_space<vmem>>, %arg4: memref<1x1x10xf32, #tpu.memory_space<vmem>>, %arg5: memref<1x128x1xf32, #tpu.memory_space<vmem>>) attributes {dimension_semantics = [#tpu.dimension_semantics<parallel>, #tpu.dimension_semantics<parallel>], iteration_bounds = array<i64: 2, 2>, scalar_prefetch = 0 : i64, scratch_operands = 0 : i64, tpu.core_type = #tpu.core_type<tc>, window_params = [{transform_indices = @transform_0, window_bounds = array<i64: 1, 128, 1>}, {transform_indices = @transform_1, window_bounds = array<i64: 1, 128, 10>}, {transform_indices = @transform_2, window_bounds = array<i64: 1, 1, 10>}, {transform_indices = @transform_3, window_bounds = array<i64: 1, 128, 1>}]} {
    %c0 = arith.constant 0 : index
    %c0_0 = arith.constant 0 : index
    %c0_1 = arith.constant 0 : index
    %0 = vector.load %arg3[%c0, %c0_0, %c0_1] : memref<1x128x10xbf16, #tpu.memory_space<vmem>>, vector<1x128x10xbf16>
    %1 = vector.shape_cast %0 : vector<1x128x10xbf16> to vector<128x10xbf16>
    %2 = arith.extf %1 : vector<128x10xbf16> to vector<128x10xf32>
    %cst = arith.constant dense<0xFF800000> : vector<128xf32>
    %3 = vector.multi_reduction <maximumf>, %2, %cst [1] : vector<128x10xf32> to vector<128xf32>
    %4 = vector.shape_cast %3 : vector<128xf32> to vector<128x1xf32>
    %5 = vector.broadcast %4 : vector<128x1xf32> to vector<128x10xf32>
    %6 = arith.subf %2, %5 : vector<128x10xf32>
    %7 = math.exp %6 : vector<128x10xf32>
    %cst_2 = arith.constant dense<0.000000e+00> : vector<128xf32>
    %8 = vector.multi_reduction <add>, %7, %cst_2 [1] : vector<128x10xf32> to vector<128xf32>
    %9 = vector.shape_cast %8 : vector<128xf32> to vector<128x1xf32>
    %c0_3 = arith.constant 0 : index
    %c0_4 = arith.constant 0 : index
    %c0_5 = arith.constant 0 : index
    %10 = vector.load %arg4[%c0_3, %c0_4, %c0_5] : memref<1x1x10xf32, #tpu.memory_space<vmem>>, vector<1x1x10xf32>
    %11 = vector.shape_cast %10 : vector<1x1x10xf32> to vector<1x10xf32>
    %12 = vector.broadcast %11 : vector<1x10xf32> to vector<128x10xf32>
    %13 = arith.mulf %7, %12 : vector<128x10xf32>
    %cst_6 = arith.constant dense<0.000000e+00> : vector<128xf32>
    %14 = vector.multi_reduction <add>, %13, %cst_6 [1] : vector<128x10xf32> to vector<128xf32>
    %15 = vector.shape_cast %14 : vector<128xf32> to vector<128x1xf32>
    %c0_7 = arith.constant 0 : index
    %c0_8 = arith.constant 0 : index
    %c0_9 = arith.constant 0 : index
    %16 = vector.load %arg2[%c0_7, %c0_8, %c0_9] : memref<1x128x1xf32, #tpu.memory_space<vmem>>, vector<1x128x1xf32>
    %17 = vector.shape_cast %16 : vector<1x128x1xf32> to vector<128x1xf32>
    %18 = tpu.reciprocal %9 {approx = true} : vector<128x1xf32> -> vector<128x1xf32>
    %19 = arith.mulf %15, %18 : vector<128x1xf32>
    %20 = arith.addf %17, %19 : vector<128x1xf32>
    %c0_10 = arith.constant 0 : index
    %c0_11 = arith.constant 0 : index
    %c0_12 = arith.constant 0 : index
    %21 = vector.load %arg5[%c0_10, %c0_11, %c0_12] : memref<1x128x1xf32, #tpu.memory_space<vmem>>, vector<1x128x1xf32>
    %22 = vector.shape_cast %21 : vector<1x128x1xf32> to vector<128x1xf32>
    %23 = vector.shape_cast %20 : vector<128x1xf32> to vector<1x128x1xf32>
    tpu.vector_store %arg5[%c0_10, %c0_11, %c0_12], %23 {strides = array<i32>} : memref<1x128x1xf32, #tpu.memory_space<vmem>>, vector<1x128x1xf32>,
    return
  }
  func.func @transform_0(%arg0: i32, %arg1: i32) -> (i32, i32, i32) {
    %c0_i32 = arith.constant 0 : i32
    %c0_i32_0 = arith.constant 0 : i32
    return %arg0, %arg1, %c0_i32 : i32, i32, i32
  }
  func.func @transform_1(%arg0: i32, %arg1: i32) -> (i32, i32, i32) {
    %c0_i32 = arith.constant 0 : i32
    %c0_i32_0 = arith.constant 0 : i32
    return %arg0, %arg1, %c0_i32 : i32, i32, i32
  }
  func.func @transform_2(%arg0: i32, %arg1: i32) -> (i32, i32, i32) {
    %c0_i32 = arith.constant 0 : i32
    %c0_i32_0 = arith.constant 0 : i32
    %c0_i32_1 = arith.constant 0 : i32
    return %arg0, %c0_i32, %c0_i32_0 : i32, i32, i32
  }
  func.func @transform_3(%arg0: i32, %arg1: i32) -> (i32, i32, i32) {
    %c0_i32 = arith.constant 0 : i32
    %c0_i32_0 = arith.constant 0 : i32
    return %arg0, %arg1, %c0_i32 : i32, i32, i32
  }
}

</mosaic_0001>

<llo_original>
// kernel: udfnet_forward.5
$region0: #{udfnet_forward.5}
  #allocation0 [shape = 'u32[]', space=smem, size = 0x4, offset = 0x4, fixed_abs, tag = 'smem constant byte address 0x4 - core index']
  #allocation1 [shape = 'u32[72,128]{1,0:T(1,128)}', space=vmem, size = 0x9000, scoped, tag = 'internal scratch']
  %s0 = inlined_call_operand.vmem [shape: f32[2,256,1], index: 0, kind: input, shape index: {}]
  %s1 = inlined_call_operand.vmem [shape: bf16[2,256,10], index: 1, kind: input, shape index: {}]
  %s2 = inlined_call_operand.vmem [shape: f32[2,1,10], index: 2, kind: input, shape index: {}]
  %s3 = inlined_call_operand.vmem [shape: f32[2,256,1], index: 3, kind: output, shape index: {}]
  %s4 = sld [smem:[#allocation0]]
  $region45: #{udfnet_forward.5} parent=0
    _
  %s6 = ssub.s32 1, %s4
  %s7 = scalar_select 0, %s6, %s4
  loop: start=0, step=1, limit=6
  $region2: #{udfnet_forward.5} parent=0 // loop_pre_header
    _
  $region3: #{udfnet_forward.5} parent=0 // loop_header
    %s9 = sphi 0, %s13
    %p10 = scmp.ge.s32.totalorder %s9, 6
    %s16 = sphi 0, %s28
    %s17 = sphi 0, %s24
    %s18 = sphi 0, %s16
    %s19 = sphi 0, %s17
    %s20 = sphi 0, %s18
    %s21 = sphi 0, %s19
    %s33 = sphi 0, %s35
    %s36 = sphi 0, %s33
    %s37 = sphi 0, %s36
    %s53 = sphi 0, %s37
    %s61 = sphi 0, %s63
    %s64 = sphi 0, %s61
    %s65 = sphi 0, %s64
    %s81 = sphi 0, %s65
    %s87 = sphi 0, %s89
    %s90 = sphi 0, %s87
    %s91 = sphi 0, %s90
    %s107 = sphi 0, %s91
    %s115 = sphi 0, %s117
    %s118 = sphi 0, %s115
    %s119 = sphi 0, %s118
    %s135 = sphi 0, %s119
  $region4: #{udfnet_forward.5} parent=0 // loop_header_branch
    %12 = sbr.rel (%p10) target = $region8
  $region5: #{udfnet_forward.5} parent=0 // loop_body
    %s14 = ssub.s32 %s9, 1
    %s15 = ssub.s32 %s9, 2
    %s22 = sadd.s32 1, %s17
    %p23 = scmp.ge.s32.totalorder %s22, 2
    %s24 = scalar_select %p23, 0, %s22
    %s25 = sadd.s32 1, %s16
    %s26 = scalar_select %p23, %s25, %s16
    %p27 = scmp.ge.s32.totalorder %s26, 2
    %s28 = scalar_select %p27, 0, %s26
    %s29 = ssub.s32 %s16, %s28
    %s30 = ssub.s32 %s17, %s24
    %s31 = sor.u32 %s29, %s30
    %p32 = scmp.eq.s32.totalorder %s31, 0
    %s34 = sadd.s32 %s33, 1
    %s35 = scalar_select %p32, %s33, %s34
    %p38 = pneg %p32
    %p39 = scmp.eq.s32.totalorder %s9, 3
    %p40 = por %p38, %p39
    %p41 = scmp.ne.s32.totalorder %s33, %s36
    %p42 = scmp.eq.s32.totalorder %s9, 0
    %p43 = por %p41, %p42
    %p44 = scmp.ne.s32.totalorder %s33, %s36
    %p45 = scmp.eq.s32.totalorder %s14, 3
    %p46 = por %p44, %p45
    %p47 = scmp.ne.s32.totalorder %s36, %s37
    %p48 = scmp.eq.s32.totalorder %s14, 0
    %p49 = por %p47, %p48
    %p50 = scmp.ne.s32.totalorder %s36, %s37
    %p51 = scmp.eq.s32.totalorder %s15, 3
    %p52 = por %p50, %p51
    %p54 = scmp.ne.s32.totalorder %s37, %s53
    %p55 = scmp.eq.s32.totalorder %s15, 0
    %p56 = por %p54, %p55
    %s57 = ssub.s32 %s16, %s28
    %s58 = ssub.s32 %s17, %s24
    %s59 = sor.u32 %s57, %s58
    %p60 = scmp.eq.s32.totalorder %s59, 0
    %s62 = sadd.s32 %s61, 1
    %s63 = scalar_select %p60, %s61, %s62
    %p66 = pneg %p60
    %p67 = scmp.eq.s32.totalorder %s9, 3
    %p68 = por %p66, %p67
    %p69 = scmp.ne.s32.totalorder %s61, %s64
    %p70 = scmp.eq.s32.totalorder %s9, 0
    %p71 = por %p69, %p70
    %p72 = scmp.ne.s32.totalorder %s61, %s64
    %p73 = scmp.eq.s32.totalorder %s14, 3
    %p74 = por %p72, %p73
    %p75 = scmp.ne.s32.totalorder %s64, %s65
    %p76 = scmp.eq.s32.totalorder %s14, 0
    %p77 = por %p75, %p76
    %p78 = scmp.ne.s32.totalorder %s64, %s65
    %p79 = scmp.eq.s32.totalorder %s15, 3
    %p80 = por %p78, %p79
    %p82 = scmp.ne.s32.totalorder %s65, %s81
    %p83 = scmp.eq.s32.totalorder %s15, 0
    %p84 = por %p82, %p83
    %s85 = ssub.s32 %s16, %s28
    %p86 = scmp.eq.s32.totalorder %s85, 0
    %s88 = sadd.s32 %s87, 1
    %s89 = scalar_select %p86, %s87, %s88
    %p92 = pneg %p86
    %p93 = scmp.eq.s32.totalorder %s9, 3
    %p94 = por %p92, %p93
    %p95 = scmp.ne.s32.totalorder %s87, %s90
    %p96 = scmp.eq.s32.totalorder %s9, 0
    %p97 = por %p95, %p96
    %p98 = scmp.ne.s32.totalorder %s87, %s90
    %p99 = scmp.eq.s32.totalorder %s14, 3
    %p100 = por %p98, %p99
    %p101 = scmp.ne.s32.totalorder %s90, %s91
    %p102 = scmp.eq.s32.totalorder %s14, 0
    %p103 = por %p101, %p102
    %p104 = scmp.ne.s32.totalorder %s90, %s91
    %p105 = scmp.eq.s32.totalorder %s15, 3
    %p106 = por %p104, %p105
    %p108 = scmp.ne.s32.totalorder %s91, %s107
    %p109 = scmp.eq.s32.totalorder %s15, 0
    %p110 = por %p108, %p109
    %s111 = ssub.s32 %s16, %s28
    %s112 = ssub.s32 %s17, %s24
    %s113 = sor.u32 %s111, %s112
    %p114 = scmp.eq.s32.totalorder %s113, 0
    %s116 = sadd.s32 %s115, 1
    %s117 = scalar_select %p114, %s115, %s116
    %p120 = pneg %p114
    %p121 = scmp.eq.s32.totalorder %s9, 3
    %p122 = por %p120, %p121
    %p123 = scmp.ne.s32.totalorder %s115, %s118
    %p124 = scmp.eq.s32.totalorder %s9, 0
    %p125 = por %p123, %p124
    %p126 = scmp.ne.s32.totalorder %s115, %s118
    %p127 = scmp.eq.s32.totalorder %s14, 3
    %p128 = por %p126, %p127
    %p129 = scmp.ne.s32.totalorder %s118, %s119
    %p130 = scmp.eq.s32.totalorder %s14, 0
    %p131 = por %p129, %p130
    %p132 = scmp.ne.s32.totalorder %s118, %s119
    %p133 = scmp.eq.s32.totalorder %s15, 3
    %p134 = por %p132, %p133
    %p136 = scmp.ne.s32.totalorder %s119, %s135
    %p137 = scmp.eq.s32.totalorder %s15, 0
    %p138 = por %p136, %p137
    %p139 = scmp.le.s32.totalorder 1, %s9
    %p140 = scmp.lt.s32.totalorder %s9, 5
    %p141 = pnand %p139, %p140
    %p142 = pneg %p141
    // Predicated region
    $region9: #{udfnet_forward.5} parent=5 // pred_check
      _
    $region10: #{udfnet_forward.5} parent=5 // pred_check_branch
      %144 = sbr.rel (%p141) target = $region12
    $region11: #{udfnet_forward.5} parent=5 // pred_region
      %s145 = ssub.s32 %s9, 1
    $region12: #{udfnet_forward.5} parent=5 // pred_fallthru
      _
    %p146 = scmp.lt.s32.totalorder %s9, 4
    // Predicated region
    $region13: #{udfnet_forward.5} parent=5 // pred_check
      %p147 = pneg %p146
    $region14: #{udfnet_forward.5} parent=5 // pred_check_branch
      %149 = sbr.rel (%p147) target = $region16
    $region15: #{udfnet_forward.5} parent=5 // pred_region
      // Predicated region
      $region17: #{udfnet_forward.5} parent=15 // pred_check
        %p150 = pneg %p43
      $region18: #{udfnet_forward.5} parent=15 // pred_check_branch
        %152 = sbr.rel (%p150) target = $region20
      $region19: #{udfnet_forward.5} parent=15 // pred_region
        %s153 = smul.u32 16, %s17
        %p154 = scmp.lt.s32.totalorder %s16, 1
        %s155 = scalar_select %p154, %s16, 1
        %p156 = scmp.lt.s32.totalorder %s153, 31
        %s157 = scalar_select %p156, %s153, 31
        %s158 = smul.addr %s155, 32
        %s159 = sadd.s32 %s157, %s158
        %s160 = smul.addr %s159, 8
        %s161 = scalar_lea.vmem %s0, %s160
        %s162 = smul.u32 16, %s17
      $region20: #{udfnet_forward.5} parent=15 // pred_fallthru
        _
      // Predicated region
      $region21: #{udfnet_forward.5} parent=15 // pred_check
        %p163 = pneg %p71
      $region22: #{udfnet_forward.5} parent=15 // pred_check_branch
        %165 = sbr.rel (%p163) target = $region24
      $region23: #{udfnet_forward.5} parent=15 // pred_region
        %s166 = smul.u32 16, %s17
        %p167 = scmp.lt.s32.totalorder %s16, 1
        %s168 = scalar_select %p167, %s16, 1
        %p169 = scmp.lt.s32.totalorder %s166, 31
        %s170 = scalar_select %p169, %s166, 31
        %s171 = smul.addr %s168, 32
        %s172 = sadd.s32 %s170, %s171
        %s173 = smul.addr %s172, 4
        %s174 = scalar_lea.vmem %s1, %s173
        %s175 = smul.u32 16, %s17
      $region24: #{udfnet_forward.5} parent=15 // pred_fallthru
        _
      // Predicated region
      $region25: #{udfnet_forward.5} parent=15 // pred_check
        %p176 = pneg %p97
      $region26: #{udfnet_forward.5} parent=15 // pred_check_branch
        %178 = sbr.rel (%p176) target = $region28
      $region27: #{udfnet_forward.5} parent=15 // pred_region
        %p179 = scmp.lt.s32.totalorder %s16, 1
        %s180 = scalar_select %p179, %s16, 1
        %s181 = scalar_lea.vmem %s2, %s180
      $region28: #{udfnet_forward.5} parent=15 // pred_fallthru
        _
    $region16: #{udfnet_forward.5} parent=5 // pred_fallthru
      _
    %p182 = scmp.le.s32.totalorder 1, %s9
    %p183 = scmp.lt.s32.totalorder %s9, 5
    %p184 = pnand %p182, %p183
    %p185 = pneg %p184
    // Predicated region
    $region29: #{udfnet_forward.5} parent=5 // pred_check
      _
    $region30: #{udfnet_forward.5} parent=5 // pred_check_branch
      %187 = sbr.rel (%p184) target = $region32
    $region31: #{udfnet_forward.5} parent=5 // pred_region
      %s188 = ssub.s32 %s9, 1
      %s189 = smul.u32 16, %s19
      %p190 = scmp.lt.s32.totalorder %s18, 1
      %s191 = scalar_select %p190, %s18, 1
      %p192 = scmp.lt.s32.totalorder %s189, 31
      %s193 = scalar_select %p192, %s189, 31
      %s194 = smul.addr %s191, 32
      %s195 = sadd.s32 %s193, %s194
      %s196 = smul.addr %s195, 8
      %s197 = scalar_lea.vmem %s0, %s196
      %p198 = pneg %p49
      %p199 = pneg %p46
      %s200 = smul.u32 16, %s19
      %p201 = scmp.lt.s32.totalorder %s18, 1
      %s202 = scalar_select %p201, %s18, 1
      %p203 = scmp.lt.s32.totalorder %s200, 31
      %s204 = scalar_select %p203, %s200, 31
      %s205 = smul.addr %s202, 32
      %s206 = sadd.s32 %s204, %s205
      %s207 = smul.addr %s206, 4
      %s208 = scalar_lea.vmem %s1, %s207
      %p209 = pneg %p77
      %p210 = pneg %p74
      %p211 = scmp.lt.s32.totalorder %s18, 1
      %s212 = scalar_select %p211, %s18, 1
      %s213 = scalar_lea.vmem %s2, %s212
      %p214 = pneg %p103
      %p215 = pneg %p100
      %p216 = pneg %p131
      %p217 = pneg %p128
      %s218 = smul.u32 16, %s19
      %p219 = scmp.lt.s32.totalorder %s18, 1
      %s220 = scalar_select %p219, %s18, 1
      %p221 = scmp.lt.s32.totalorder %s218, 31
      %s222 = scalar_select %p221, %s218, 31
      %s223 = smul.addr %s220, 32
      %s224 = sadd.s32 %s222, %s223
      %s225 = smul.addr %s224, 8
      %s226 = scalar_lea.vmem %s3, %s225
      %s227 = smul.u32 16, %s19
      %p228 = scmp.lt.s32.totalorder %s18, 1
      %s229 = scalar_select %p228, %s18, 1
      %p230 = scmp.lt.s32.totalorder %s227, 31
      %s231 = scalar_select %p230, %s227, 31
      %s232 = smul.addr %s229, 32
      %s233 = sadd.s32 %s231, %s232
      %s234 = smul.addr %s233, 8
      %s235 = scalar_lea.vmem %s0, %s234
      %s236 = smul.u32 16, %s19
      %s237 = smul.u32 16, %s19
      %p238 = scmp.lt.s32.totalorder %s18, 1
      %s239 = scalar_select %p238, %s18, 1
      %p240 = scmp.lt.s32.totalorder %s237, 31
      %s241 = scalar_select %p240, %s237, 31
      %s242 = smul.addr %s239, 32
      %s243 = sadd.s32 %s241, %s242
      %s244 = smul.addr %s243, 4
      %s245 = scalar_lea.vmem %s1, %s244
      %s246 = smul.u32 16, %s19
      %p247 = scmp.lt.s32.totalorder %s18, 1
      %s248 = scalar_select %p247, %s18, 1
      %s249 = scalar_lea.vmem %s2, %s248
      %s250 = smul.u32 16, %s19
      %p251 = scmp.lt.s32.totalorder %s18, 1
      %s252 = scalar_select %p251, %s18, 1
      %p253 = scmp.lt.s32.totalorder %s250, 31
      %s254 = scalar_select %p253, %s250, 31
      %s255 = smul.addr %s252, 32
      %s256 = sadd.s32 %s254, %s255
      %s257 = smul.addr %s256, 8
      %s258 = scalar_lea.vmem %s3, %s257
      %s259 = smul.u32 16, %s19
      %v260 = vld [vmem:[%s245] sm:$0xf]
      %v261 = vld [vmem:[%s245 + $0x4] sm:$0xf]
      %v262 = vld [vmem:[%s245 + $0x8] sm:$0xf]
      %v263 = vld [vmem:[%s245 + $0xc] sm:$0xf]
      %v264 = vld [vmem:[%s245 + $0x10] sm:$0xf]
      %v265 = vld [vmem:[%s245 + $0x14] sm:$0xf]
      %v266 = vld [vmem:[%s245 + $0x18] sm:$0xf]
      %v267 = vld [vmem:[%s245 + $0x1c] sm:$0xf]
      %v268 = vld [vmem:[%s245 + $0x20] sm:$0xf]
      %v269 = vld [vmem:[%s245 + $0x24] sm:$0xf]
      %v270 = vld [vmem:[%s245 + $0x28] sm:$0xf]
      %v271 = vld [vmem:[%s245 + $0x2c] sm:$0xf]
      %v272 = vld [vmem:[%s245 + $0x30] sm:$0xf]
      %v273 = vld [vmem:[%s245 + $0x34] sm:$0xf]
      %v274 = vld [vmem:[%s245 + $0x38] sm:$0xf]
      %v275 = vld [vmem:[%s245 + $0x3c] sm:$0xf]
      %v276 = vunpack.c.l.bf16 %v260
      %v277 = vunpack.c.l.bf16 %v261
      %v278 = vunpack.c.l.bf16 %v262
      %v279 = vunpack.c.l.bf16 %v263
      %v280 = vunpack.c.l.bf16 %v264
      %v281 = vunpack.c.l.bf16 %v265
      %v282 = vunpack.c.l.bf16 %v266
      %v283 = vunpack.c.l.bf16 %v267
      %v284 = vunpack.c.l.bf16 %v268
      %v285 = vunpack.c.l.bf16 %v269
      %v286 = vunpack.c.l.bf16 %v270
      %v287 = vunpack.c.l.bf16 %v271
      %v288 = vunpack.c.l.bf16 %v272
      %v289 = vunpack.c.l.bf16 %v273
      %v290 = vunpack.c.l.bf16 %v274
      %v291 = vunpack.c.l.bf16 %v275
      %vm292 = vcmask 80896
      %v293 = vsel %vm292, %v276, -inf
      %294 = vmax.xlane.f32.xlu0 %v293
      %v295 = vpop.xlane.xlu0 %294
      %v296 = vsel %vm292, %v277, -inf
      %297 = vmax.xlane.f32.xlu0 %v296
      %v298 = vpop.xlane.xlu0 %297
      %v299 = vsel %vm292, %v278, -inf
      %300 = vmax.xlane.f32.xlu0 %v299
      %v301 = vpop.xlane.xlu0 %300
      %v302 = vsel %vm292, %v279, -inf
      %303 = vmax.xlane.f32.xlu0 %v302
      %v304 = vpop.xlane.xlu0 %303
      %v305 = vsel %vm292, %v280, -inf
      %306 = vmax.xlane.f32.xlu0 %v305
      %v307 = vpop.xlane.xlu0 %306
      %v308 = vsel %vm292, %v281, -inf
      %309 = vmax.xlane.f32.xlu0 %v308
      %v310 = vpop.xlane.xlu0 %309
      %v311 = vsel %vm292, %v282, -inf
      %312 = vmax.xlane.f32.xlu0 %v311
      %v313 = vpop.xlane.xlu0 %312
      %v314 = vsel %vm292, %v283, -inf
      %315 = vmax.xlane.f32.xlu0 %v314
      %v316 = vpop.xlane.xlu0 %315
      %v317 = vsel %vm292, %v284, -inf
      %318 = vmax.xlane.f32.xlu0 %v317
      %v319 = vpop.xlane.xlu0 %318
      %v320 = vsel %vm292, %v285, -inf
      %321 = vmax.xlane.f32.xlu0 %v320
      %v322 = vpop.xlane.xlu0 %321
      %v323 = vsel %vm292, %v286, -inf
      %324 = vmax.xlane.f32.xlu0 %v323
      %v325 = vpop.xlane.xlu0 %324
      %v326 = vsel %vm292, %v287, -inf
      %327 = vmax.xlane.f32.xlu0 %v326
      %v328 = vpop.xlane.xlu0 %327
      %v329 = vsel %vm292, %v288, -inf
      %330 = vmax.xlane.f32.xlu0 %v329
      %v331 = vpop.xlane.xlu0 %330
      %v332 = vsel %vm292, %v289, -inf
      %333 = vmax.xlane.f32.xlu0 %v332
      %v334 = vpop.xlane.xlu0 %333
      %v335 = vsel %vm292, %v290, -inf
      %336 = vmax.xlane.f32.xlu0 %v335
      %v337 = vpop.xlane.xlu0 %336
      %v338 = vsel %vm292, %v291, -inf
      %339 = vmax.xlane.f32.xlu0 %v338
      %v340 = vpop.xlane.xlu0 %339
      %v341 = vsub.f32 %v276, %v295
      %v342 = vsub.f32 %v277, %v298
      %v343 = vsub.f32 %v278, %v301
      %v344 = vsub.f32 %v279, %v304
      %v345 = vsub.f32 %v280, %v307
      %v346 = vsub.f32 %v281, %v310
      %v347 = vsub.f32 %v282, %v313
      %v348 = vsub.f32 %v283, %v316
      %v349 = vsub.f32 %v284, %v319
      %v350 = vsub.f32 %v285, %v322
      %v351 = vsub.f32 %v286, %v325
      %v352 = vsub.f32 %v287, %v328
      %v353 = vsub.f32 %v288, %v331
      %v354 = vsub.f32 %v289, %v334
      %v355 = vsub.f32 %v290, %v337
      %v356 = vsub.f32 %v291, %v340
      %v357 = vmul.f32 %v341, 1.442695
      %v358 = vpow.pop %v357
      %v359 = vmul.f32 %v342, 1.442695
      %v360 = vpow.pop %v359
      %v361 = vmul.f32 %v343, 1.442695
      %v362 = vpow.pop %v361
      %v363 = vmul.f32 %v344, 1.442695
      %v364 = vpow.pop %v363
      %v365 = vmul.f32 %v345, 1.442695
      %v366 = vpow.pop %v365
      %v367 = vmul.f32 %v346, 1.442695
      %v368 = vpow.pop %v367
      %v369 = vmul.f32 %v347, 1.442695
      %v370 = vpow.pop %v369
      %v371 = vmul.f32 %v348, 1.442695
      %v372 = vpow.pop %v371
      %v373 = vmul.f32 %v349, 1.442695
      %v374 = vpow.pop %v373
      %v375 = vmul.f32 %v350, 1.442695
      %v376 = vpow.pop %v375
      %v377 = vmul.f32 %v351, 1.442695
      %v378 = vpow.pop %v377
      %v379 = vmul.f32 %v352, 1.442695
      %v380 = vpow.pop %v379
      %v381 = vmul.f32 %v353, 1.442695
      %v382 = vpow.pop %v381
      %v383 = vmul.f32 %v354, 1.442695
      %v384 = vpow.pop %v383
      %v385 = vmul.f32 %v355, 1.442695
      %v386 = vpow.pop %v385
      %v387 = vmul.f32 %v356, 1.442695
      %v388 = vpow.pop %v387
      %v389 = vsel %vm292, %v358, 0.0
      %390 = vadd.xlane.f32.xlu0 %v389
      %v391 = vpop.xlane.xlu0 %390
      %v392 = vsel %vm292, %v360, 0.0
      %393 = vadd.xlane.f32.xlu0 %v392
      %v394 = vpop.xlane.xlu0 %393
      %v395 = vsel %vm292, %v362, 0.0
      %396 = vadd.xlane.f32.xlu0 %v395
      %v397 = vpop.xlane.xlu0 %396
      %v398 = vsel %vm292, %v364, 0.0
      %399 = vadd.xlane.f32.xlu0 %v398
      %v400 = vpop.xlane.xlu0 %399
      %v401 = vsel %vm292, %v366, 0.0
      %402 = vadd.xlane.f32.xlu0 %v401
      %v403 = vpop.xlane.xlu0 %402
      %v404 = vsel %vm292, %v368, 0.0
      %405 = vadd.xlane.f32.xlu0 %v404
      %v406 = vpop.xlane.xlu0 %405
      %v407 = vsel %vm292, %v370, 0.0
      %408 = vadd.xlane.f32.xlu0 %v407
      %v409 = vpop.xlane.xlu0 %408
      %v410 = vsel %vm292, %v372, 0.0
      %411 = vadd.xlane.f32.xlu0 %v410
      %v412 = vpop.xlane.xlu0 %411
      %v413 = vsel %vm292, %v374, 0.0
      %414 = vadd.xlane.f32.xlu0 %v413
      %v415 = vpop.xlane.xlu0 %414
      %v416 = vsel %vm292, %v376, 0.0
      %417 = vadd.xlane.f32.xlu0 %v416
      %v418 = vpop.xlane.xlu0 %417
      %v419 = vsel %vm292, %v378, 0.0
      %420 = vadd.xlane.f32.xlu0 %v419
      %v421 = vpop.xlane.xlu0 %420
      %v422 = vsel %vm292, %v380, 0.0
      %423 = vadd.xlane.f32.xlu0 %v422
      %v424 = vpop.xlane.xlu0 %423
      %v425 = vsel %vm292, %v382, 0.0
      %426 = vadd.xlane.f32.xlu0 %v425
      %v427 = vpop.xlane.xlu0 %426
      %v428 = vsel %vm292, %v384, 0.0
      %429 = vadd.xlane.f32.xlu0 %v428
      %v430 = vpop.xlane.xlu0 %429
      %v431 = vsel %vm292, %v386, 0.0
      %432 = vadd.xlane.f32.xlu0 %v431
      %v433 = vpop.xlane.xlu0 %432
      %v434 = vsel %vm292, %v388, 0.0
      %435 = vadd.xlane.f32.xlu0 %v434
      %v436 = vpop.xlane.xlu0 %435
      %v437 = vld [vmem:[%s249] sm:$0x1]
      %v439 = vperm.slane %v437, 0
      %v441 = vmul.f32 %v358, %v439
      %v442 = vmul.f32 %v360, %v439
      %v443 = vmul.f32 %v362, %v439
      %v444 = vmul.f32 %v364, %v439
      %v445 = vmul.f32 %v366, %v439
      %v446 = vmul.f32 %v368, %v439
      %v447 = vmul.f32 %v370, %v439
      %v448 = vmul.f32 %v372, %v439
      %v449 = vmul.f32 %v374, %v439
      %v450 = vmul.f32 %v376, %v439
      %v451 = vmul.f32 %v378, %v439
      %v452 = vmul.f32 %v380, %v439
      %v453 = vmul.f32 %v382, %v439
      %v454 = vmul.f32 %v384, %v439
      %v455 = vmul.f32 %v386, %v439
      %v456 = vmul.f32 %v388, %v439
      %v457 = vsel %vm292, %v441, 0.0
      %458 = vadd.xlane.f32.xlu0 %v457
      %v459 = vpop.xlane.xlu0 %458
      %v460 = vsel %vm292, %v442, 0.0
      %461 = vadd.xlane.f32.xlu0 %v460
      %v462 = vpop.xlane.xlu0 %461
      %v463 = vsel %vm292, %v443, 0.0
      %464 = vadd.xlane.f32.xlu0 %v463
      %v465 = vpop.xlane.xlu0 %464
      %v466 = vsel %vm292, %v444, 0.0
      %467 = vadd.xlane.f32.xlu0 %v466
      %v468 = vpop.xlane.xlu0 %467
      %v469 = vsel %vm292, %v445, 0.0
      %470 = vadd.xlane.f32.xlu0 %v469
      %v471 = vpop.xlane.xlu0 %470
      %v472 = vsel %vm292, %v446, 0.0
      %473 = vadd.xlane.f32.xlu0 %v472
      %v474 = vpop.xlane.xlu0 %473
      %v475 = vsel %vm292, %v447, 0.0
      %476 = vadd.xlane.f32.xlu0 %v475
      %v477 = vpop.xlane.xlu0 %476
      %v478 = vsel %vm292, %v448, 0.0
      %479 = vadd.xlane.f32.xlu0 %v478
      %v480 = vpop.xlane.xlu0 %479
      %v481 = vsel %vm292, %v449, 0.0
      %482 = vadd.xlane.f32.xlu0 %v481
      %v483 = vpop.xlane.xlu0 %482
      %v484 = vsel %vm292, %v450, 0.0
      %485 = vadd.xlane.f32.xlu0 %v484
      %v486 = vpop.xlane.xlu0 %485
      %v487 = vsel %vm292, %v451, 0.0
      %488 = vadd.xlane.f32.xlu0 %v487
      %v489 = vpop.xlane.xlu0 %488
      %v490 = vsel %vm292, %v452, 0.0
      %491 = vadd.xlane.f32.xlu0 %v490
      %v492 = vpop.xlane.xlu0 %491
      %v493 = vsel %vm292, %v453, 0.0
      %494 = vadd.xlane.f32.xlu0 %v493
      %v495 = vpop.xlane.xlu0 %494
      %v496 = vsel %vm292, %v454, 0.0
      %497 = vadd.xlane.f32.xlu0 %v496
      %v498 = vpop.xlane.xlu0 %497
      %v499 = vsel %vm292, %v455, 0.0
      %500 = vadd.xlane.f32.xlu0 %v499
      %v501 = vpop.xlane.xlu0 %500
      %v502 = vsel %vm292, %v456, 0.0
      %503 = vadd.xlane.f32.xlu0 %v502
      %v504 = vpop.xlane.xlu0 %503
      %v505 = vld [vmem:[%s235] sm:$0xff]
      %v506 = vld [vmem:[%s235 + $0x8] sm:$0xff]
      %v507 = vld [vmem:[%s235 + $0x10] sm:$0xff]
      %v508 = vld [vmem:[%s235 + $0x18] sm:$0xff]
      %v509 = vld [vmem:[%s235 + $0x20] sm:$0xff]
      %v510 = vld [vmem:[%s235 + $0x28] sm:$0xff]
      %v511 = vld [vmem:[%s235 + $0x30] sm:$0xff]
      %v512 = vld [vmem:[%s235 + $0x38] sm:$0xff]
      %v513 = vld [vmem:[%s235 + $0x40] sm:$0xff]
      %v514 = vld [vmem:[%s235 + $0x48] sm:$0xff]
      %v515 = vld [vmem:[%s235 + $0x50] sm:$0xff]
      %v516 = vld [vmem:[%s235 + $0x58] sm:$0xff]
      %v517 = vld [vmem:[%s235 + $0x60] sm:$0xff]
      %v518 = vld [vmem:[%s235 + $0x68] sm:$0xff]
      %v519 = vld [vmem:[%s235 + $0x70] sm:$0xff]
      %v520 = vld [vmem:[%s235 + $0x78] sm:$0xff]
      %v521 = vrcp.pop %v391
      %v522 = vrcp.pop %v394
      %v523 = vrcp.pop %v397
      %v524 = vrcp.pop %v400
      %v525 = vrcp.pop %v403
      %v526 = vrcp.pop %v406
      %v527 = vrcp.pop %v409
      %v528 = vrcp.pop %v412
      %v529 = vrcp.pop %v415
      %v530 = vrcp.pop %v418
      %v531 = vrcp.pop %v421
      %v532 = vrcp.pop %v424
      %v533 = vrcp.pop %v427
      %v534 = vrcp.pop %v430
      %v535 = vrcp.pop %v433
      %v536 = vrcp.pop %v436
      %v537 = vmul.f32 %v459, %v521
      %v538 = vmul.f32 %v462, %v522
      %v539 = vmul.f32 %v465, %v523
      %v540 = vmul.f32 %v468, %v524
      %v541 = vmul.f32 %v471, %v525
      %v542 = vmul.f32 %v474, %v526
      %v543 = vmul.f32 %v477, %v527
      %v544 = vmul.f32 %v480, %v528
      %v545 = vmul.f32 %v483, %v529
      %v546 = vmul.f32 %v486, %v530
      %v547 = vmul.f32 %v489, %v531
      %v548 = vmul.f32 %v492, %v532
      %v549 = vmul.f32 %v495, %v533
      %v550 = vmul.f32 %v498, %v534
      %v551 = vmul.f32 %v501, %v535
      %v552 = vmul.f32 %v504, %v536
      %v553 = vadd.f32 %v505, %v537
      %v554 = vadd.f32 %v506, %v538
      %v555 = vadd.f32 %v507, %v539
      %v556 = vadd.f32 %v508, %v540
      %v557 = vadd.f32 %v509, %v541
      %v558 = vadd.f32 %v510, %v542
      %v559 = vadd.f32 %v511, %v543
      %v560 = vadd.f32 %v512, %v544
      %v561 = vadd.f32 %v513, %v545
      %v562 = vadd.f32 %v514, %v546
      %v563 = vadd.f32 %v515, %v547
      %v564 = vadd.f32 %v516, %v548
      %v565 = vadd.f32 %v517, %v549
      %v566 = vadd.f32 %v518, %v550
      %v567 = vadd.f32 %v519, %v551
      %v568 = vadd.f32 %v520, %v552
      %vm569 = vcmask 7168
      %570 = vst.msk [vmem:[%s258] sm:$0xff] %vm569, %v553
      %571 = vst.msk [vmem:[%s258 + $0x8] sm:$0xff] %vm569, %v554
      %572 = vst.msk [vmem:[%s258 + $0x10] sm:$0xff] %vm569, %v555
      %573 = vst.msk [vmem:[%s258 + $0x18] sm:$0xff] %vm569, %v556
      %574 = vst.msk [vmem:[%s258 + $0x20] sm:$0xff] %vm569, %v557
      %575 = vst.msk [vmem:[%s258 + $0x28] sm:$0xff] %vm569, %v558
      %576 = vst.msk [vmem:[%s258 + $0x30] sm:$0xff] %vm569, %v559
      %577 = vst.msk [vmem:[%s258 + $0x38] sm:$0xff] %vm569, %v560
      %578 = vst.msk [vmem:[%s258 + $0x40] sm:$0xff] %vm569, %v561
      %579 = vst.msk [vmem:[%s258 + $0x48] sm:$0xff] %vm569, %v562
      %580 = vst.msk [vmem:[%s258 + $0x50] sm:$0xff] %vm569, %v563
      %581 = vst.msk [vmem:[%s258 + $0x58] sm:$0xff] %vm569, %v564
      %582 = vst.msk [vmem:[%s258 + $0x60] sm:$0xff] %vm569, %v565
      %583 = vst.msk [vmem:[%s258 + $0x68] sm:$0xff] %vm569, %v566
      %584 = vst.msk [vmem:[%s258 + $0x70] sm:$0xff] %vm569, %v567
      %585 = vst.msk [vmem:[%s258 + $0x78] sm:$0xff] %vm569, %v568
      %s586 = smul.u32 16, %s19
      %p587 = scmp.lt.s32.totalorder %s18, 1
      %s588 = scalar_select %p587, %s18, 1
      %p589 = scmp.lt.s32.totalorder %s586, 31
      %s590 = scalar_select %p589, %s586, 31
      %s591 = smul.addr %s588, 32
      %s592 = sadd.s32 %s590, %s591
      %s593 = smul.addr %s592, 8
      %s594 = scalar_lea.vmem %s3, %s593
      // Predicated region
      $region33: #{udfnet_forward.5} parent=31 // pred_check
        %p595 = pneg %p128
      $region34: #{udfnet_forward.5} parent=31 // pred_check_branch
        %597 = sbr.rel (%p595) target = $region36
      $region35: #{udfnet_forward.5} parent=31 // pred_region
        %s598 = smul.u32 16, %s19
      $region36: #{udfnet_forward.5} parent=31 // pred_fallthru
        _
    $region32: #{udfnet_forward.5} parent=5 // pred_fallthru
      _
    %p599 = scmp.le.s32.totalorder 2, %s9
    // Predicated region
    $region37: #{udfnet_forward.5} parent=5 // pred_check
      %p600 = pneg %p599
    $region38: #{udfnet_forward.5} parent=5 // pred_check_branch
      %602 = sbr.rel (%p600) target = $region40
    $region39: #{udfnet_forward.5} parent=5 // pred_region
      %s603 = ssub.s32 %s9, 2
      // Predicated region
      $region41: #{udfnet_forward.5} parent=39 // pred_check
        %p604 = pneg %p134
      $region42: #{udfnet_forward.5} parent=39 // pred_check_branch
        %606 = sbr.rel (%p604) target = $region44
      $region43: #{udfnet_forward.5} parent=39 // pred_region
        %s607 = smul.u32 16, %s21
        %p608 = scmp.lt.s32.totalorder %s20, 1
        %s609 = scalar_select %p608, %s20, 1
        %p610 = scmp.lt.s32.totalorder %s607, 31
        %s611 = scalar_select %p610, %s607, 31
        %s612 = smul.addr %s609, 32
        %s613 = sadd.s32 %s611, %s612
        %s614 = smul.addr %s613, 8
        %s615 = scalar_lea.vmem %s3, %s614
      $region44: #{udfnet_forward.5} parent=39 // pred_fallthru
        _
    $region40: #{udfnet_forward.5} parent=5 // pred_fallthru
      _
  $region6: #{udfnet_forward.5} parent=0 // loop_footer
    %s13 = sadd.s32 1, %s9
  $region7: #{udfnet_forward.5} parent=0 // loop_footer_branch
    %8 = sbr.rel target = $region3
  $region8: #{udfnet_forward.5} parent=0 // loop_exit
    _

// kernel: udfnet_forward.4
$region0: #{udfnet_forward.4}
  #allocation0 [shape = 'u32[]', space=smem, size = 0x4, offset = 0x4, fixed_abs, tag = 'smem constant byte address 0x4 - core index']
  #allocation1 [shape = 'u32[72,128]{1,0:T(1,128)}', space=vmem, size = 0x9000, scoped, tag = 'internal scratch']
  %s0 = inlined_call_operand.vmem [shape: bf16[2,256,46], index: 0, kind: input, shape index: {}]
  %s1 = inlined_call_operand.vmem [shape: bf16[2,256,2], index: 1, kind: input, shape index: {}]
  %s2 = inlined_call_operand.vmem [shape: bf16[2,256,29], index: 2, kind: input, shape index: {}]
  %s3 = inlined_call_operand.vmem [shape: bf16[46,128], index: 3, kind: input, shape index: {}]
  %s4 = inlined_call_operand.vmem [shape: f32[2,128], index: 4, kind: input, shape index: {}]
  %s5 = inlined_call_operand.vmem [shape: f32[1,128], index: 5, kind: input, shape index: {}]
  %s6 = inlined_call_operand.vmem [shape: f32[2,1,128], index: 6, kind: input, shape index: {}]
  %s7 = inlined_call_operand.vmem [shape: f32[1,76], index: 7, kind: input, shape index: {}]
  %s8 = inlined_call_operand.vmem [shape: bf16[46,76], index: 8, kind: input, shape index: {}]
  %s9 = inlined_call_operand.vmem [shape: bf16[29,76], index: 9, kind: input, shape index: {}]
  %s10 = inlined_call_operand.vmem [shape: f32[1,76], index: 10, kind: input, shape index: {}]
  %s11 = inlined_call_operand.vmem [shape: f32[1,10], index: 11, kind: input, shape index: {}]
  %s12 = inlined_call_operand.vmem [shape: bf16[46,10], index: 12, kind: input, shape index: {}]
  %s13 = inlined_call_operand.vmem [shape: bf16[29,10], index: 13, kind: input, shape index: {}]
  %s14 = inlined_call_operand.vmem [shape: f32[1,10], index: 14, kind: input, shape index: {}]
  %s15 = inlined_call_operand.vmem [shape: f32[2,256,1], index: 15, kind: output, shape index: {0}]
  %s16 = inlined_call_operand.vmem [shape: bf16[2,256,10], index: 16, kind: output, shape index: {1}]
  %s17 = inlined_call_operand.vmem [shape: f32[2,2,1,76], index: 17, kind: output, shape index: {2}]
  %18 = xla_tuple %s15, %s16, %s17
  %s19 = sld [smem:[#allocation0]]
  $region109: #{udfnet_forward.4} parent=0
    _
  %s21 = ssub.s32 1, %s19
  %s22 = scalar_select 0, %s21, %s19
  loop: start=0, step=1, limit=6
  $region2: #{udfnet_forward.4} parent=0 // loop_pre_header
    _
  $region3: #{udfnet_forward.4} parent=0 // loop_header
    %s24 = sphi 0, %s28
    %p25 = scmp.ge.s32.totalorder %s24, 6
    %s31 = sphi 0, %s43
    %s32 = sphi 0, %s39
    %s33 = sphi 0, %s31
    %s34 = sphi 0, %s32
    %s35 = sphi 0, %s33
    %s36 = sphi 0, %s34
    %s48 = sphi 0, %s50
    %s51 = sphi 0, %s48
    %s52 = sphi 0, %s51
    %s68 = sphi 0, %s52
    %s76 = sphi 0, %s78
    %s79 = sphi 0, %s76
    %s80 = sphi 0, %s79
    %s96 = sphi 0, %s80
    %s104 = sphi 0, %s106
    %s107 = sphi 0, %s104
    %s108 = sphi 0, %s107
    %s124 = sphi 0, %s108
    %s128 = sphi 0, %s128
    %s130 = sphi 0, %s128
    %s131 = sphi 0, %s130
    %s145 = sphi 0, %s131
    %s149 = sphi 0, %s149
    %s151 = sphi 0, %s149
    %s152 = sphi 0, %s151
    %s166 = sphi 0, %s152
    %s170 = sphi 0, %s170
    %s172 = sphi 0, %s170
    %s173 = sphi 0, %s172
    %s187 = sphi 0, %s173
    %s193 = sphi 0, %s195
    %s196 = sphi 0, %s193
    %s197 = sphi 0, %s196
    %s213 = sphi 0, %s197
    %s217 = sphi 0, %s217
    %s219 = sphi 0, %s217
    %s220 = sphi 0, %s219
    %s234 = sphi 0, %s220
    %s238 = sphi 0, %s238
    %s240 = sphi 0, %s238
    %s241 = sphi 0, %s240
    %s255 = sphi 0, %s241
    %s259 = sphi 0, %s259
    %s261 = sphi 0, %s259
    %s262 = sphi 0, %s261
    %s276 = sphi 0, %s262
    %s280 = sphi 0, %s280
    %s282 = sphi 0, %s280
    %s283 = sphi 0, %s282
    %s297 = sphi 0, %s283
    %s301 = sphi 0, %s301
    %s303 = sphi 0, %s301
    %s304 = sphi 0, %s303
    %s318 = sphi 0, %s304
    %s322 = sphi 0, %s322
    %s324 = sphi 0, %s322
    %s325 = sphi 0, %s324
    %s339 = sphi 0, %s325
    %s343 = sphi 0, %s343
    %s345 = sphi 0, %s343
    %s346 = sphi 0, %s345
    %s360 = sphi 0, %s346
    %s364 = sphi 0, %s364
    %s366 = sphi 0, %s364
    %s367 = sphi 0, %s366
    %s381 = sphi 0, %s367
    %s389 = sphi 0, %s391
    %s392 = sphi 0, %s389
    %s393 = sphi 0, %s392
    %s409 = sphi 0, %s393
    %s417 = sphi 0, %s419
    %s420 = sphi 0, %s417
    %s421 = sphi 0, %s420
    %s437 = sphi 0, %s421
    %s445 = sphi 0, %s447
    %s448 = sphi 0, %s445
    %s449 = sphi 0, %s448
    %s465 = sphi 0, %s449
  $region4: #{udfnet_forward.4} parent=0 // loop_header_branch
    %27 = sbr.rel (%p25) target = $region8
  $region5: #{udfnet_forward.4} parent=0 // loop_body
    %s29 = ssub.s32 %s24, 1
    %s30 = ssub.s32 %s24, 2
    %s37 = sadd.s32 1, %s32
    %p38 = scmp.ge.s32.totalorder %s37, 2
    %s39 = scalar_select %p38, 0, %s37
    %s40 = sadd.s32 1, %s31
    %s41 = scalar_select %p38, %s40, %s31
    %p42 = scmp.ge.s32.totalorder %s41, 2
    %s43 = scalar_select %p42, 0, %s41
    %s44 = ssub.s32 %s31, %s43
    %s45 = ssub.s32 %s32, %s39
    %s46 = sor.u32 %s44, %s45
    %p47 = scmp.eq.s32.totalorder %s46, 0
    %s49 = sadd.s32 %s48, 1
    %s50 = scalar_select %p47, %s48, %s49
    %p53 = pneg %p47
    %p54 = scmp.eq.s32.totalorder %s24, 3
    %p55 = por %p53, %p54
    %p56 = scmp.ne.s32.totalorder %s48, %s51
    %p57 = scmp.eq.s32.totalorder %s24, 0
    %p58 = por %p56, %p57
    %p59 = scmp.ne.s32.totalorder %s48, %s51
    %p60 = scmp.eq.s32.totalorder %s29, 3
    %p61 = por %p59, %p60
    %p62 = scmp.ne.s32.totalorder %s51, %s52
    %p63 = scmp.eq.s32.totalorder %s29, 0
    %p64 = por %p62, %p63
    %p65 = scmp.ne.s32.totalorder %s51, %s52
    %p66 = scmp.eq.s32.totalorder %s30, 3
    %p67 = por %p65, %p66
    %p69 = scmp.ne.s32.totalorder %s52, %s68
    %p70 = scmp.eq.s32.totalorder %s30, 0
    %p71 = por %p69, %p70
    %s72 = ssub.s32 %s31, %s43
    %s73 = ssub.s32 %s32, %s39
    %s74 = sor.u32 %s72, %s73
    %p75 = scmp.eq.s32.totalorder %s74, 0
    %s77 = sadd.s32 %s76, 1
    %s78 = scalar_select %p75, %s76, %s77
    %p81 = pneg %p75
    %p82 = scmp.eq.s32.totalorder %s24, 3
    %p83 = por %p81, %p82
    %p84 = scmp.ne.s32.totalorder %s76, %s79
    %p85 = scmp.eq.s32.totalorder %s24, 0
    %p86 = por %p84, %p85
    %p87 = scmp.ne.s32.totalorder %s76, %s79
    %p88 = scmp.eq.s32.totalorder %s29, 3
    %p89 = por %p87, %p88
    %p90 = scmp.ne.s32.totalorder %s79, %s80
    %p91 = scmp.eq.s32.totalorder %s29, 0
    %p92 = por %p90, %p91
    %p93 = scmp.ne.s32.totalorder %s79, %s80
    %p94 = scmp.eq.s32.totalorder %s30, 3
    %p95 = por %p93, %p94
    %p97 = scmp.ne.s32.totalorder %s80, %s96
    %p98 = scmp.eq.s32.totalorder %s30, 0
    %p99 = por %p97, %p98
    %s100 = ssub.s32 %s31, %s43
    %s101 = ssub.s32 %s32, %s39
    %s102 = sor.u32 %s100, %s101
    %p103 = scmp.eq.s32.totalorder %s102, 0
    %s105 = sadd.s32 %s104, 1
    %s106 = scalar_select %p103, %s104, %s105
    %p109 = pneg %p103
    %p110 = scmp.eq.s32.totalorder %s24, 3
    %p111 = por %p109, %p110
    %p112 = scmp.ne.s32.totalorder %s104, %s107
    %p113 = scmp.eq.s32.totalorder %s24, 0
    %p114 = por %p112, %p113
    %p115 = scmp.ne.s32.totalorder %s104, %s107
    %p116 = scmp.eq.s32.totalorder %s29, 3
    %p117 = por %p115, %p116
    %p118 = scmp.ne.s32.totalorder %s107, %s108
    %p119 = scmp.eq.s32.totalorder %s29, 0
    %p120 = por %p118, %p119
    %p121 = scmp.ne.s32.totalorder %s107, %s108
    %p122 = scmp.eq.s32.totalorder %s30, 3
    %p123 = por %p121, %p122
    %p125 = scmp.ne.s32.totalorder %s108, %s124
    %p126 = scmp.eq.s32.totalorder %s30, 0
    %p127 = por %p125, %p126
    %s129 = sadd.s32 %s128, 1
    %p132 = scmp.eq.s32.totalorder %s24, 3
    %p133 = scmp.ne.s32.totalorder %s128, %s130
    %p134 = scmp.eq.s32.totalorder %s24, 0
    %p135 = por %p133, %p134
    %p136 = scmp.ne.s32.totalorder %s128, %s130
    %p137 = scmp.eq.s32.totalorder %s29, 3
    %p138 = por %p136, %p137
    %p139 = scmp.ne.s32.totalorder %s130, %s131
    %p140 = scmp.eq.s32.totalorder %s29, 0
    %p141 = por %p139, %p140
    %p142 = scmp.ne.s32.totalorder %s130, %s131
    %p143 = scmp.eq.s32.totalorder %s30, 3
    %p144 = por %p142, %p143
    %p146 = scmp.ne.s32.totalorder %s131, %s145
    %p147 = scmp.eq.s32.totalorder %s30, 0
    %p148 = por %p146, %p147
    %s150 = sadd.s32 %s149, 1
    %p153 = scmp.eq.s32.totalorder %s24, 3
    %p154 = scmp.ne.s32.totalorder %s149, %s151
    %p155 = scmp.eq.s32.totalorder %s24, 0
    %p156 = por %p154, %p155
    %p157 = scmp.ne.s32.totalorder %s149, %s151
    %p158 = scmp.eq.s32.totalorder %s29, 3
    %p159 = por %p157, %p158
    %p160 = scmp.ne.s32.totalorder %s151, %s152
    %p161 = scmp.eq.s32.totalorder %s29, 0
    %p162 = por %p160, %p161
    %p163 = scmp.ne.s32.totalorder %s151, %s152
    %p164 = scmp.eq.s32.totalorder %s30, 3
    %p165 = por %p163, %p164
    %p167 = scmp.ne.s32.totalorder %s152, %s166
    %p168 = scmp.eq.s32.totalorder %s30, 0
    %p169 = por %p167, %p168
    %s171 = sadd.s32 %s170, 1
    %p174 = scmp.eq.s32.totalorder %s24, 3
    %p175 = scmp.ne.s32.totalorder %s170, %s172
    %p176 = scmp.eq.s32.totalorder %s24, 0
    %p177 = por %p175, %p176
    %p178 = scmp.ne.s32.totalorder %s170, %s172
    %p179 = scmp.eq.s32.totalorder %s29, 3
    %p180 = por %p178, %p179
    %p181 = scmp.ne.s32.totalorder %s172, %s173
    %p182 = scmp.eq.s32.totalorder %s29, 0
    %p183 = por %p181, %p182
    %p184 = scmp.ne.s32.totalorder %s172, %s173
    %p185 = scmp.eq.s32.totalorder %s30, 3
    %p186 = por %p184, %p185
    %p188 = scmp.ne.s32.totalorder %s173, %s187
    %p189 = scmp.eq.s32.totalorder %s30, 0
    %p190 = por %p188, %p189
    %s191 = ssub.s32 %s31, %s43
    %p192 = scmp.eq.s32.totalorder %s191, 0
    %s194 = sadd.s32 %s193, 1
    %s195 = scalar_select %p192, %s193, %s194
    %p198 = pneg %p192
    %p199 = scmp.eq.s32.totalorder %s24, 3
    %p200 = por %p198, %p199
    %p201 = scmp.ne.s32.totalorder %s193, %s196
    %p202 = scmp.eq.s32.totalorder %s24, 0
    %p203 = por %p201, %p202
    %p204 = scmp.ne.s32.totalorder %s193, %s196
    %p205 = scmp.eq.s32.totalorder %s29, 3
    %p206 = por %p204, %p205
    %p207 = scmp.ne.s32.totalorder %s196, %s197
    %p208 = scmp.eq.s32.totalorder %s29, 0
    %p209 = por %p207, %p208
    %p210 = scmp.ne.s32.totalorder %s196, %s197
    %p211 = scmp.eq.s32.totalorder %s30, 3
    %p212 = por %p210, %p211
    %p214 = scmp.ne.s32.totalorder %s197, %s213
    %p215 = scmp.eq.s32.totalorder %s30, 0
    %p216 = por %p214, %p215
    %s218 = sadd.s32 %s217, 1
    %p221 = scmp.eq.s32.totalorder %s24, 3
    %p222 = scmp.ne.s32.totalorder %s217, %s219
    %p223 = scmp.eq.s32.totalorder %s24, 0
    %p224 = por %p222, %p223
    %p225 = scmp.ne.s32.totalorder %s217, %s219
    %p226 = scmp.eq.s32.totalorder %s29, 3
    %p227 = por %p225, %p226
    %p228 = scmp.ne.s32.totalorder %s219, %s220
    %p229 = scmp.eq.s32.totalorder %s29, 0
    %p230 = por %p228, %p229
    %p231 = scmp.ne.s32.totalorder %s219, %s220
    %p232 = scmp.eq.s32.totalorder %s30, 3
    %p233 = por %p231, %p232
    %p235 = scmp.ne.s32.totalorder %s220, %s234
    %p236 = scmp.eq.s32.totalorder %s30, 0
    %p237 = por %p235, %p236
    %s239 = sadd.s32 %s238, 1
    %p242 = scmp.eq.s32.totalorder %s24, 3
    %p243 = scmp.ne.s32.totalorder %s238, %s240
    %p244 = scmp.eq.s32.totalorder %s24, 0
    %p245 = por %p243, %p244
    %p246 = scmp.ne.s32.totalorder %s238, %s240
    %p247 = scmp.eq.s32.totalorder %s29, 3
    %p248 = por %p246, %p247
    %p249 = scmp.ne.s32.totalorder %s240, %s241
    %p250 = scmp.eq.s32.totalorder %s29, 0
    %p251 = por %p249, %p250
    %p252 = scmp.ne.s32.totalorder %s240, %s241
    %p253 = scmp.eq.s32.totalorder %s30, 3
    %p254 = por %p252, %p253
    %p256 = scmp.ne.s32.totalorder %s241, %s255
    %p257 = scmp.eq.s32.totalorder %s30, 0
    %p258 = por %p256, %p257
    %s260 = sadd.s32 %s259, 1
    %p263 = scmp.eq.s32.totalorder %s24, 3
    %p264 = scmp.ne.s32.totalorder %s259, %s261
    %p265 = scmp.eq.s32.totalorder %s24, 0
    %p266 = por %p264, %p265
    %p267 = scmp.ne.s32.totalorder %s259, %s261
    %p268 = scmp.eq.s32.totalorder %s29, 3
    %p269 = por %p267, %p268
    %p270 = scmp.ne.s32.totalorder %s261, %s262
    %p271 = scmp.eq.s32.totalorder %s29, 0
    %p272 = por %p270, %p271
    %p273 = scmp.ne.s32.totalorder %s261, %s262
    %p274 = scmp.eq.s32.totalorder %s30, 3
    %p275 = por %p273, %p274
    %p277 = scmp.ne.s32.totalorder %s262, %s276
    %p278 = scmp.eq.s32.totalorder %s30, 0
    %p279 = por %p277, %p278
    %s281 = sadd.s32 %s280, 1
    %p284 = scmp.eq.s32.totalorder %s24, 3
    %p285 = scmp.ne.s32.totalorder %s280, %s282
    %p286 = scmp.eq.s32.totalorder %s24, 0
    %p287 = por %p285, %p286
    %p288 = scmp.ne.s32.totalorder %s280, %s282
    %p289 = scmp.eq.s32.totalorder %s29, 3
    %p290 = por %p288, %p289
    %p291 = scmp.ne.s32.totalorder %s282, %s283
    %p292 = scmp.eq.s32.totalorder %s29, 0
    %p293 = por %p291, %p292
    %p294 = scmp.ne.s32.totalorder %s282, %s283
    %p295 = scmp.eq.s32.totalorder %s30, 3
    %p296 = por %p294, %p295
    %p298 = scmp.ne.s32.totalorder %s283, %s297
    %p299 = scmp.eq.s32.totalorder %s30, 0
    %p300 = por %p298, %p299
    %s302 = sadd.s32 %s301, 1
    %p305 = scmp.eq.s32.totalorder %s24, 3
    %p306 = scmp.ne.s32.totalorder %s301, %s303
    %p307 = scmp.eq.s32.totalorder %s24, 0
    %p308 = por %p306, %p307
    %p309 = scmp.ne.s32.totalorder %s301, %s303
    %p310 = scmp.eq.s32.totalorder %s29, 3
    %p311 = por %p309, %p310
    %p312 = scmp.ne.s32.totalorder %s303, %s304
    %p313 = scmp.eq.s32.totalorder %s29, 0
    %p314 = por %p312, %p313
    %p315 = scmp.ne.s32.totalorder %s303, %s304
    %p316 = scmp.eq.s32.totalorder %s30, 3
    %p317 = por %p315, %p316
    %p319 = scmp.ne.s32.totalorder %s304, %s318
    %p320 = scmp.eq.s32.totalorder %s30, 0
    %p321 = por %p319, %p320
    %s323 = sadd.s32 %s322, 1
    %p326 = scmp.eq.s32.totalorder %s24, 3
    %p327 = scmp.ne.s32.totalorder %s322, %s324
    %p328 = scmp.eq.s32.totalorder %s24, 0
    %p329 = por %p327, %p328
    %p330 = scmp.ne.s32.totalorder %s322, %s324
    %p331 = scmp.eq.s32.totalorder %s29, 3
    %p332 = por %p330, %p331
    %p333 = scmp.ne.s32.totalorder %s324, %s325
    %p334 = scmp.eq.s32.totalorder %s29, 0
    %p335 = por %p333, %p334
    %p336 = scmp.ne.s32.totalorder %s324, %s325
    %p337 = scmp.eq.s32.totalorder %s30, 3
    %p338 = por %p336, %p337
    %p340 = scmp.ne.s32.totalorder %s325, %s339
    %p341 = scmp.eq.s32.totalorder %s30, 0
    %p342 = por %p340, %p341
    %s344 = sadd.s32 %s343, 1
    %p347 = scmp.eq.s32.totalorder %s24, 3
    %p348 = scmp.ne.s32.totalorder %s343, %s345
    %p349 = scmp.eq.s32.totalorder %s24, 0
    %p350 = por %p348, %p349
    %p351 = scmp.ne.s32.totalorder %s343, %s345
    %p352 = scmp.eq.s32.totalorder %s29, 3
    %p353 = por %p351, %p352
    %p354 = scmp.ne.s32.totalorder %s345, %s346
    %p355 = scmp.eq.s32.totalorder %s29, 0
    %p356 = por %p354, %p355
    %p357 = scmp.ne.s32.totalorder %s345, %s346
    %p358 = scmp.eq.s32.totalorder %s30, 3
    %p359 = por %p357, %p358
    %p361 = scmp.ne.s32.totalorder %s346, %s360
    %p362 = scmp.eq.s32.totalorder %s30, 0
    %p363 = por %p361, %p362
    %s365 = sadd.s32 %s364, 1
    %p368 = scmp.eq.s32.totalorder %s24, 3
    %p369 = scmp.ne.s32.totalorder %s364, %s366
    %p370 = scmp.eq.s32.totalorder %s24, 0
    %p371 = por %p369, %p370
    %p372 = scmp.ne.s32.totalorder %s364, %s366
    %p373 = scmp.eq.s32.totalorder %s29, 3
    %p374 = por %p372, %p373
    %p375 = scmp.ne.s32.totalorder %s366, %s367
    %p376 = scmp.eq.s32.totalorder %s29, 0
    %p377 = por %p375, %p376
    %p378 = scmp.ne.s32.totalorder %s366, %s367
    %p379 = scmp.eq.s32.totalorder %s30, 3
    %p380 = por %p378, %p379
    %p382 = scmp.ne.s32.totalorder %s367, %s381
    %p383 = scmp.eq.s32.totalorder %s30, 0
    %p384 = por %p382, %p383
    %s385 = ssub.s32 %s31, %s43
    %s386 = ssub.s32 %s32, %s39
    %s387 = sor.u32 %s385, %s386
    %p388 = scmp.eq.s32.totalorder %s387, 0
    %s390 = sadd.s32 %s389, 1
    %s391 = scalar_select %p388, %s389, %s390
    %p394 = pneg %p388
    %p395 = scmp.eq.s32.totalorder %s24, 3
    %p396 = por %p394, %p395
    %p397 = scmp.ne.s32.totalorder %s389, %s392
    %p398 = scmp.eq.s32.totalorder %s24, 0
    %p399 = por %p397, %p398
    %p400 = scmp.ne.s32.totalorder %s389, %s392
    %p401 = scmp.eq.s32.totalorder %s29, 3
    %p402 = por %p400, %p401
    %p403 = scmp.ne.s32.totalorder %s392, %s393
    %p404 = scmp.eq.s32.totalorder %s29, 0
    %p405 = por %p403, %p404
    %p406 = scmp.ne.s32.totalorder %s392, %s393
    %p407 = scmp.eq.s32.totalorder %s30, 3
    %p408 = por %p406, %p407
    %p410 = scmp.ne.s32.totalorder %s393, %s409
    %p411 = scmp.eq.s32.totalorder %s30, 0
    %p412 = por %p410, %p411
    %s413 = ssub.s32 %s31, %s43
    %s414 = ssub.s32 %s32, %s39
    %s415 = sor.u32 %s413, %s414
    %p416 = scmp.eq.s32.totalorder %s415, 0
    %s418 = sadd.s32 %s417, 1
    %s419 = scalar_select %p416, %s417, %s418
    %p422 = pneg %p416
    %p423 = scmp.eq.s32.totalorder %s24, 3
    %p424 = por %p422, %p423
    %p425 = scmp.ne.s32.totalorder %s417, %s420
    %p426 = scmp.eq.s32.totalorder %s24, 0
    %p427 = por %p425, %p426
    %p428 = scmp.ne.s32.totalorder %s417, %s420
    %p429 = scmp.eq.s32.totalorder %s29, 3
    %p430 = por %p428, %p429
    %p431 = scmp.ne.s32.totalorder %s420, %s421
    %p432 = scmp.eq.s32.totalorder %s29, 0
    %p433 = por %p431, %p432
    %p434 = scmp.ne.s32.totalorder %s420, %s421
    %p435 = scmp.eq.s32.totalorder %s30, 3
    %p436 = por %p434, %p435
    %p438 = scmp.ne.s32.totalorder %s421, %s437
    %p439 = scmp.eq.s32.totalorder %s30, 0
    %p440 = por %p438, %p439
    %s441 = ssub.s32 %s31, %s43
    %s442 = ssub.s32 %s32, %s39
    %s443 = sor.u32 %s441, %s442
    %p444 = scmp.eq.s32.totalorder %s443, 0
    %s446 = sadd.s32 %s445, 1
    %s447 = scalar_select %p444, %s445, %s446
    %p450 = pneg %p444
    %p451 = scmp.eq.s32.totalorder %s24, 3
    %p452 = por %p450, %p451
    %p453 = scmp.ne.s32.totalorder %s445, %s448
    %p454 = scmp.eq.s32.totalorder %s24, 0
    %p455 = por %p453, %p454
    %p456 = scmp.ne.s32.totalorder %s445, %s448
    %p457 = scmp.eq.s32.totalorder %s29, 3
    %p458 = por %p456, %p457
    %p459 = scmp.ne.s32.totalorder %s448, %s449
    %p460 = scmp.eq.s32.totalorder %s29, 0
    %p461 = por %p459, %p460
    %p462 = scmp.ne.s32.totalorder %s448, %s449
    %p463 = scmp.eq.s32.totalorder %s30, 3
    %p464 = por %p462, %p463
    %p466 = scmp.ne.s32.totalorder %s449, %s465
    %p467 = scmp.eq.s32.totalorder %s30, 0
    %p468 = por %p466, %p467
    %p469 = scmp.le.s32.totalorder 1, %s24
    %p470 = scmp.lt.s32.totalorder %s24, 5
    %p471 = pnand %p469, %p470
    %p472 = pneg %p471
    // Predicated region
    $region9: #{udfnet_forward.4} parent=5 // pred_check
      _
    $region10: #{udfnet_forward.4} parent=5 // pred_check_branch
      %474 = sbr.rel (%p471) target = $region12
    $region11: #{udfnet_forward.4} parent=5 // pred_region
      %s475 = ssub.s32 %s24, 1
      // Predicated region
      $region13: #{udfnet_forward.4} parent=11 // pred_check
        %p476 = pneg %p141
      $region14: #{udfnet_forward.4} parent=11 // pred_check_branch
        %478 = sbr.rel (%p476) target = $region16
      $region15: #{udfnet_forward.4} parent=11 // pred_region
        _
      $region16: #{udfnet_forward.4} parent=11 // pred_fallthru
        _
      // Predicated region
      $region17: #{udfnet_forward.4} parent=11 // pred_check
        %p479 = pneg %p162
      $region18: #{udfnet_forward.4} parent=11 // pred_check_branch
        %481 = sbr.rel (%p479) target = $region20
      $region19: #{udfnet_forward.4} parent=11 // pred_region
        _
      $region20: #{udfnet_forward.4} parent=11 // pred_fallthru
        _
      // Predicated region
      $region21: #{udfnet_forward.4} parent=11 // pred_check
        %p482 = pneg %p183
      $region22: #{udfnet_forward.4} parent=11 // pred_check_branch
        %484 = sbr.rel (%p482) target = $region24
      $region23: #{udfnet_forward.4} parent=11 // pred_region
        _
      $region24: #{udfnet_forward.4} parent=11 // pred_fallthru
        _
      // Predicated region
      $region25: #{udfnet_forward.4} parent=11 // pred_check
        %p485 = pneg %p230
      $region26: #{udfnet_forward.4} parent=11 // pred_check_branch
        %487 = sbr.rel (%p485) target = $region28
      $region27: #{udfnet_forward.4} parent=11 // pred_region
        _
      $region28: #{udfnet_forward.4} parent=11 // pred_fallthru
        _
      // Predicated region
      $region29: #{udfnet_forward.4} parent=11 // pred_check
        %p488 = pneg %p251
      $region30: #{udfnet_forward.4} parent=11 // pred_check_branch
        %490 = sbr.rel (%p488) target = $region32
      $region31: #{udfnet_forward.4} parent=11 // pred_region
        _
      $region32: #{udfnet_forward.4} parent=11 // pred_fallthru
        _
      // Predicated region
      $region33: #{udfnet_forward.4} parent=11 // pred_check
        %p491 = pneg %p272
      $region34: #{udfnet_forward.4} parent=11 // pred_check_branch
        %493 = sbr.rel (%p491) target = $region36
      $region35: #{udfnet_forward.4} parent=11 // pred_region
        _
      $region36: #{udfnet_forward.4} parent=11 // pred_fallthru
        _
      // Predicated region
      $region37: #{udfnet_forward.4} parent=11 // pred_check
        %p494 = pneg %p293
      $region38: #{udfnet_forward.4} parent=11 // pred_check_branch
        %496 = sbr.rel (%p494) target = $region40
      $region39: #{udfnet_forward.4} parent=11 // pred_region
        _
      $region40: #{udfnet_forward.4} parent=11 // pred_fallthru
        _
      // Predicated region
      $region41: #{udfnet_forward.4} parent=11 // pred_check
        %p497 = pneg %p314
      $region42: #{udfnet_forward.4} parent=11 // pred_check_branch
        %499 = sbr.rel (%p497) target = $region44
      $region43: #{udfnet_forward.4} parent=11 // pred_region
        _
      $region44: #{udfnet_forward.4} parent=11 // pred_fallthru
        _
      // Predicated region
      $region45: #{udfnet_forward.4} parent=11 // pred_check
        %p500 = pneg %p335
      $region46: #{udfnet_forward.4} parent=11 // pred_check_branch
        %502 = sbr.rel (%p500) target = $region48
      $region47: #{udfnet_forward.4} parent=11 // pred_region
        _
      $region48: #{udfnet_forward.4} parent=11 // pred_fallthru
        _
      // Predicated region
      $region49: #{udfnet_forward.4} parent=11 // pred_check
        %p503 = pneg %p356
      $region50: #{udfnet_forward.4} parent=11 // pred_check_branch
        %505 = sbr.rel (%p503) target = $region52
      $region51: #{udfnet_forward.4} parent=11 // pred_region
        _
      $region52: #{udfnet_forward.4} parent=11 // pred_fallthru
        _
      // Predicated region
      $region53: #{udfnet_forward.4} parent=11 // pred_check
        %p506 = pneg %p377
      $region54: #{udfnet_forward.4} parent=11 // pred_check_branch
        %508 = sbr.rel (%p506) target = $region56
      $region55: #{udfnet_forward.4} parent=11 // pred_region
        _
      $region56: #{udfnet_forward.4} parent=11 // pred_fallthru
        _
    $region12: #{udfnet_forward.4} parent=5 // pred_fallthru
      _
    %p509 = scmp.lt.s32.totalorder %s24, 4
    // Predicated region
    $region57: #{udfnet_forward.4} parent=5 // pred_check
      %p510 = pneg %p509
    $region58: #{udfnet_forward.4} parent=5 // pred_check_branch
      %512 = sbr.rel (%p510) target = $region60
    $region59: #{udfnet_forward.4} parent=5 // pred_region
      // Predicated region
      $region61: #{udfnet_forward.4} parent=59 // pred_check
        %p513 = pneg %p58
      $region62: #{udfnet_forward.4} parent=59 // pred_check_branch
        %515 = sbr.rel (%p513) target = $region64
      $region63: #{udfnet_forward.4} parent=59 // pred_region
        %s516 = smul.u32 16, %s32
        %p517 = scmp.lt.s32.totalorder %s31, 1
        %s518 = scalar_select %p517, %s31, 1
        %p519 = scmp.lt.s32.totalorder %s516, 31
        %s520 = scalar_select %p519, %s516, 31
        %s521 = smul.addr %s518, 32
        %s522 = sadd.s32 %s520, %s521
        %s523 = smul.addr %s522, 4
        %s524 = scalar_lea.vmem %s0, %s523
        %s525 = smul.u32 16, %s32
      $region64: #{udfnet_forward.4} parent=59 // pred_fallthru
        _
      // Predicated region
      $region65: #{udfnet_forward.4} parent=59 // pred_check
        %p526 = pneg %p86
      $region66: #{udfnet_forward.4} parent=59 // pred_check_branch
        %528 = sbr.rel (%p526) target = $region68
      $region67: #{udfnet_forward.4} parent=59 // pred_region
        %s529 = smul.u32 16, %s32
        %p530 = scmp.lt.s32.totalorder %s31, 1
        %s531 = scalar_select %p530, %s31, 1
        %p532 = scmp.lt.s32.totalorder %s529, 31
        %s533 = scalar_select %p532, %s529, 31
        %s534 = smul.addr %s531, 32
        %s535 = sadd.s32 %s533, %s534
        %s536 = smul.addr %s535, 4
        %s537 = scalar_lea.vmem %s1, %s536
        %s538 = smul.u32 16, %s32
      $region68: #{udfnet_forward.4} parent=59 // pred_fallthru
        _
      // Predicated region
      $region69: #{udfnet_forward.4} parent=59 // pred_check
        %p539 = pneg %p114
      $region70: #{udfnet_forward.4} parent=59 // pred_check_branch
        %541 = sbr.rel (%p539) target = $region72
      $region71: #{udfnet_forward.4} parent=59 // pred_region
        %s542 = smul.u32 16, %s32
        %p543 = scmp.lt.s32.totalorder %s31, 1
        %s544 = scalar_select %p543, %s31, 1
        %p545 = scmp.lt.s32.totalorder %s542, 31
        %s546 = scalar_select %p545, %s542, 31
        %s547 = smul.addr %s544, 32
        %s548 = sadd.s32 %s546, %s547
        %s549 = smul.addr %s548, 4
        %s550 = scalar_lea.vmem %s2, %s549
        %s551 = smul.u32 16, %s32
      $region72: #{udfnet_forward.4} parent=59 // pred_fallthru
        _
      // Predicated region
      $region73: #{udfnet_forward.4} parent=59 // pred_check
        %p552 = pneg %p203
      $region74: #{udfnet_forward.4} parent=59 // pred_check_branch
        %554 = sbr.rel (%p552) target = $region76
      $region75: #{udfnet_forward.4} parent=59 // pred_region
        %p555 = scmp.lt.s32.totalorder %s31, 1
        %s556 = scalar_select %p555, %s31, 1
        %s557 = scalar_lea.vmem %s6, %s556
      $region76: #{udfnet_forward.4} parent=59 // pred_fallthru
        _
    $region60: #{udfnet_forward.4} parent=5 // pred_fallthru
      _
    %p558 = scmp.le.s32.totalorder 1, %s24
    %p559 = scmp.lt.s32.totalorder %s24, 5
    %p560 = pnand %p558, %p559
    %p561 = pneg %p560
    // Predicated region
    $region77: #{udfnet_forward.4} parent=5 // pred_check
      _
    $region78: #{udfnet_forward.4} parent=5 // pred_check_branch
      %563 = sbr.rel (%p560) target = $region80
    $region79: #{udfnet_forward.4} parent=5 // pred_region
      %s564 = ssub.s32 %s24, 1
      %s565 = smul.u32 16, %s34
      %p566 = scmp.lt.s32.totalorder %s33, 1
      %s567 = scalar_select %p566, %s33, 1
      %p568 = scmp.lt.s32.totalorder %s565, 31
      %s569 = scalar_select %p568, %s565, 31
      %s570 = smul.addr %s567, 32
      %s571 = sadd.s32 %s569, %s570
      %s572 = smul.addr %s571, 4
      %s573 = scalar_lea.vmem %s0, %s572
      %p574 = pneg %p64
      %p575 = pneg %p61
      %s576 = smul.u32 16, %s34
      %p577 = scmp.lt.s32.totalorder %s33, 1
      %s578 = scalar_select %p577, %s33, 1
      %p579 = scmp.lt.s32.totalorder %s576, 31
      %s580 = scalar_select %p579, %s576, 31
      %s581 = smul.addr %s578, 32
      %s582 = sadd.s32 %s580, %s581
      %s583 = smul.addr %s582, 4
      %s584 = scalar_lea.vmem %s1, %s583
      %p585 = pneg %p92
      %p586 = pneg %p89
      %s587 = smul.u32 16, %s34
      %p588 = scmp.lt.s32.totalorder %s33, 1
      %s589 = scalar_select %p588, %s33, 1
      %p590 = scmp.lt.s32.totalorder %s587, 31
      %s591 = scalar_select %p590, %s587, 31
      %s592 = smul.addr %s589, 32
      %s593 = sadd.s32 %s591, %s592
      %s594 = smul.addr %s593, 4
      %s595 = scalar_lea.vmem %s2, %s594
      %p596 = pneg %p120
      %p597 = pneg %p117
      %p598 = pneg %p141
      %p599 = pneg %p138
      %p600 = pneg %p162
      %p601 = pneg %p159
      %p602 = pneg %p183
      %p603 = pneg %p180
      %p604 = scmp.lt.s32.totalorder %s33, 1
      %s605 = scalar_select %p604, %s33, 1
      %s606 = scalar_lea.vmem %s6, %s605
      %p607 = pneg %p209
      %p608 = pneg %p206
      %p609 = pneg %p230
      %p610 = pneg %p227
      %p611 = pneg %p251
      %p612 = pneg %p248
      %p613 = pneg %p272
      %p614 = pneg %p269
      %p615 = pneg %p293
      %p616 = pneg %p290
      %p617 = pneg %p314
      %p618 = pneg %p311
      %p619 = pneg %p335
      %p620 = pneg %p332
      %p621 = pneg %p356
      %p622 = pneg %p353
      %p623 = pneg %p377
      %p624 = pneg %p374
      %p625 = pneg %p405
      %p626 = pneg %p402
      %s627 = smul.u32 16, %s34
      %p628 = scmp.lt.s32.totalorder %s33, 1
      %s629 = scalar_select %p628, %s33, 1
      %p630 = scmp.lt.s32.totalorder %s627, 31
      %s631 = scalar_select %p630, %s627, 31
      %s632 = smul.addr %s629, 32
      %s633 = sadd.s32 %s631, %s632
      %s634 = smul.addr %s633, 8
      %s635 = scalar_lea.vmem %s15, %s634
      %p636 = pneg %p433
      %p637 = pneg %p430
      %s638 = smul.u32 16, %s34
      %p639 = scmp.lt.s32.totalorder %s33, 1
      %s640 = scalar_select %p639, %s33, 1
      %p641 = scmp.lt.s32.totalorder %s638, 31
      %s642 = scalar_select %p641, %s638, 31
      %s643 = smul.addr %s640, 32
      %s644 = sadd.s32 %s642, %s643
      %s645 = smul.addr %s644, 4
      %s646 = scalar_lea.vmem %s16, %s645
      %p647 = pneg %p461
      %p648 = pneg %p458
      %p649 = scmp.lt.s32.totalorder %s33, 1
      %s650 = scalar_select %p649, %s33, 1
      %p651 = scmp.lt.s32.totalorder %s34, 1
      %s652 = scalar_select %p651, %s34, 1
      %s653 = smul.addr %s650, 2
      %s654 = sadd.s32 %s652, %s653
      %s655 = scalar_lea.vmem %s17, %s654
      %s656 = smul.u32 16, %s34
      %p657 = scmp.lt.s32.totalorder %s33, 1
      %s658 = scalar_select %p657, %s33, 1
      %p659 = scmp.lt.s32.totalorder %s656, 31
      %s660 = scalar_select %p659, %s656, 31
      %s661 = smul.addr %s658, 32
      %s662 = sadd.s32 %s660, %s661
      %s663 = smul.addr %s662, 4
      %s664 = scalar_lea.vmem %s0, %s663
      %s665 = smul.u32 16, %s34
      %s666 = smul.u32 16, %s34
      %p667 = scmp.lt.s32.totalorder %s33, 1
      %s668 = scalar_select %p667, %s33, 1
      %p669 = scmp.lt.s32.totalorder %s666, 31
      %s670 = scalar_select %p669, %s666, 31
      %s671 = smul.addr %s668, 32
      %s672 = sadd.s32 %s670, %s671
      %s673 = smul.addr %s672, 4
      %s674 = scalar_lea.vmem %s1, %s673
      %s675 = smul.u32 16, %s34
      %s676 = smul.u32 16, %s34
      %p677 = scmp.lt.s32.totalorder %s33, 1
      %s678 = scalar_select %p677, %s33, 1
      %p679 = scmp.lt.s32.totalorder %s676, 31
      %s680 = scalar_select %p679, %s676, 31
      %s681 = smul.addr %s678, 32
      %s682 = sadd.s32 %s680, %s681
      %s683 = smul.addr %s682, 4
      %s684 = scalar_lea.vmem %s2, %s683
      %s685 = smul.u32 16, %s34
      %p686 = scmp.lt.s32.totalorder %s33, 1
      %s687 = scalar_select %p686, %s33, 1
      %s688 = scalar_lea.vmem %s6, %s687
      %s689 = smul.u32 16, %s34
      %p690 = scmp.lt.s32.totalorder %s33, 1
      %s691 = scalar_select %p690, %s33, 1
      %p692 = scmp.lt.s32.totalorder %s689, 31
      %s693 = scalar_select %p692, %s689, 31
      %s694 = smul.addr %s691, 32
      %s695 = sadd.s32 %s693, %s694
      %s696 = smul.addr %s695, 8
      %s697 = scalar_lea.vmem %s15, %s696
      %s698 = smul.u32 16, %s34
      %s699 = smul.u32 16, %s34
      %p700 = scmp.lt.s32.totalorder %s33, 1
      %s701 = scalar_select %p700, %s33, 1
      %p702 = scmp.lt.s32.totalorder %s699, 31
      %s703 = scalar_select %p702, %s699, 31
      %s704 = smul.addr %s701, 32
      %s705 = sadd.s32 %s703, %s704
      %s706 = smul.addr %s705, 4
      %s707 = scalar_lea.vmem %s16, %s706
      %s708 = smul.u32 16, %s34
      %p709 = scmp.lt.s32.totalorder %s33, 1
      %s710 = scalar_select %p709, %s33, 1
      %p711 = scmp.lt.s32.totalorder %s34, 1
      %s712 = scalar_select %p711, %s34, 1
      %s713 = smul.addr %s710, 2
      %s714 = sadd.s32 %s712, %s713
      %s715 = scalar_lea.vmem %s17, %s714
      %v717 = vld [vmem:[%s664] sm:$0xf]
      %v718 = vld [vmem:[%s664 + $0x4] sm:$0xf]
      %v719 = vld [vmem:[%s664 + $0x8] sm:$0xf]
      %v720 = vld [vmem:[%s664 + $0xc] sm:$0xf]
      %v721 = vld [vmem:[%s664 + $0x10] sm:$0xf]
      %v722 = vld [vmem:[%s664 + $0x14] sm:$0xf]
      %v723 = vld [vmem:[%s664 + $0x18] sm:$0xf]
      %v724 = vld [vmem:[%s664 + $0x1c] sm:$0xf]
      %v725 = vld [vmem:[%s664 + $0x20] sm:$0xf]
      %v726 = vld [vmem:[%s664 + $0x24] sm:$0xf]
      %v727 = vld [vmem:[%s664 + $0x28] sm:$0xf]
      %v728 = vld [vmem:[%s664 + $0x2c] sm:$0xf]
      %v729 = vld [vmem:[%s664 + $0x30] sm:$0xf]
      %v730 = vld [vmem:[%s664 + $0x34] sm:$0xf]
      %v731 = vld [vmem:[%s664 + $0x38] sm:$0xf]
      %v732 = vld [vmem:[%s664 + $0x3c] sm:$0xf]
      %v733 = vld [vmem:[%s674] sm:$0xf]
      %v734 = vld [vmem:[%s674 + $0x4] sm:$0xf]
      %v735 = vld [vmem:[%s674 + $0x8] sm:$0xf]
      %v736 = vld [vmem:[%s674 + $0xc] sm:$0xf]
      %v737 = vld [vmem:[%s674 + $0x10] sm:$0xf]
      %v738 = vld [vmem:[%s674 + $0x14] sm:$0xf]
      %v739 = vld [vmem:[%s674 + $0x18] sm:$0xf]
      %v740 = vld [vmem:[%s674 + $0x1c] sm:$0xf]
      %v741 = vld [vmem:[%s674 + $0x20] sm:$0xf]
      %v742 = vld [vmem:[%s674 + $0x24] sm:$0xf]
      %v743 = vld [vmem:[%s674 + $0x28] sm:$0xf]
      %v744 = vld [vmem:[%s674 + $0x2c] sm:$0xf]
      %v745 = vld [vmem:[%s674 + $0x30] sm:$0xf]
      %v746 = vld [vmem:[%s674 + $0x34] sm:$0xf]
      %v747 = vld [vmem:[%s674 + $0x38] sm:$0xf]
      %v748 = vld [vmem:[%s674 + $0x3c] sm:$0xf]
      %v749 = vunpack.c.l.bf16 %v733
      %v750 = vunpack.c.l.bf16 %v734
      %v751 = vunpack.c.l.bf16 %v735
      %v752 = vunpack.c.l.bf16 %v736
      %v753 = vunpack.c.l.bf16 %v737
      %v754 = vunpack.c.l.bf16 %v738
      %v755 = vunpack.c.l.bf16 %v739
      %v756 = vunpack.c.l.bf16 %v740
      %v757 = vunpack.c.l.bf16 %v741
      %v758 = vunpack.c.l.bf16 %v742
      %v759 = vunpack.c.l.bf16 %v743
      %v760 = vunpack.c.l.bf16 %v744
      %v761 = vunpack.c.l.bf16 %v745
      %v762 = vunpack.c.l.bf16 %v746
      %v763 = vunpack.c.l.bf16 %v747
      %v764 = vunpack.c.l.bf16 %v748
      %v765 = vld [vmem:[%s684] sm:$0xf]
      %v766 = vld [vmem:[%s684 + $0x4] sm:$0xf]
      %v767 = vld [vmem:[%s684 + $0x8] sm:$0xf]
      %v768 = vld [vmem:[%s684 + $0xc] sm:$0xf]
      %v769 = vld [vmem:[%s684 + $0x10] sm:$0xf]
      %v770 = vld [vmem:[%s684 + $0x14] sm:$0xf]
      %v771 = vld [vmem:[%s684 + $0x18] sm:$0xf]
      %v772 = vld [vmem:[%s684 + $0x1c] sm:$0xf]
      %v773 = vld [vmem:[%s684 + $0x20] sm:$0xf]
      %v774 = vld [vmem:[%s684 + $0x24] sm:$0xf]
      %v775 = vld [vmem:[%s684 + $0x28] sm:$0xf]
      %v776 = vld [vmem:[%s684 + $0x2c] sm:$0xf]
      %v777 = vld [vmem:[%s684 + $0x30] sm:$0xf]
      %v778 = vld [vmem:[%s684 + $0x34] sm:$0xf]
      %v779 = vld [vmem:[%s684 + $0x38] sm:$0xf]
      %v780 = vld [vmem:[%s684 + $0x3c] sm:$0xf]
      %v781 = vld [vmem:[%s3] sm:$0xf]
      %v782 = vld [vmem:[%s3 + $0x4] sm:$0xf]
      %v783 = vld [vmem:[%s3 + $0x8] sm:$0xf]
      %v784 = vld [vmem:[%s3 + $0xc] sm:$0xf]
      %v785 = vld [vmem:[%s3 + $0x10] sm:$0xf]
      %v786 = vld [vmem:[%s3 + $0x14] sm:$0x7]
      %v787 = vld [vmem:[%s4] sm:$0x1]
      %789 = vset.pattern.permute.xlu0 0
      %790 = vperm.xlu0 %789, %v749
      %v791 = vpop.permute.xlu0 %790
      %794 = vset.pattern.permute.xlu0 0
      %795 = vperm.xlu0 %794, %v750
      %v796 = vpop.permute.xlu0 %795
      %799 = vset.pattern.permute.xlu0 0
      %800 = vperm.xlu0 %799, %v751
      %v801 = vpop.permute.xlu0 %800
      %804 = vset.pattern.permute.xlu0 0
      %805 = vperm.xlu0 %804, %v752
      %v806 = vpop.permute.xlu0 %805
      %809 = vset.pattern.permute.xlu0 0
      %810 = vperm.xlu0 %809, %v753
      %v811 = vpop.permute.xlu0 %810
      %814 = vset.pattern.permute.xlu0 0
      %815 = vperm.xlu0 %814, %v754
      %v816 = vpop.permute.xlu0 %815
      %819 = vset.pattern.permute.xlu0 0
      %820 = vperm.xlu0 %819, %v755
      %v821 = vpop.permute.xlu0 %820
      %824 = vset.pattern.permute.xlu0 0
      %825 = vperm.xlu0 %824, %v756
      %v826 = vpop.permute.xlu0 %825
      %829 = vset.pattern.permute.xlu0 0
      %830 = vperm.xlu0 %829, %v757
      %v831 = vpop.permute.xlu0 %830
      %834 = vset.pattern.permute.xlu0 0
      %835 = vperm.xlu0 %834, %v758
      %v836 = vpop.permute.xlu0 %835
      %839 = vset.pattern.permute.xlu0 0
      %840 = vperm.xlu0 %839, %v759
      %v841 = vpop.permute.xlu0 %840
      %844 = vset.pattern.permute.xlu0 0
      %845 = vperm.xlu0 %844, %v760
      %v846 = vpop.permute.xlu0 %845
      %849 = vset.pattern.permute.xlu0 0
      %850 = vperm.xlu0 %849, %v761
      %v851 = vpop.permute.xlu0 %850
      %854 = vset.pattern.permute.xlu0 0
      %855 = vperm.xlu0 %854, %v762
      %v856 = vpop.permute.xlu0 %855
      %859 = vset.pattern.permute.xlu0 0
      %860 = vperm.xlu0 %859, %v763
      %v861 = vpop.permute.xlu0 %860
      %864 = vset.pattern.permute.xlu0 0
      %865 = vperm.xlu0 %864, %v764
      %v866 = vpop.permute.xlu0 %865
      %v868 = vperm.slane %v787, 0
      %v869 = vmul.f32 %v791, %v868
      %v870 = vmul.f32 %v796, %v868
      %v871 = vmul.f32 %v801, %v868
      %v872 = vmul.f32 %v806, %v868
      %v873 = vmul.f32 %v811, %v868
      %v874 = vmul.f32 %v816, %v868
      %v875 = vmul.f32 %v821, %v868
      %v876 = vmul.f32 %v826, %v868
      %v877 = vmul.f32 %v831, %v868
      %v878 = vmul.f32 %v836, %v868
      %v879 = vmul.f32 %v841, %v868
      %v880 = vmul.f32 %v846, %v868
      %v881 = vmul.f32 %v851, %v868
      %v882 = vmul.f32 %v856, %v868
      %v883 = vmul.f32 %v861, %v868
      %v884 = vmul.f32 %v866, %v868
      %v901 = vunpack.c.l.b16 %v717
      %v902 = vunpack.c.l.b16 %v718
      %v903 = vunpack.c.l.b16 %v719
      %v904 = vunpack.c.l.b16 %v720
      %v905 = vunpack.c.l.b16 %v721
      %v906 = vunpack.c.l.b16 %v722
      %v907 = vunpack.c.l.b16 %v723
      %v908 = vunpack.c.l.b16 %v724
      %v909 = vunpack.c.l.b16 %v725
      %v910 = vunpack.c.l.b16 %v726
      %v911 = vunpack.c.l.b16 %v727
      %v912 = vunpack.c.l.b16 %v728
      %v913 = vunpack.c.l.b16 %v729
      %v914 = vunpack.c.l.b16 %v730
      %v915 = vunpack.c.l.b16 %v731
      %v916 = vunpack.c.l.b16 %v732
      %v917 = vpack.c.b16 %v902, %v901
      %v918 = vpack.c.b16 %v904, %v903
      %v919 = vpack.c.b16 %v906, %v905
      %v920 = vpack.c.b16 %v908, %v907
      %v921 = vpack.c.b16 %v910, %v909
      %v922 = vpack.c.b16 %v912, %v911
      %v923 = vpack.c.b16 %v914, %v913
      %v924 = vpack.c.b16 %v916, %v915
      %v931 = vunpack.c.l.b16 %v781
      %v932 = vunpack.c.l.b16 %v782
      %v933 = vunpack.c.l.b16 %v783
      %v934 = vunpack.c.l.b16 %v784
      %v935 = vunpack.c.l.b16 %v785
      %v936 = vunpack.c.l.b16 %v786
      %v937 = vpack.c.b16 %v932, %v931
      %v938 = vpack.c.b16 %v934, %v933
      %v939 = vpack.c.b16 %v936, %v935
      %vm942 = vcmask 375808
      %v944 = vsel %vm942, %v917, 0
      %v947 = vsel %vm942, %v918, 0
      %v950 = vsel %vm942, %v919, 0
      %v953 = vsel %vm942, %v920, 0
      %v956 = vsel %vm942, %v921, 0
      %v959 = vsel %vm942, %v922, 0
      %v962 = vsel %vm942, %v923, 0
      %v965 = vsel %vm942, %v924, 0
      %vm967 = vcmask 1046528
      %v969 = vsel %vm967, %v939, 0
      %971 = vmatpush.bf16.msra.mxu0 0
      %972 = vmatpush.bf16.msra.mxu0 0
      %973 = vmatpush.bf16.msra.mxu0 0
      %974 = vmatpush.bf16.msra.mxu0 0
      %975 = vmatpush.bf16.msra.mxu0 0
      %976 = vmatpush.bf16.msra.mxu0 %v969
      %977 = vmatpush.bf16.msra.mxu0 %v938
      %978 = vmatpush.bf16.msra.mxu0 %v937
      %979 = vmatmul.bf16.gmra.mxu0 %v944
      %v980 = vpop.f32.mrf.mxu0
      %v981 = vadd.f32 %v869, %v980
      %v982 = vpop.f32.mrf.mxu0
      %v983 = vadd.f32 %v870, %v982
      %984 = vmatmul.bf16.gmra.mxu0 %v947
      %v985 = vpop.f32.mrf.mxu0
      %v986 = vadd.f32 %v871, %v985
      %v987 = vpop.f32.mrf.mxu0
      %v988 = vadd.f32 %v872, %v987
      %989 = vmatmul.bf16.gmra.mxu0 %v950
      %v990 = vpop.f32.mrf.mxu0
      %v991 = vadd.f32 %v873, %v990
      %v992 = vpop.f32.mrf.mxu0
      %v993 = vadd.f32 %v874, %v992
      %994 = vmatmul.bf16.gmra.mxu0 %v953
      %v995 = vpop.f32.mrf.mxu0
      %v996 = vadd.f32 %v875, %v995
      %v997 = vpop.f32.mrf.mxu0
      %v998 = vadd.f32 %v876, %v997
      %999 = vmatmul.bf16.gmra.mxu0 %v956
      %v1000 = vpop.f32.mrf.mxu0
      %v1001 = vadd.f32 %v877, %v1000
      %v1002 = vpop.f32.mrf.mxu0
      %v1003 = vadd.f32 %v878, %v1002
      %1004 = vmatmul.bf16.gmra.mxu0 %v959
      %v1005 = vpop.f32.mrf.mxu0
      %v1006 = vadd.f32 %v879, %v1005
      %v1007 = vpop.f32.mrf.mxu0
      %v1008 = vadd.f32 %v880, %v1007
      %1009 = vmatmul.bf16.gmra.mxu0 %v962
      %v1010 = vpop.f32.mrf.mxu0
      %v1011 = vadd.f32 %v881, %v1010
      %v1012 = vpop.f32.mrf.mxu0
      %v1013 = vadd.f32 %v882, %v1012
      %1014 = vmatmul.bf16.gmra.mxu0 %v965
      %v1015 = vpop.f32.mrf.mxu0
      %v1016 = vadd.f32 %v883, %v1015
      %v1017 = vpop.f32.mrf.mxu0
      %v1018 = vadd.f32 %v884, %v1017
      %1019 = vdwg.mxu0
      %v1020 = vld [vmem:[%s4 + $0x1] sm:$0x1]
      %1021 = vset.pattern.permute.xlu0 1
      %1022 = vperm.xlu0 %1021, %v749
      %v1023 = vpop.permute.xlu0 %1022
      %1025 = vset.pattern.permute.xlu0 1
      %1026 = vperm.xlu0 %1025, %v750
      %v1027 = vpop.permute.xlu0 %1026
      %1029 = vset.pattern.permute.xlu0 1
      %1030 = vperm.xlu0 %1029, %v751
      %v1031 = vpop.permute.xlu0 %1030
      %1033 = vset.pattern.permute.xlu0 1
      %1034 = vperm.xlu0 %1033, %v752
      %v1035 = vpop.permute.xlu0 %1034
      %1037 = vset.pattern.permute.xlu0 1
      %1038 = vperm.xlu0 %1037, %v753
      %v1039 = vpop.permute.xlu0 %1038
      %1041 = vset.pattern.permute.xlu0 1
      %1042 = vperm.xlu0 %1041, %v754
      %v1043 = vpop.permute.xlu0 %1042
      %1045 = vset.pattern.permute.xlu0 1
      %1046 = vperm.xlu0 %1045, %v755
      %v1047 = vpop.permute.xlu0 %1046
      %1049 = vset.pattern.permute.xlu0 1
      %1050 = vperm.xlu0 %1049, %v756
      %v1051 = vpop.permute.xlu0 %1050
      %1053 = vset.pattern.permute.xlu0 1
      %1054 = vperm.xlu0 %1053, %v757
      %v1055 = vpop.permute.xlu0 %1054
      %1057 = vset.pattern.permute.xlu0 1
      %1058 = vperm.xlu0 %1057, %v758
      %v1059 = vpop.permute.xlu0 %1058
      %1061 = vset.pattern.permute.xlu0 1
      %1062 = vperm.xlu0 %1061, %v759
      %v1063 = vpop.permute.xlu0 %1062
      %1065 = vset.pattern.permute.xlu0 1
      %1066 = vperm.xlu0 %1065, %v760
      %v1067 = vpop.permute.xlu0 %1066
      %1069 = vset.pattern.permute.xlu0 1
      %1070 = vperm.xlu0 %1069, %v761
      %v1071 = vpop.permute.xlu0 %1070
      %1073 = vset.pattern.permute.xlu0 1
      %1074 = vperm.xlu0 %1073, %v762
      %v1075 = vpop.permute.xlu0 %1074
      %1077 = vset.pattern.permute.xlu0 1
      %1078 = vperm.xlu0 %1077, %v763
      %v1079 = vpop.permute.xlu0 %1078
      %1081 = vset.pattern.permute.xlu0 1
      %1082 = vperm.xlu0 %1081, %v764
      %v1083 = vpop.permute.xlu0 %1082
      %v1085 = vperm.slane %v1020, 0
      %v1086 = vmul.f32 %v1023, %v1085
      %v1087 = vmul.f32 %v1027, %v1085
      %v1088 = vmul.f32 %v1031, %v1085
      %v1089 = vmul.f32 %v1035, %v1085
      %v1090 = vmul.f32 %v1039, %v1085
      %v1091 = vmul.f32 %v1043, %v1085
      %v1092 = vmul.f32 %v1047, %v1085
      %v1093 = vmul.f32 %v1051, %v1085
      %v1094 = vmul.f32 %v1055, %v1085
      %v1095 = vmul.f32 %v1059, %v1085
      %v1096 = vmul.f32 %v1063, %v1085
      %v1097 = vmul.f32 %v1067, %v1085
      %v1098 = vmul.f32 %v1071, %v1085
      %v1099 = vmul.f32 %v1075, %v1085
      %v1100 = vmul.f32 %v1079, %v1085
      %v1101 = vmul.f32 %v1083, %v1085
      %v1102 = vadd.f32 %v981, %v1086
      %v1103 = vadd.f32 %v983, %v1087
      %v1104 = vadd.f32 %v986, %v1088
      %v1105 = vadd.f32 %v988, %v1089
      %v1106 = vadd.f32 %v991, %v1090
      %v1107 = vadd.f32 %v993, %v1091
      %v1108 = vadd.f32 %v996, %v1092
      %v1109 = vadd.f32 %v998, %v1093
      %v1110 = vadd.f32 %v1001, %v1094
      %v1111 = vadd.f32 %v1003, %v1095
      %v1112 = vadd.f32 %v1006, %v1096
      %v1113 = vadd.f32 %v1008, %v1097
      %v1114 = vadd.f32 %v1011, %v1098
      %v1115 = vadd.f32 %v1013, %v1099
      %v1116 = vadd.f32 %v1016, %v1100
      %v1117 = vadd.f32 %v1018, %v1101
      %v1118 = vld [vmem:[%s5] sm:$0x1]
      %v1120 = vperm.slane %v1118, 0
      %v1122 = vadd.f32 %v1102, %v1120
      %v1123 = vadd.f32 %v1103, %v1120
      %v1124 = vadd.f32 %v1104, %v1120
      %v1125 = vadd.f32 %v1105, %v1120
      %v1126 = vadd.f32 %v1106, %v1120
      %v1127 = vadd.f32 %v1107, %v1120
      %v1128 = vadd.f32 %v1108, %v1120
      %v1129 = vadd.f32 %v1109, %v1120
      %v1130 = vadd.f32 %v1110, %v1120
      %v1131 = vadd.f32 %v1111, %v1120
      %v1132 = vadd.f32 %v1112, %v1120
      %v1133 = vadd.f32 %v1113, %v1120
      %v1134 = vadd.f32 %v1114, %v1120
      %v1135 = vadd.f32 %v1115, %v1120
      %v1136 = vadd.f32 %v1116, %v1120
      %v1137 = vadd.f32 %v1117, %v1120
      %1138 = vmax.xlane.f32.xlu0 %v1122
      %v1139 = vpop.xlane.xlu0 %1138
      %1140 = vmax.xlane.f32.xlu0 %v1123
      %v1141 = vpop.xlane.xlu0 %1140
      %1142 = vmax.xlane.f32.xlu0 %v1124
      %v1143 = vpop.xlane.xlu0 %1142
      %1144 = vmax.xlane.f32.xlu0 %v1125
      %v1145 = vpop.xlane.xlu0 %1144
      %1146 = vmax.xlane.f32.xlu0 %v1126
      %v1147 = vpop.xlane.xlu0 %1146
      %1148 = vmax.xlane.f32.xlu0 %v1127
      %v1149 = vpop.xlane.xlu0 %1148
      %1150 = vmax.xlane.f32.xlu0 %v1128
      %v1151 = vpop.xlane.xlu0 %1150
      %1152 = vmax.xlane.f32.xlu0 %v1129
      %v1153 = vpop.xlane.xlu0 %1152
      %1154 = vmax.xlane.f32.xlu0 %v1130
      %v1155 = vpop.xlane.xlu0 %1154
      %1156 = vmax.xlane.f32.xlu0 %v1131
      %v1157 = vpop.xlane.xlu0 %1156
      %1158 = vmax.xlane.f32.xlu0 %v1132
      %v1159 = vpop.xlane.xlu0 %1158
      %1160 = vmax.xlane.f32.xlu0 %v1133
      %v1161 = vpop.xlane.xlu0 %1160
      %1162 = vmax.xlane.f32.xlu0 %v1134
      %v1163 = vpop.xlane.xlu0 %1162
      %1164 = vmax.xlane.f32.xlu0 %v1135
      %v1165 = vpop.xlane.xlu0 %1164
      %1166 = vmax.xlane.f32.xlu0 %v1136
      %v1167 = vpop.xlane.xlu0 %1166
      %1168 = vmax.xlane.f32.xlu0 %v1137
      %v1169 = vpop.xlane.xlu0 %1168
      %v1170 = vsub.f32 %v1122, %v1139
      %v1171 = vsub.f32 %v1123, %v1141
      %v1172 = vsub.f32 %v1124, %v1143
      %v1173 = vsub.f32 %v1125, %v1145
      %v1174 = vsub.f32 %v1126, %v1147
      %v1175 = vsub.f32 %v1127, %v1149
      %v1176 = vsub.f32 %v1128, %v1151
      %v1177 = vsub.f32 %v1129, %v1153
      %v1178 = vsub.f32 %v1130, %v1155
      %v1179 = vsub.f32 %v1131, %v1157
      %v1180 = vsub.f32 %v1132, %v1159
      %v1181 = vsub.f32 %v1133, %v1161
      %v1182 = vsub.f32 %v1134, %v1163
      %v1183 = vsub.f32 %v1135, %v1165
      %v1184 = vsub.f32 %v1136, %v1167
      %v1185 = vsub.f32 %v1137, %v1169
      %v1186 = vmul.f32 %v1170, 1.442695
      %v1187 = vpow.pop %v1186
      %v1188 = vmul.f32 %v1171, 1.442695
      %v1189 = vpow.pop %v1188
      %v1190 = vmul.f32 %v1172, 1.442695
      %v1191 = vpow.pop %v1190
      %v1192 = vmul.f32 %v1173, 1.442695
      %v1193 = vpow.pop %v1192
      %v1194 = vmul.f32 %v1174, 1.442695
      %v1195 = vpow.pop %v1194
      %v1196 = vmul.f32 %v1175, 1.442695
      %v1197 = vpow.pop %v1196
      %v1198 = vmul.f32 %v1176, 1.442695
      %v1199 = vpow.pop %v1198
      %v1200 = vmul.f32 %v1177, 1.442695
      %v1201 = vpow.pop %v1200
      %v1202 = vmul.f32 %v1178, 1.442695
      %v1203 = vpow.pop %v1202
      %v1204 = vmul.f32 %v1179, 1.442695
      %v1205 = vpow.pop %v1204
      %v1206 = vmul.f32 %v1180, 1.442695
      %v1207 = vpow.pop %v1206
      %v1208 = vmul.f32 %v1181, 1.442695
      %v1209 = vpow.pop %v1208
      %v1210 = vmul.f32 %v1182, 1.442695
      %v1211 = vpow.pop %v1210
      %v1212 = vmul.f32 %v1183, 1.442695
      %v1213 = vpow.pop %v1212
      %v1214 = vmul.f32 %v1184, 1.442695
      %v1215 = vpow.pop %v1214
      %v1216 = vmul.f32 %v1185, 1.442695
      %v1217 = vpow.pop %v1216
      %1218 = vadd.xlane.f32.xlu0 %v1187
      %v1219 = vpop.xlane.xlu0 %1218
      %1220 = vadd.xlane.f32.xlu0 %v1189
      %v1221 = vpop.xlane.xlu0 %1220
      %1222 = vadd.xlane.f32.xlu0 %v1191
      %v1223 = vpop.xlane.xlu0 %1222
      %1224 = vadd.xlane.f32.xlu0 %v1193
      %v1225 = vpop.xlane.xlu0 %1224
      %1226 = vadd.xlane.f32.xlu0 %v1195
      %v1227 = vpop.xlane.xlu0 %1226
      %1228 = vadd.xlane.f32.xlu0 %v1197
      %v1229 = vpop.xlane.xlu0 %1228
      %1230 = vadd.xlane.f32.xlu0 %v1199
      %v1231 = vpop.xlane.xlu0 %1230
      %1232 = vadd.xlane.f32.xlu0 %v1201
      %v1233 = vpop.xlane.xlu0 %1232
      %1234 = vadd.xlane.f32.xlu0 %v1203
      %v1235 = vpop.xlane.xlu0 %1234
      %1236 = vadd.xlane.f32.xlu0 %v1205
      %v1237 = vpop.xlane.xlu0 %1236
      %1238 = vadd.xlane.f32.xlu0 %v1207
      %v1239 = vpop.xlane.xlu0 %1238
      %1240 = vadd.xlane.f32.xlu0 %v1209
      %v1241 = vpop.xlane.xlu0 %1240
      %1242 = vadd.xlane.f32.xlu0 %v1211
      %v1243 = vpop.xlane.xlu0 %1242
      %1244 = vadd.xlane.f32.xlu0 %v1213
      %v1245 = vpop.xlane.xlu0 %1244
      %1246 = vadd.xlane.f32.xlu0 %v1215
      %v1247 = vpop.xlane.xlu0 %1246
      %1248 = vadd.xlane.f32.xlu0 %v1217
      %v1249 = vpop.xlane.xlu0 %1248
      %v1250 = vld [vmem:[%s688] sm:$0x1]
      %v1252 = vperm.slane %v1250, 0
      %v1254 = vmul.f32 %v1187, %v1252
      %v1255 = vmul.f32 %v1189, %v1252
      %v1256 = vmul.f32 %v1191, %v1252
      %v1257 = vmul.f32 %v1193, %v1252
      %v1258 = vmul.f32 %v1195, %v1252
      %v1259 = vmul.f32 %v1197, %v1252
      %v1260 = vmul.f32 %v1199, %v1252
      %v1261 = vmul.f32 %v1201, %v1252
      %v1262 = vmul.f32 %v1203, %v1252
      %v1263 = vmul.f32 %v1205, %v1252
      %v1264 = vmul.f32 %v1207, %v1252
      %v1265 = vmul.f32 %v1209, %v1252
      %v1266 = vmul.f32 %v1211, %v1252
      %v1267 = vmul.f32 %v1213, %v1252
      %v1268 = vmul.f32 %v1215, %v1252
      %v1269 = vmul.f32 %v1217, %v1252
      %1270 = vadd.xlane.f32.xlu0 %v1254
      %v1271 = vpop.xlane.xlu0 %1270
      %1272 = vadd.xlane.f32.xlu0 %v1255
      %v1273 = vpop.xlane.xlu0 %1272
      %1274 = vadd.xlane.f32.xlu0 %v1256
      %v1275 = vpop.xlane.xlu0 %1274
      %1276 = vadd.xlane.f32.xlu0 %v1257
      %v1277 = vpop.xlane.xlu0 %1276
      %1278 = vadd.xlane.f32.xlu0 %v1258
      %v1279 = vpop.xlane.xlu0 %1278
      %1280 = vadd.xlane.f32.xlu0 %v1259
      %v1281 = vpop.xlane.xlu0 %1280
      %1282 = vadd.xlane.f32.xlu0 %v1260
      %v1283 = vpop.xlane.xlu0 %1282
      %1284 = vadd.xlane.f32.xlu0 %v1261
      %v1285 = vpop.xlane.xlu0 %1284
      %1286 = vadd.xlane.f32.xlu0 %v1262
      %v1287 = vpop.xlane.xlu0 %1286
      %1288 = vadd.xlane.f32.xlu0 %v1263
      %v1289 = vpop.xlane.xlu0 %1288
      %1290 = vadd.xlane.f32.xlu0 %v1264
      %v1291 = vpop.xlane.xlu0 %1290
      %1292 = vadd.xlane.f32.xlu0 %v1265
      %v1293 = vpop.xlane.xlu0 %1292
      %1294 = vadd.xlane.f32.xlu0 %v1266
      %v1295 = vpop.xlane.xlu0 %1294
      %1296 = vadd.xlane.f32.xlu0 %v1267
      %v1297 = vpop.xlane.xlu0 %1296
      %1298 = vadd.xlane.f32.xlu0 %v1268
      %v1299 = vpop.xlane.xlu0 %1298
      %1300 = vadd.xlane.f32.xlu0 %v1269
      %v1301 = vpop.xlane.xlu0 %1300
      %v1302 = vrcp.pop %v1219
      %v1303 = vrcp.pop %v1221
      %v1304 = vrcp.pop %v1223
      %v1305 = vrcp.pop %v1225
      %v1306 = vrcp.pop %v1227
      %v1307 = vrcp.pop %v1229
      %v1308 = vrcp.pop %v1231
      %v1309 = vrcp.pop %v1233
      %v1310 = vrcp.pop %v1235
      %v1311 = vrcp.pop %v1237
      %v1312 = vrcp.pop %v1239
      %v1313 = vrcp.pop %v1241
      %v1314 = vrcp.pop %v1243
      %v1315 = vrcp.pop %v1245
      %v1316 = vrcp.pop %v1247
      %v1317 = vrcp.pop %v1249
      %v1318 = vmul.f32 %v1271, %v1302
      %v1319 = vmul.f32 %v1273, %v1303
      %v1320 = vmul.f32 %v1275, %v1304
      %v1321 = vmul.f32 %v1277, %v1305
      %v1322 = vmul.f32 %v1279, %v1306
      %v1323 = vmul.f32 %v1281, %v1307
      %v1324 = vmul.f32 %v1283, %v1308
      %v1325 = vmul.f32 %v1285, %v1309
      %v1326 = vmul.f32 %v1287, %v1310
      %v1327 = vmul.f32 %v1289, %v1311
      %v1328 = vmul.f32 %v1291, %v1312
      %v1329 = vmul.f32 %v1293, %v1313
      %v1330 = vmul.f32 %v1295, %v1314
      %v1331 = vmul.f32 %v1297, %v1315
      %v1332 = vmul.f32 %v1299, %v1316
      %v1333 = vmul.f32 %v1301, %v1317
      %vm1334 = vcmask 7168
      %1335 = vst.msk [vmem:[%s697] sm:$0xff] %vm1334, %v1318
      %1336 = vst.msk [vmem:[%s697 + $0x8] sm:$0xff] %vm1334, %v1319
      %1337 = vst.msk [vmem:[%s697 + $0x10] sm:$0xff] %vm1334, %v1320
      %1338 = vst.msk [vmem:[%s697 + $0x18] sm:$0xff] %vm1334, %v1321
      %1339 = vst.msk [vmem:[%s697 + $0x20] sm:$0xff] %vm1334, %v1322
      %1340 = vst.msk [vmem:[%s697 + $0x28] sm:$0xff] %vm1334, %v1323
      %1341 = vst.msk [vmem:[%s697 + $0x30] sm:$0xff] %vm1334, %v1324
      %1342 = vst.msk [vmem:[%s697 + $0x38] sm:$0xff] %vm1334, %v1325
      %1343 = vst.msk [vmem:[%s697 + $0x40] sm:$0xff] %vm1334, %v1326
      %1344 = vst.msk [vmem:[%s697 + $0x48] sm:$0xff] %vm1334, %v1327
      %1345 = vst.msk [vmem:[%s697 + $0x50] sm:$0xff] %vm1334, %v1328
      %1346 = vst.msk [vmem:[%s697 + $0x58] sm:$0xff] %vm1334, %v1329
      %1347 = vst.msk [vmem:[%s697 + $0x60] sm:$0xff] %vm1334, %v1330
      %1348 = vst.msk [vmem:[%s697 + $0x68] sm:$0xff] %vm1334, %v1331
      %1349 = vst.msk [vmem:[%s697 + $0x70] sm:$0xff] %vm1334, %v1332
      %1350 = vst.msk [vmem:[%s697 + $0x78] sm:$0xff] %vm1334, %v1333
      %v1351 = vld [vmem:[%s7] sm:$0x1]
      %v1353 = vperm.slane %v1351, 0
      %v1355 = vmul.f32 %v1318, %v1353
      %v1356 = vmul.f32 %v1319, %v1353
      %v1357 = vmul.f32 %v1320, %v1353
      %v1358 = vmul.f32 %v1321, %v1353
      %v1359 = vmul.f32 %v1322, %v1353
      %v1360 = vmul.f32 %v1323, %v1353
      %v1361 = vmul.f32 %v1324, %v1353
      %v1362 = vmul.f32 %v1325, %v1353
      %v1363 = vmul.f32 %v1326, %v1353
      %v1364 = vmul.f32 %v1327, %v1353
      %v1365 = vmul.f32 %v1328, %v1353
      %v1366 = vmul.f32 %v1329, %v1353
      %v1367 = vmul.f32 %v1330, %v1353
      %v1368 = vmul.f32 %v1331, %v1353
      %v1369 = vmul.f32 %v1332, %v1353
      %v1370 = vmul.f32 %v1333, %v1353
      %v1371 = vld [vmem:[%s8] sm:$0xf]
      %v1372 = vld [vmem:[%s8 + $0x4] sm:$0xf]
      %v1373 = vld [vmem:[%s8 + $0x8] sm:$0xf]
      %v1374 = vld [vmem:[%s8 + $0xc] sm:$0xf]
      %v1375 = vld [vmem:[%s8 + $0x10] sm:$0xf]
      %v1376 = vld [vmem:[%s8 + $0x14] sm:$0x7]
      %v1383 = vunpack.c.l.b16 %v1371
      %v1384 = vunpack.c.l.b16 %v1372
      %v1385 = vunpack.c.l.b16 %v1373
      %v1386 = vunpack.c.l.b16 %v1374
      %v1387 = vunpack.c.l.b16 %v1375
      %v1388 = vunpack.c.l.b16 %v1376
      %v1389 = vpack.c.b16 %v1384, %v1383
      %v1390 = vpack.c.b16 %v1386, %v1385
      %v1391 = vpack.c.b16 %v1388, %v1387
      %v1395 = vsel %vm967, %v1391, 0
      %1397 = vmatpush.bf16.msra.mxu0 0
      %1398 = vmatpush.bf16.msra.mxu0 0
      %1399 = vmatpush.bf16.msra.mxu0 0
      %1400 = vmatpush.bf16.msra.mxu0 0
      %1401 = vmatpush.bf16.msra.mxu0 0
      %1402 = vmatpush.bf16.msra.mxu0 %v1395
      %1403 = vmatpush.bf16.msra.mxu0 %v1390
      %1404 = vmatpush.bf16.msra.mxu0 %v1389
      %1405 = vmatmul.bf16.gmra.mxu0 %v944
      %v1406 = vpop.f32.mrf.mxu0
      %v1407 = vadd.f32 0.0, %v1406
      %v1408 = vpop.f32.mrf.mxu0
      %v1409 = vadd.f32 0.0, %v1408
      %1410 = vmatmul.bf16.gmra.mxu0 %v947
      %v1411 = vpop.f32.mrf.mxu0
      %v1412 = vadd.f32 0.0, %v1411
      %v1413 = vpop.f32.mrf.mxu0
      %v1414 = vadd.f32 0.0, %v1413
      %1415 = vmatmul.bf16.gmra.mxu0 %v950
      %v1416 = vpop.f32.mrf.mxu0
      %v1417 = vadd.f32 0.0, %v1416
      %v1418 = vpop.f32.mrf.mxu0
      %v1419 = vadd.f32 0.0, %v1418
      %1420 = vmatmul.bf16.gmra.mxu0 %v953
      %v1421 = vpop.f32.mrf.mxu0
      %v1422 = vadd.f32 0.0, %v1421
      %v1423 = vpop.f32.mrf.mxu0
      %v1424 = vadd.f32 0.0, %v1423
      %1425 = vmatmul.bf16.gmra.mxu0 %v956
      %v1426 = vpop.f32.mrf.mxu0
      %v1427 = vadd.f32 0.0, %v1426
      %v1428 = vpop.f32.mrf.mxu0
      %v1429 = vadd.f32 0.0, %v1428
      %1430 = vmatmul.bf16.gmra.mxu0 %v959
      %v1431 = vpop.f32.mrf.mxu0
      %v1432 = vadd.f32 0.0, %v1431
      %v1433 = vpop.f32.mrf.mxu0
      %v1434 = vadd.f32 0.0, %v1433
      %1435 = vmatmul.bf16.gmra.mxu0 %v962
      %v1436 = vpop.f32.mrf.mxu0
      %v1437 = vadd.f32 0.0, %v1436
      %v1438 = vpop.f32.mrf.mxu0
      %v1439 = vadd.f32 0.0, %v1438
      %1440 = vmatmul.bf16.gmra.mxu0 %v965
      %v1441 = vpop.f32.mrf.mxu0
      %v1442 = vadd.f32 0.0, %v1441
      %v1443 = vpop.f32.mrf.mxu0
      %v1444 = vadd.f32 0.0, %v1443
      %1445 = vdwg.mxu0
      %v1446 = vadd.f32 %v1355, %v1407
      %v1447 = vadd.f32 %v1356, %v1409
      %v1448 = vadd.f32 %v1357, %v1412
      %v1449 = vadd.f32 %v1358, %v1414
      %v1450 = vadd.f32 %v1359, %v1417
      %v1451 = vadd.f32 %v1360, %v1419
      %v1452 = vadd.f32 %v1361, %v1422
      %v1453 = vadd.f32 %v1362, %v1424
      %v1454 = vadd.f32 %v1363, %v1427
      %v1455 = vadd.f32 %v1364, %v1429
      %v1456 = vadd.f32 %v1365, %v1432
      %v1457 = vadd.f32 %v1366, %v1434
      %v1458 = vadd.f32 %v1367, %v1437
      %v1459 = vadd.f32 %v1368, %v1439
      %v1460 = vadd.f32 %v1369, %v1442
      %v1461 = vadd.f32 %v1370, %v1444
      %v1462 = vld [vmem:[%s9] sm:$0xf]
      %v1463 = vld [vmem:[%s9 + $0x4] sm:$0xf]
      %v1464 = vld [vmem:[%s9 + $0x8] sm:$0xf]
      %v1465 = vld [vmem:[%s9 + $0xc] sm:$0x7]
      %v1482 = vunpack.c.l.b16 %v765
      %v1483 = vunpack.c.l.b16 %v766
      %v1484 = vunpack.c.l.b16 %v767
      %v1485 = vunpack.c.l.b16 %v768
      %v1486 = vunpack.c.l.b16 %v769
      %v1487 = vunpack.c.l.b16 %v770
      %v1488 = vunpack.c.l.b16 %v771
      %v1489 = vunpack.c.l.b16 %v772
      %v1490 = vunpack.c.l.b16 %v773
      %v1491 = vunpack.c.l.b16 %v774
      %v1492 = vunpack.c.l.b16 %v775
      %v1493 = vunpack.c.l.b16 %v776
      %v1494 = vunpack.c.l.b16 %v777
      %v1495 = vunpack.c.l.b16 %v778
      %v1496 = vunpack.c.l.b16 %v779
      %v1497 = vunpack.c.l.b16 %v780
      %v1498 = vpack.c.b16 %v1483, %v1482
      %v1499 = vpack.c.b16 %v1485, %v1484
      %v1500 = vpack.c.b16 %v1487, %v1486
      %v1501 = vpack.c.b16 %v1489, %v1488
      %v1502 = vpack.c.b16 %v1491, %v1490
      %v1503 = vpack.c.b16 %v1493, %v1492
      %v1504 = vpack.c.b16 %v1495, %v1494
      %v1505 = vpack.c.b16 %v1497, %v1496
      %v1510 = vunpack.c.l.b16 %v1462
      %v1511 = vunpack.c.l.b16 %v1463
      %v1512 = vunpack.c.l.b16 %v1464
      %v1513 = vunpack.c.l.b16 %v1465
      %v1514 = vpack.c.b16 %v1511, %v1510
      %v1515 = vpack.c.b16 %v1513, %v1512
      %vm1517 = vcmask 236544
      %v1519 = vsel %vm1517, %v1498, 0
      %v1522 = vsel %vm1517, %v1499, 0
      %v1525 = vsel %vm1517, %v1500, 0
      %v1528 = vsel %vm1517, %v1501, 0
      %v1531 = vsel %vm1517, %v1502, 0
      %v1534 = vsel %vm1517, %v1503, 0
      %v1537 = vsel %vm1517, %v1504, 0
      %v1540 = vsel %vm1517, %v1505, 0
      %vm1542 = vcmask 1045504
      %v1543 = vsel %vm1542, 4294967295, 65535
      %v1544 = vsel %vm967, %v1543, 0
      %v1546 = vand.u32 %v1515, %v1544
      %1548 = vmatpush.bf16.msra.mxu0 0
      %1549 = vmatpush.bf16.msra.mxu0 0
      %1550 = vmatpush.bf16.msra.mxu0 0
      %1551 = vmatpush.bf16.msra.mxu0 0
      %1552 = vmatpush.bf16.msra.mxu0 0
      %1553 = vmatpush.bf16.msra.mxu0 0
      %1554 = vmatpush.bf16.msra.mxu0 %v1546
      %1555 = vmatpush.bf16.msra.mxu0 %v1514
      %1556 = vmatmul.bf16.gmra.mxu0 %v1519
      %v1557 = vpop.f32.mrf.mxu0
      %v1558 = vadd.f32 0.0, %v1557
      %v1559 = vpop.f32.mrf.mxu0
      %v1560 = vadd.f32 0.0, %v1559
      %1561 = vmatmul.bf16.gmra.mxu0 %v1522
      %v1562 = vpop.f32.mrf.mxu0
      %v1563 = vadd.f32 0.0, %v1562
      %v1564 = vpop.f32.mrf.mxu0
      %v1565 = vadd.f32 0.0, %v1564
      %1566 = vmatmul.bf16.gmra.mxu0 %v1525
      %v1567 = vpop.f32.mrf.mxu0
      %v1568 = vadd.f32 0.0, %v1567
      %v1569 = vpop.f32.mrf.mxu0
      %v1570 = vadd.f32 0.0, %v1569
      %1571 = vmatmul.bf16.gmra.mxu0 %v1528
      %v1572 = vpop.f32.mrf.mxu0
      %v1573 = vadd.f32 0.0, %v1572
      %v1574 = vpop.f32.mrf.mxu0
      %v1575 = vadd.f32 0.0, %v1574
      %1576 = vmatmul.bf16.gmra.mxu0 %v1531
      %v1577 = vpop.f32.mrf.mxu0
      %v1578 = vadd.f32 0.0, %v1577
      %v1579 = vpop.f32.mrf.mxu0
      %v1580 = vadd.f32 0.0, %v1579
      %1581 = vmatmul.bf16.gmra.mxu0 %v1534
      %v1582 = vpop.f32.mrf.mxu0
      %v1583 = vadd.f32 0.0, %v1582
      %v1584 = vpop.f32.mrf.mxu0
      %v1585 = vadd.f32 0.0, %v1584
      %1586 = vmatmul.bf16.gmra.mxu0 %v1537
      %v1587 = vpop.f32.mrf.mxu0
      %v1588 = vadd.f32 0.0, %v1587
      %v1589 = vpop.f32.mrf.mxu0
      %v1590 = vadd.f32 0.0, %v1589
      %1591 = vmatmul.bf16.gmra.mxu0 %v1540
      %v1592 = vpop.f32.mrf.mxu0
      %v1593 = vadd.f32 0.0, %v1592
      %v1594 = vpop.f32.mrf.mxu0
      %v1595 = vadd.f32 0.0, %v1594
      %1596 = vdwg.mxu0
      %v1597 = vadd.f32 %v1446, %v1558
      %v1598 = vadd.f32 %v1447, %v1560
      %v1599 = vadd.f32 %v1448, %v1563
      %v1600 = vadd.f32 %v1449, %v1565
      %v1601 = vadd.f32 %v1450, %v1568
      %v1602 = vadd.f32 %v1451, %v1570
      %v1603 = vadd.f32 %v1452, %v1573
      %v1604 = vadd.f32 %v1453, %v1575
      %v1605 = vadd.f32 %v1454, %v1578
      %v1606 = vadd.f32 %v1455, %v1580
      %v1607 = vadd.f32 %v1456, %v1583
      %v1608 = vadd.f32 %v1457, %v1585
      %v1609 = vadd.f32 %v1458, %v1588
      %v1610 = vadd.f32 %v1459, %v1590
      %v1611 = vadd.f32 %v1460, %v1593
      %v1612 = vadd.f32 %v1461, %v1595
      %v1613 = vld [vmem:[%s10] sm:$0x1]
      %v1615 = vperm.slane %v1613, 0
      %v1617 = vadd.f32 %v1597, %v1615
      %v1618 = vadd.f32 %v1598, %v1615
      %v1619 = vadd.f32 %v1599, %v1615
      %v1620 = vadd.f32 %v1600, %v1615
      %v1621 = vadd.f32 %v1601, %v1615
      %v1622 = vadd.f32 %v1602, %v1615
      %v1623 = vadd.f32 %v1603, %v1615
      %v1624 = vadd.f32 %v1604, %v1615
      %v1625 = vadd.f32 %v1605, %v1615
      %v1626 = vadd.f32 %v1606, %v1615
      %v1627 = vadd.f32 %v1607, %v1615
      %v1628 = vadd.f32 %v1608, %v1615
      %v1629 = vadd.f32 %v1609, %v1615
      %v1630 = vadd.f32 %v1610, %v1615
      %v1631 = vadd.f32 %v1611, %v1615
      %v1632 = vadd.f32 %v1612, %v1615
      %v1633 = vmax.f32 %v1617, 0.0
      %v1634 = vmax.f32 %v1618, 0.0
      %v1635 = vmax.f32 %v1619, 0.0
      %v1636 = vmax.f32 %v1620, 0.0
      %v1637 = vmax.f32 %v1621, 0.0
      %v1638 = vmax.f32 %v1622, 0.0
      %v1639 = vmax.f32 %v1623, 0.0
      %v1640 = vmax.f32 %v1624, 0.0
      %v1641 = vmax.f32 %v1625, 0.0
      %v1642 = vmax.f32 %v1626, 0.0
      %v1643 = vmax.f32 %v1627, 0.0
      %v1644 = vmax.f32 %v1628, 0.0
      %v1645 = vmax.f32 %v1629, 0.0
      %v1646 = vmax.f32 %v1630, 0.0
      %v1647 = vmax.f32 %v1631, 0.0
      %v1648 = vmax.f32 %v1632, 0.0
      %vm1649 = vcmask 621568
      %v1650 = vsel %vm1649, %v1633, 0.0
      %v1651 = vsel %vm1649, %v1634, 0.0
      %v1652 = vadd.f32 %v1650, %v1651
      %v1653 = vsel %vm1649, %v1635, 0.0
      %v1654 = vadd.f32 %v1652, %v1653
      %v1655 = vsel %vm1649, %v1636, 0.0
      %v1656 = vadd.f32 %v1654, %v1655
      %v1657 = vsel %vm1649, %v1637, 0.0
      %v1658 = vadd.f32 %v1656, %v1657
      %v1659 = vsel %vm1649, %v1638, 0.0
      %v1660 = vadd.f32 %v1658, %v1659
      %v1661 = vsel %vm1649, %v1639, 0.0
      %v1662 = vadd.f32 %v1660, %v1661
      %v1663 = vsel %vm1649, %v1640, 0.0
      %v1664 = vadd.f32 %v1662, %v1663
      %v1665 = vsel %vm1649, %v1641, 0.0
      %v1666 = vadd.f32 %v1664, %v1665
      %v1667 = vsel %vm1649, %v1642, 0.0
      %v1668 = vadd.f32 %v1666, %v1667
      %v1669 = vsel %vm1649, %v1643, 0.0
      %v1670 = vadd.f32 %v1668, %v1669
      %v1671 = vsel %vm1649, %v1644, 0.0
      %v1672 = vadd.f32 %v1670, %v1671
      %v1673 = vsel %vm1649, %v1645, 0.0
      %v1674 = vadd.f32 %v1672, %v1673
      %v1675 = vsel %vm1649, %v1646, 0.0
      %v1676 = vadd.f32 %v1674, %v1675
      %v1677 = vsel %vm1649, %v1647, 0.0
      %v1678 = vadd.f32 %v1676, %v1677
      %v1679 = vsel %vm1649, %v1648, 0.0
      %v1680 = vadd.f32 %v1678, %v1679
      %v1681 = vrot.slane %v1680, 4
      %v1682 = vadd.f32 %v1680, %v1681
      %v1683 = vrot.slane %v1682, 2
      %v1684 = vadd.f32 %v1682, %v1683
      %v1685 = vrot.slane %v1684, 1
      %v1686 = vadd.f32 %v1684, %v1685
      %vm1687 = vcmask 614400
      %1688 = vst.msk [vmem:[%s715] sm:$0x1] %vm1687, %v1686
      %v1689 = vld [vmem:[%s11] sm:$0x1]
      %v1691 = vperm.slane %v1689, 0
      %v1693 = vmul.f32 %v1318, %v1691
      %v1694 = vmul.f32 %v1319, %v1691
      %v1695 = vmul.f32 %v1320, %v1691
      %v1696 = vmul.f32 %v1321, %v1691
      %v1697 = vmul.f32 %v1322, %v1691
      %v1698 = vmul.f32 %v1323, %v1691
      %v1699 = vmul.f32 %v1324, %v1691
      %v1700 = vmul.f32 %v1325, %v1691
      %v1701 = vmul.f32 %v1326, %v1691
      %v1702 = vmul.f32 %v1327, %v1691
      %v1703 = vmul.f32 %v1328, %v1691
      %v1704 = vmul.f32 %v1329, %v1691
      %v1705 = vmul.f32 %v1330, %v1691
      %v1706 = vmul.f32 %v1331, %v1691
      %v1707 = vmul.f32 %v1332, %v1691
      %v1708 = vmul.f32 %v1333, %v1691
      %v1709 = vld [vmem:[%s12] sm:$0xf]
      %v1710 = vld [vmem:[%s12 + $0x4] sm:$0xf]
      %v1711 = vld [vmem:[%s12 + $0x8] sm:$0xf]
      %v1712 = vld [vmem:[%s12 + $0xc] sm:$0xf]
      %v1713 = vld [vmem:[%s12 + $0x10] sm:$0xf]
      %v1714 = vld [vmem:[%s12 + $0x14] sm:$0x7]
      %v1721 = vunpack.c.l.b16 %v1709
      %v1722 = vunpack.c.l.b16 %v1710
      %v1723 = vunpack.c.l.b16 %v1711
      %v1724 = vunpack.c.l.b16 %v1712
      %v1725 = vunpack.c.l.b16 %v1713
      %v1726 = vunpack.c.l.b16 %v1714
      %v1727 = vpack.c.b16 %v1722, %v1721
      %v1728 = vpack.c.b16 %v1724, %v1723
      %v1729 = vpack.c.b16 %v1726, %v1725
      %v1733 = vsel %vm967, %v1729, 0
      %1735 = vmatpush.bf16.msra.mxu0 0
      %1736 = vmatpush.bf16.msra.mxu0 0
      %1737 = vmatpush.bf16.msra.mxu0 0
      %1738 = vmatpush.bf16.msra.mxu0 0
      %1739 = vmatpush.bf16.msra.mxu0 0
      %1740 = vmatpush.bf16.msra.mxu0 %v1733
      %1741 = vmatpush.bf16.msra.mxu0 %v1728
      %1742 = vmatpush.bf16.msra.mxu0 %v1727
      %1743 = vmatmul.bf16.gmra.mxu0 %v944
      %v1744 = vpop.f32.mrf.mxu0
      %v1745 = vadd.f32 0.0, %v1744
      %v1746 = vpop.f32.mrf.mxu0
      %v1747 = vadd.f32 0.0, %v1746
      %1748 = vmatmul.bf16.gmra.mxu0 %v947
      %v1749 = vpop.f32.mrf.mxu0
      %v1750 = vadd.f32 0.0, %v1749
      %v1751 = vpop.f32.mrf.mxu0
      %v1752 = vadd.f32 0.0, %v1751
      %1753 = vmatmul.bf16.gmra.mxu0 %v950
      %v1754 = vpop.f32.mrf.mxu0
      %v1755 = vadd.f32 0.0, %v1754
      %v1756 = vpop.f32.mrf.mxu0
      %v1757 = vadd.f32 0.0, %v1756
      %1758 = vmatmul.bf16.gmra.mxu0 %v953
      %v1759 = vpop.f32.mrf.mxu0
      %v1760 = vadd.f32 0.0, %v1759
      %v1761 = vpop.f32.mrf.mxu0
      %v1762 = vadd.f32 0.0, %v1761
      %1763 = vmatmul.bf16.gmra.mxu0 %v956
      %v1764 = vpop.f32.mrf.mxu0
      %v1765 = vadd.f32 0.0, %v1764
      %v1766 = vpop.f32.mrf.mxu0
      %v1767 = vadd.f32 0.0, %v1766
      %1768 = vmatmul.bf16.gmra.mxu0 %v959
      %v1769 = vpop.f32.mrf.mxu0
      %v1770 = vadd.f32 0.0, %v1769
      %v1771 = vpop.f32.mrf.mxu0
      %v1772 = vadd.f32 0.0, %v1771
      %1773 = vmatmul.bf16.gmra.mxu0 %v962
      %v1774 = vpop.f32.mrf.mxu0
      %v1775 = vadd.f32 0.0, %v1774
      %v1776 = vpop.f32.mrf.mxu0
      %v1777 = vadd.f32 0.0, %v1776
      %1778 = vmatmul.bf16.gmra.mxu0 %v965
      %v1779 = vpop.f32.mrf.mxu0
      %v1780 = vadd.f32 0.0, %v1779
      %v1781 = vpop.f32.mrf.mxu0
      %v1782 = vadd.f32 0.0, %v1781
      %1783 = vdwg.mxu0
      %v1784 = vadd.f32 %v1693, %v1745
      %v1785 = vadd.f32 %v1694, %v1747
      %v1786 = vadd.f32 %v1695, %v1750
      %v1787 = vadd.f32 %v1696, %v1752
      %v1788 = vadd.f32 %v1697, %v1755
      %v1789 = vadd.f32 %v1698, %v1757
      %v1790 = vadd.f32 %v1699, %v1760
      %v1791 = vadd.f32 %v1700, %v1762
      %v1792 = vadd.f32 %v1701, %v1765
      %v1793 = vadd.f32 %v1702, %v1767
      %v1794 = vadd.f32 %v1703, %v1770
      %v1795 = vadd.f32 %v1704, %v1772
      %v1796 = vadd.f32 %v1705, %v1775
      %v1797 = vadd.f32 %v1706, %v1777
      %v1798 = vadd.f32 %v1707, %v1780
      %v1799 = vadd.f32 %v1708, %v1782
      %v1800 = vld [vmem:[%s13] sm:$0xf]
      %v1801 = vld [vmem:[%s13 + $0x4] sm:$0xf]
      %v1802 = vld [vmem:[%s13 + $0x8] sm:$0xf]
      %v1803 = vld [vmem:[%s13 + $0xc] sm:$0x7]
      %v1808 = vunpack.c.l.b16 %v1800
      %v1809 = vunpack.c.l.b16 %v1801
      %v1810 = vunpack.c.l.b16 %v1802
      %v1811 = vunpack.c.l.b16 %v1803
      %v1812 = vpack.c.b16 %v1809, %v1808
      %v1813 = vpack.c.b16 %v1811, %v1810
      %v1816 = vand.u32 %v1813, %v1544
      %1818 = vmatpush.bf16.msra.mxu0 0
      %1819 = vmatpush.bf16.msra.mxu0 0
      %1820 = vmatpush.bf16.msra.mxu0 0
      %1821 = vmatpush.bf16.msra.mxu0 0
      %1822 = vmatpush.bf16.msra.mxu0 0
      %1823 = vmatpush.bf16.msra.mxu0 0
      %1824 = vmatpush.bf16.msra.mxu0 %v1816
      %1825 = vmatpush.bf16.msra.mxu0 %v1812
      %1826 = vmatmul.bf16.gmra.mxu0 %v1519
      %v1827 = vpop.f32.mrf.mxu0
      %v1828 = vadd.f32 0.0, %v1827
      %v1829 = vpop.f32.mrf.mxu0
      %v1830 = vadd.f32 0.0, %v1829
      %1831 = vmatmul.bf16.gmra.mxu0 %v1522
      %v1832 = vpop.f32.mrf.mxu0
      %v1833 = vadd.f32 0.0, %v1832
      %v1834 = vpop.f32.mrf.mxu0
      %v1835 = vadd.f32 0.0, %v1834
      %1836 = vmatmul.bf16.gmra.mxu0 %v1525
      %v1837 = vpop.f32.mrf.mxu0
      %v1838 = vadd.f32 0.0, %v1837
      %v1839 = vpop.f32.mrf.mxu0
      %v1840 = vadd.f32 0.0, %v1839
      %1841 = vmatmul.bf16.gmra.mxu0 %v1528
      %v1842 = vpop.f32.mrf.mxu0
      %v1843 = vadd.f32 0.0, %v1842
      %v1844 = vpop.f32.mrf.mxu0
      %v1845 = vadd.f32 0.0, %v1844
      %1846 = vmatmul.bf16.gmra.mxu0 %v1531
      %v1847 = vpop.f32.mrf.mxu0
      %v1848 = vadd.f32 0.0, %v1847
      %v1849 = vpop.f32.mrf.mxu0
      %v1850 = vadd.f32 0.0, %v1849
      %1851 = vmatmul.bf16.gmra.mxu0 %v1534
      %v1852 = vpop.f32.mrf.mxu0
      %v1853 = vadd.f32 0.0, %v1852
      %v1854 = vpop.f32.mrf.mxu0
      %v1855 = vadd.f32 0.0, %v1854
      %1856 = vmatmul.bf16.gmra.mxu0 %v1537
      %v1857 = vpop.f32.mrf.mxu0
      %v1858 = vadd.f32 0.0, %v1857
      %v1859 = vpop.f32.mrf.mxu0
      %v1860 = vadd.f32 0.0, %v1859
      %1861 = vmatmul.bf16.gmra.mxu0 %v1540
      %v1862 = vpop.f32.mrf.mxu0
      %v1863 = vadd.f32 0.0, %v1862
      %v1864 = vpop.f32.mrf.mxu0
      %v1865 = vadd.f32 0.0, %v1864
      %1866 = vdwg.mxu0
      %v1867 = vadd.f32 %v1784, %v1828
      %v1868 = vadd.f32 %v1785, %v1830
      %v1869 = vadd.f32 %v1786, %v1833
      %v1870 = vadd.f32 %v1787, %v1835
      %v1871 = vadd.f32 %v1788, %v1838
      %v1872 = vadd.f32 %v1789, %v1840
      %v1873 = vadd.f32 %v1790, %v1843
      %v1874 = vadd.f32 %v1791, %v1845
      %v1875 = vadd.f32 %v1792, %v1848
      %v1876 = vadd.f32 %v1793, %v1850
      %v1877 = vadd.f32 %v1794, %v1853
      %v1878 = vadd.f32 %v1795, %v1855
      %v1879 = vadd.f32 %v1796, %v1858
      %v1880 = vadd.f32 %v1797, %v1860
      %v1881 = vadd.f32 %v1798, %v1863
      %v1882 = vadd.f32 %v1799, %v1865
      %v1883 = vld [vmem:[%s14] sm:$0x1]
      %v1885 = vperm.slane %v1883, 0
      %v1887 = vadd.f32 %v1867, %v1885
      %v1888 = vadd.f32 %v1868, %v1885
      %v1889 = vadd.f32 %v1869, %v1885
      %v1890 = vadd.f32 %v1870, %v1885
      %v1891 = vadd.f32 %v1871, %v1885
      %v1892 = vadd.f32 %v1872, %v1885
      %v1893 = vadd.f32 %v1873, %v1885
      %v1894 = vadd.f32 %v1874, %v1885
      %v1895 = vadd.f32 %v1875, %v1885
      %v1896 = vadd.f32 %v1876, %v1885
      %v1897 = vadd.f32 %v1877, %v1885
      %v1898 = vadd.f32 %v1878, %v1885
      %v1899 = vadd.f32 %v1879, %v1885
      %v1900 = vadd.f32 %v1880, %v1885
      %v1901 = vadd.f32 %v1881, %v1885
      %v1902 = vadd.f32 %v1882, %v1885
      %v1903 = vpack.c.bf16 %v1887, %v1887
      %v1904 = vpack.c.bf16 %v1888, %v1888
      %v1905 = vpack.c.bf16 %v1889, %v1889
      %v1906 = vpack.c.bf16 %v1890, %v1890
      %v1907 = vpack.c.bf16 %v1891, %v1891
      %v1908 = vpack.c.bf16 %v1892, %v1892
      %v1909 = vpack.c.bf16 %v1893, %v1893
      %v1910 = vpack.c.bf16 %v1894, %v1894
      %v1911 = vpack.c.bf16 %v1895, %v1895
      %v1912 = vpack.c.bf16 %v1896, %v1896
      %v1913 = vpack.c.bf16 %v1897, %v1897
      %v1914 = vpack.c.bf16 %v1898, %v1898
      %v1915 = vpack.c.bf16 %v1899, %v1899
      %v1916 = vpack.c.bf16 %v1900, %v1900
      %v1917 = vpack.c.bf16 %v1901, %v1901
      %v1918 = vpack.c.bf16 %v1902, %v1902
      %vm1919 = vcmask 76800
      %1920 = vst.msk [vmem:[%s707] sm:$0xf] %vm1919, %v1903
      %1921 = vst.msk [vmem:[%s707 + $0x4] sm:$0xf] %vm1919, %v1904
      %1922 = vst.msk [vmem:[%s707 + $0x8] sm:$0xf] %vm1919, %v1905
      %1923 = vst.msk [vmem:[%s707 + $0xc] sm:$0xf] %vm1919, %v1906
      %1924 = vst.msk [vmem:[%s707 + $0x10] sm:$0xf] %vm1919, %v1907
      %1925 = vst.msk [vmem:[%s707 + $0x14] sm:$0xf] %vm1919, %v1908
      %1926 = vst.msk [vmem:[%s707 + $0x18] sm:$0xf] %vm1919, %v1909
      %1927 = vst.msk [vmem:[%s707 + $0x1c] sm:$0xf] %vm1919, %v1910
      %1928 = vst.msk [vmem:[%s707 + $0x20] sm:$0xf] %vm1919, %v1911
      %1929 = vst.msk [vmem:[%s707 + $0x24] sm:$0xf] %vm1919, %v1912
      %1930 = vst.msk [vmem:[%s707 + $0x28] sm:$0xf] %vm1919, %v1913
      %1931 = vst.msk [vmem:[%s707 + $0x2c] sm:$0xf] %vm1919, %v1914
      %1932 = vst.msk [vmem:[%s707 + $0x30] sm:$0xf] %vm1919, %v1915
      %1933 = vst.msk [vmem:[%s707 + $0x34] sm:$0xf] %vm1919, %v1916
      %1934 = vst.msk [vmem:[%s707 + $0x38] sm:$0xf] %vm1919, %v1917
      %1935 = vst.msk [vmem:[%s707 + $0x3c] sm:$0xf] %vm1919, %v1918
      %s1936 = smul.u32 16, %s34
      %p1937 = scmp.lt.s32.totalorder %s33, 1
      %s1938 = scalar_select %p1937, %s33, 1
      %p1939 = scmp.lt.s32.totalorder %s1936, 31
      %s1940 = scalar_select %p1939, %s1936, 31
      %s1941 = smul.addr %s1938, 32
      %s1942 = sadd.s32 %s1940, %s1941
      %s1943 = smul.addr %s1942, 8
      %s1944 = scalar_lea.vmem %s15, %s1943
      %s1945 = smul.u32 16, %s34
      %p1946 = scmp.lt.s32.totalorder %s33, 1
      %s1947 = scalar_select %p1946, %s33, 1
      %p1948 = scmp.lt.s32.totalorder %s1945, 31
      %s1949 = scalar_select %p1948, %s1945, 31
      %s1950 = smul.addr %s1947, 32
      %s1951 = sadd.s32 %s1949, %s1950
      %s1952 = smul.addr %s1951, 4
      %s1953 = scalar_lea.vmem %s16, %s1952
      %p1954 = scmp.lt.s32.totalorder %s33, 1
      %s1955 = scalar_select %p1954, %s33, 1
      %p1956 = scmp.lt.s32.totalorder %s34, 1
      %s1957 = scalar_select %p1956, %s34, 1
      %s1958 = smul.addr %s1955, 2
      %s1959 = sadd.s32 %s1957, %s1958
      %s1960 = scalar_lea.vmem %s17, %s1959
      // Predicated region
      $region81: #{udfnet_forward.4} parent=79 // pred_check
        %p1961 = pneg %p402
      $region82: #{udfnet_forward.4} parent=79 // pred_check_branch
        %1963 = sbr.rel (%p1961) target = $region84
      $region83: #{udfnet_forward.4} parent=79 // pred_region
        %s1964 = smul.u32 16, %s34
      $region84: #{udfnet_forward.4} parent=79 // pred_fallthru
        _
      // Predicated region
      $region85: #{udfnet_forward.4} parent=79 // pred_check
        %p1965 = pneg %p430
      $region86: #{udfnet_forward.4} parent=79 // pred_check_branch
        %1967 = sbr.rel (%p1965) target = $region88
      $region87: #{udfnet_forward.4} parent=79 // pred_region
        %s1968 = smul.u32 16, %s34
      $region88: #{udfnet_forward.4} parent=79 // pred_fallthru
        _
      // Predicated region
      $region89: #{udfnet_forward.4} parent=79 // pred_check
        %p1969 = pneg %p458
      $region90: #{udfnet_forward.4} parent=79 // pred_check_branch
        %1971 = sbr.rel (%p1969) target = $region92
      $region91: #{udfnet_forward.4} parent=79 // pred_region
        _
      $region92: #{udfnet_forward.4} parent=79 // pred_fallthru
        _
    $region80: #{udfnet_forward.4} parent=5 // pred_fallthru
      _
    %p1972 = scmp.le.s32.totalorder 2, %s24
    // Predicated region
    $region93: #{udfnet_forward.4} parent=5 // pred_check
      %p1973 = pneg %p1972
    $region94: #{udfnet_forward.4} parent=5 // pred_check_branch
      %1975 = sbr.rel (%p1973) target = $region96
    $region95: #{udfnet_forward.4} parent=5 // pred_region
      %s1976 = ssub.s32 %s24, 2
      // Predicated region
      $region97: #{udfnet_forward.4} parent=95 // pred_check
        %p1977 = pneg %p408
      $region98: #{udfnet_forward.4} parent=95 // pred_check_branch
        %1979 = sbr.rel (%p1977) target = $region100
      $region99: #{udfnet_forward.4} parent=95 // pred_region
        %s1980 = smul.u32 16, %s36
        %p1981 = scmp.lt.s32.totalorder %s35, 1
        %s1982 = scalar_select %p1981, %s35, 1
        %p1983 = scmp.lt.s32.totalorder %s1980, 31
        %s1984 = scalar_select %p1983, %s1980, 31
        %s1985 = smul.addr %s1982, 32
        %s1986 = sadd.s32 %s1984, %s1985
        %s1987 = smul.addr %s1986, 8
        %s1988 = scalar_lea.vmem %s15, %s1987
      $region100: #{udfnet_forward.4} parent=95 // pred_fallthru
        _
      // Predicated region
      $region101: #{udfnet_forward.4} parent=95 // pred_check
        %p1989 = pneg %p436
      $region102: #{udfnet_forward.4} parent=95 // pred_check_branch
        %1991 = sbr.rel (%p1989) target = $region104
      $region103: #{udfnet_forward.4} parent=95 // pred_region
        %s1992 = smul.u32 16, %s36
        %p1993 = scmp.lt.s32.totalorder %s35, 1
        %s1994 = scalar_select %p1993, %s35, 1
        %p1995 = scmp.lt.s32.totalorder %s1992, 31
        %s1996 = scalar_select %p1995, %s1992, 31
        %s1997 = smul.addr %s1994, 32
        %s1998 = sadd.s32 %s1996, %s1997
        %s1999 = smul.addr %s1998, 4
        %s2000 = scalar_lea.vmem %s16, %s1999
      $region104: #{udfnet_forward.4} parent=95 // pred_fallthru
        _
      // Predicated region
      $region105: #{udfnet_forward.4} parent=95 // pred_check
        %p2001 = pneg %p464
      $region106: #{udfnet_forward.4} parent=95 // pred_check_branch
        %2003 = sbr.rel (%p2001) target = $region108
      $region107: #{udfnet_forward.4} parent=95 // pred_region
        %p2004 = scmp.lt.s32.totalorder %s35, 1
        %s2005 = scalar_select %p2004, %s35, 1
        %p2006 = scmp.lt.s32.totalorder %s36, 1
        %s2007 = scalar_select %p2006, %s36, 1
        %s2008 = smul.addr %s2005, 2
        %s2009 = sadd.s32 %s2007, %s2008
        %s2010 = scalar_lea.vmem %s17, %s2009
      $region108: #{udfnet_forward.4} parent=95 // pred_fallthru
        _
    $region96: #{udfnet_forward.4} parent=5 // pred_fallthru
      _
  $region6: #{udfnet_forward.4} parent=0 // loop_footer
    %s28 = sadd.s32 1, %s24
  $region7: #{udfnet_forward.4} parent=0 // loop_footer_branch
    %23 = sbr.rel target = $region3
  $region8: #{udfnet_forward.4} parent=0 // loop_exit
    _

// kernel: udfnet_forward.3
$region0: #{udfnet_forward.3}
  #allocation0 [shape = 'u32[]', space=smem, size = 0x4, offset = 0x4, fixed_abs, tag = 'smem constant byte address 0x4 - core index']
  #allocation1 [shape = 'u32[72,128]{1,0:T(1,128)}', space=vmem, size = 0x9000, scoped, tag = 'internal scratch']
  %s0 = inlined_call_operand.vmem [shape: bf16[2,256,12], index: 0, kind: input, shape index: {}]
  %s1 = inlined_call_operand.vmem [shape: bf16[2,256,2], index: 1, kind: input, shape index: {}]
  %s2 = inlined_call_operand.vmem [shape: bf16[12,1280], index: 2, kind: input, shape index: {}]
  %s3 = inlined_call_operand.vmem [shape: f32[1,1280], index: 3, kind: input, shape index: {}]
  %s4 = inlined_call_operand.vmem [shape: bf16[1280,46], index: 4, kind: input, shape index: {}]
  %s5 = inlined_call_operand.vmem [shape: f32[2,46], index: 5, kind: input, shape index: {}]
  %s6 = inlined_call_operand.vmem [shape: f32[1,46], index: 6, kind: input, shape index: {}]
  %s7 = inlined_call_operand.vmem [shape: bf16[46,48], index: 7, kind: input, shape index: {}]
  %s8 = inlined_call_operand.vmem [shape: f32[2,48], index: 8, kind: input, shape index: {}]
  %s9 = inlined_call_operand.vmem [shape: f32[1,48], index: 9, kind: input, shape index: {}]
  %s10 = inlined_call_operand.vmem [shape: bf16[2,256,46], index: 10, kind: output, shape index: {0}]
  %s11 = inlined_call_operand.vmem [shape: f32[2,2,1,48], index: 11, kind: output, shape index: {1}]
  %12 = xla_tuple %s10, %s11
  %s13 = sld [smem:[#allocation0]]
  $region81: #{udfnet_forward.3} parent=0
    _
  %s15 = ssub.s32 1, %s13
  %s16 = scalar_select 0, %s15, %s13
  loop: start=0, step=1, limit=6
  $region2: #{udfnet_forward.3} parent=0 // loop_pre_header
    _
  $region3: #{udfnet_forward.3} parent=0 // loop_header
    %s18 = sphi 0, %s22
    %p19 = scmp.ge.s32.totalorder %s18, 6
    %s25 = sphi 0, %s37
    %s26 = sphi 0, %s33
    %s27 = sphi 0, %s25
    %s28 = sphi 0, %s26
    %s29 = sphi 0, %s27
    %s30 = sphi 0, %s28
    %s42 = sphi 0, %s44
    %s45 = sphi 0, %s42
    %s46 = sphi 0, %s45
    %s62 = sphi 0, %s46
    %s70 = sphi 0, %s72
    %s73 = sphi 0, %s70
    %s74 = sphi 0, %s73
    %s90 = sphi 0, %s74
    %s94 = sphi 0, %s94
    %s96 = sphi 0, %s94
    %s97 = sphi 0, %s96
    %s111 = sphi 0, %s97
    %s115 = sphi 0, %s115
    %s117 = sphi 0, %s115
    %s118 = sphi 0, %s117
    %s132 = sphi 0, %s118
    %s136 = sphi 0, %s136
    %s138 = sphi 0, %s136
    %s139 = sphi 0, %s138
    %s153 = sphi 0, %s139
    %s157 = sphi 0, %s157
    %s159 = sphi 0, %s157
    %s160 = sphi 0, %s159
    %s174 = sphi 0, %s160
    %s178 = sphi 0, %s178
    %s180 = sphi 0, %s178
    %s181 = sphi 0, %s180
    %s195 = sphi 0, %s181
    %s199 = sphi 0, %s199
    %s201 = sphi 0, %s199
    %s202 = sphi 0, %s201
    %s216 = sphi 0, %s202
    %s220 = sphi 0, %s220
    %s222 = sphi 0, %s220
    %s223 = sphi 0, %s222
    %s237 = sphi 0, %s223
    %s241 = sphi 0, %s241
    %s243 = sphi 0, %s241
    %s244 = sphi 0, %s243
    %s258 = sphi 0, %s244
    %s266 = sphi 0, %s268
    %s269 = sphi 0, %s266
    %s270 = sphi 0, %s269
    %s286 = sphi 0, %s270
    %s294 = sphi 0, %s296
    %s297 = sphi 0, %s294
    %s298 = sphi 0, %s297
    %s314 = sphi 0, %s298
  $region4: #{udfnet_forward.3} parent=0 // loop_header_branch
    %21 = sbr.rel (%p19) target = $region8
  $region5: #{udfnet_forward.3} parent=0 // loop_body
    %s23 = ssub.s32 %s18, 1
    %s24 = ssub.s32 %s18, 2
    %s31 = sadd.s32 1, %s26
    %p32 = scmp.ge.s32.totalorder %s31, 2
    %s33 = scalar_select %p32, 0, %s31
    %s34 = sadd.s32 1, %s25
    %s35 = scalar_select %p32, %s34, %s25
    %p36 = scmp.ge.s32.totalorder %s35, 2
    %s37 = scalar_select %p36, 0, %s35
    %s38 = ssub.s32 %s25, %s37
    %s39 = ssub.s32 %s26, %s33
    %s40 = sor.u32 %s38, %s39
    %p41 = scmp.eq.s32.totalorder %s40, 0
    %s43 = sadd.s32 %s42, 1
    %s44 = scalar_select %p41, %s42, %s43
    %p47 = pneg %p41
    %p48 = scmp.eq.s32.totalorder %s18, 3
    %p49 = por %p47, %p48
    %p50 = scmp.ne.s32.totalorder %s42, %s45
    %p51 = scmp.eq.s32.totalorder %s18, 0
    %p52 = por %p50, %p51
    %p53 = scmp.ne.s32.totalorder %s42, %s45
    %p54 = scmp.eq.s32.totalorder %s23, 3
    %p55 = por %p53, %p54
    %p56 = scmp.ne.s32.totalorder %s45, %s46
    %p57 = scmp.eq.s32.totalorder %s23, 0
    %p58 = por %p56, %p57
    %p59 = scmp.ne.s32.totalorder %s45, %s46
    %p60 = scmp.eq.s32.totalorder %s24, 3
    %p61 = por %p59, %p60
    %p63 = scmp.ne.s32.totalorder %s46, %s62
    %p64 = scmp.eq.s32.totalorder %s24, 0
    %p65 = por %p63, %p64
    %s66 = ssub.s32 %s25, %s37
    %s67 = ssub.s32 %s26, %s33
    %s68 = sor.u32 %s66, %s67
    %p69 = scmp.eq.s32.totalorder %s68, 0
    %s71 = sadd.s32 %s70, 1
    %s72 = scalar_select %p69, %s70, %s71
    %p75 = pneg %p69
    %p76 = scmp.eq.s32.totalorder %s18, 3
    %p77 = por %p75, %p76
    %p78 = scmp.ne.s32.totalorder %s70, %s73
    %p79 = scmp.eq.s32.totalorder %s18, 0
    %p80 = por %p78, %p79
    %p81 = scmp.ne.s32.totalorder %s70, %s73
    %p82 = scmp.eq.s32.totalorder %s23, 3
    %p83 = por %p81, %p82
    %p84 = scmp.ne.s32.totalorder %s73, %s74
    %p85 = scmp.eq.s32.totalorder %s23, 0
    %p86 = por %p84, %p85
    %p87 = scmp.ne.s32.totalorder %s73, %s74
    %p88 = scmp.eq.s32.totalorder %s24, 3
    %p89 = por %p87, %p88
    %p91 = scmp.ne.s32.totalorder %s74, %s90
    %p92 = scmp.eq.s32.totalorder %s24, 0
    %p93 = por %p91, %p92
    %s95 = sadd.s32 %s94, 1
    %p98 = scmp.eq.s32.totalorder %s18, 3
    %p99 = scmp.ne.s32.totalorder %s94, %s96
    %p100 = scmp.eq.s32.totalorder %s18, 0
    %p101 = por %p99, %p100
    %p102 = scmp.ne.s32.totalorder %s94, %s96
    %p103 = scmp.eq.s32.totalorder %s23, 3
    %p104 = por %p102, %p103
    %p105 = scmp.ne.s32.totalorder %s96, %s97
    %p106 = scmp.eq.s32.totalorder %s23, 0
    %p107 = por %p105, %p106
    %p108 = scmp.ne.s32.totalorder %s96, %s97
    %p109 = scmp.eq.s32.totalorder %s24, 3
    %p110 = por %p108, %p109
    %p112 = scmp.ne.s32.totalorder %s97, %s111
    %p113 = scmp.eq.s32.totalorder %s24, 0
    %p114 = por %p112, %p113
    %s116 = sadd.s32 %s115, 1
    %p119 = scmp.eq.s32.totalorder %s18, 3
    %p120 = scmp.ne.s32.totalorder %s115, %s117
    %p121 = scmp.eq.s32.totalorder %s18, 0
    %p122 = por %p120, %p121
    %p123 = scmp.ne.s32.totalorder %s115, %s117
    %p124 = scmp.eq.s32.totalorder %s23, 3
    %p125 = por %p123, %p124
    %p126 = scmp.ne.s32.totalorder %s117, %s118
    %p127 = scmp.eq.s32.totalorder %s23, 0
    %p128 = por %p126, %p127
    %p129 = scmp.ne.s32.totalorder %s117, %s118
    %p130 = scmp.eq.s32.totalorder %s24, 3
    %p131 = por %p129, %p130
    %p133 = scmp.ne.s32.totalorder %s118, %s132
    %p134 = scmp.eq.s32.totalorder %s24, 0
    %p135 = por %p133, %p134
    %s137 = sadd.s32 %s136, 1
    %p140 = scmp.eq.s32.totalorder %s18, 3
    %p141 = scmp.ne.s32.totalorder %s136, %s138
    %p142 = scmp.eq.s32.totalorder %s18, 0
    %p143 = por %p141, %p142
    %p144 = scmp.ne.s32.totalorder %s136, %s138
    %p145 = scmp.eq.s32.totalorder %s23, 3
    %p146 = por %p144, %p145
    %p147 = scmp.ne.s32.totalorder %s138, %s139
    %p148 = scmp.eq.s32.totalorder %s23, 0
    %p149 = por %p147, %p148
    %p150 = scmp.ne.s32.totalorder %s138, %s139
    %p151 = scmp.eq.s32.totalorder %s24, 3
    %p152 = por %p150, %p151
    %p154 = scmp.ne.s32.totalorder %s139, %s153
    %p155 = scmp.eq.s32.totalorder %s24, 0
    %p156 = por %p154, %p155
    %s158 = sadd.s32 %s157, 1
    %p161 = scmp.eq.s32.totalorder %s18, 3
    %p162 = scmp.ne.s32.totalorder %s157, %s159
    %p163 = scmp.eq.s32.totalorder %s18, 0
    %p164 = por %p162, %p163
    %p165 = scmp.ne.s32.totalorder %s157, %s159
    %p166 = scmp.eq.s32.totalorder %s23, 3
    %p167 = por %p165, %p166
    %p168 = scmp.ne.s32.totalorder %s159, %s160
    %p169 = scmp.eq.s32.totalorder %s23, 0
    %p170 = por %p168, %p169
    %p171 = scmp.ne.s32.totalorder %s159, %s160
    %p172 = scmp.eq.s32.totalorder %s24, 3
    %p173 = por %p171, %p172
    %p175 = scmp.ne.s32.totalorder %s160, %s174
    %p176 = scmp.eq.s32.totalorder %s24, 0
    %p177 = por %p175, %p176
    %s179 = sadd.s32 %s178, 1
    %p182 = scmp.eq.s32.totalorder %s18, 3
    %p183 = scmp.ne.s32.totalorder %s178, %s180
    %p184 = scmp.eq.s32.totalorder %s18, 0
    %p185 = por %p183, %p184
    %p186 = scmp.ne.s32.totalorder %s178, %s180
    %p187 = scmp.eq.s32.totalorder %s23, 3
    %p188 = por %p186, %p187
    %p189 = scmp.ne.s32.totalorder %s180, %s181
    %p190 = scmp.eq.s32.totalorder %s23, 0
    %p191 = por %p189, %p190
    %p192 = scmp.ne.s32.totalorder %s180, %s181
    %p193 = scmp.eq.s32.totalorder %s24, 3
    %p194 = por %p192, %p193
    %p196 = scmp.ne.s32.totalorder %s181, %s195
    %p197 = scmp.eq.s32.totalorder %s24, 0
    %p198 = por %p196, %p197
    %s200 = sadd.s32 %s199, 1
    %p203 = scmp.eq.s32.totalorder %s18, 3
    %p204 = scmp.ne.s32.totalorder %s199, %s201
    %p205 = scmp.eq.s32.totalorder %s18, 0
    %p206 = por %p204, %p205
    %p207 = scmp.ne.s32.totalorder %s199, %s201
    %p208 = scmp.eq.s32.totalorder %s23, 3
    %p209 = por %p207, %p208
    %p210 = scmp.ne.s32.totalorder %s201, %s202
    %p211 = scmp.eq.s32.totalorder %s23, 0
    %p212 = por %p210, %p211
    %p213 = scmp.ne.s32.totalorder %s201, %s202
    %p214 = scmp.eq.s32.totalorder %s24, 3
    %p215 = por %p213, %p214
    %p217 = scmp.ne.s32.totalorder %s202, %s216
    %p218 = scmp.eq.s32.totalorder %s24, 0
    %p219 = por %p217, %p218
    %s221 = sadd.s32 %s220, 1
    %p224 = scmp.eq.s32.totalorder %s18, 3
    %p225 = scmp.ne.s32.totalorder %s220, %s222
    %p226 = scmp.eq.s32.totalorder %s18, 0
    %p227 = por %p225, %p226
    %p228 = scmp.ne.s32.totalorder %s220, %s222
    %p229 = scmp.eq.s32.totalorder %s23, 3
    %p230 = por %p228, %p229
    %p231 = scmp.ne.s32.totalorder %s222, %s223
    %p232 = scmp.eq.s32.totalorder %s23, 0
    %p233 = por %p231, %p232
    %p234 = scmp.ne.s32.totalorder %s222, %s223
    %p235 = scmp.eq.s32.totalorder %s24, 3
    %p236 = por %p234, %p235
    %p238 = scmp.ne.s32.totalorder %s223, %s237
    %p239 = scmp.eq.s32.totalorder %s24, 0
    %p240 = por %p238, %p239
    %s242 = sadd.s32 %s241, 1
    %p245 = scmp.eq.s32.totalorder %s18, 3
    %p246 = scmp.ne.s32.totalorder %s241, %s243
    %p247 = scmp.eq.s32.totalorder %s18, 0
    %p248 = por %p246, %p247
    %p249 = scmp.ne.s32.totalorder %s241, %s243
    %p250 = scmp.eq.s32.totalorder %s23, 3
    %p251 = por %p249, %p250
    %p252 = scmp.ne.s32.totalorder %s243, %s244
    %p253 = scmp.eq.s32.totalorder %s23, 0
    %p254 = por %p252, %p253
    %p255 = scmp.ne.s32.totalorder %s243, %s244
    %p256 = scmp.eq.s32.totalorder %s24, 3
    %p257 = por %p255, %p256
    %p259 = scmp.ne.s32.totalorder %s244, %s258
    %p260 = scmp.eq.s32.totalorder %s24, 0
    %p261 = por %p259, %p260
    %s262 = ssub.s32 %s25, %s37
    %s263 = ssub.s32 %s26, %s33
    %s264 = sor.u32 %s262, %s263
    %p265 = scmp.eq.s32.totalorder %s264, 0
    %s267 = sadd.s32 %s266, 1
    %s268 = scalar_select %p265, %s266, %s267
    %p271 = pneg %p265
    %p272 = scmp.eq.s32.totalorder %s18, 3
    %p273 = por %p271, %p272
    %p274 = scmp.ne.s32.totalorder %s266, %s269
    %p275 = scmp.eq.s32.totalorder %s18, 0
    %p276 = por %p274, %p275
    %p277 = scmp.ne.s32.totalorder %s266, %s269
    %p278 = scmp.eq.s32.totalorder %s23, 3
    %p279 = por %p277, %p278
    %p280 = scmp.ne.s32.totalorder %s269, %s270
    %p281 = scmp.eq.s32.totalorder %s23, 0
    %p282 = por %p280, %p281
    %p283 = scmp.ne.s32.totalorder %s269, %s270
    %p284 = scmp.eq.s32.totalorder %s24, 3
    %p285 = por %p283, %p284
    %p287 = scmp.ne.s32.totalorder %s270, %s286
    %p288 = scmp.eq.s32.totalorder %s24, 0
    %p289 = por %p287, %p288
    %s290 = ssub.s32 %s25, %s37
    %s291 = ssub.s32 %s26, %s33
    %s292 = sor.u32 %s290, %s291
    %p293 = scmp.eq.s32.totalorder %s292, 0
    %s295 = sadd.s32 %s294, 1
    %s296 = scalar_select %p293, %s294, %s295
    %p299 = pneg %p293
    %p300 = scmp.eq.s32.totalorder %s18, 3
    %p301 = por %p299, %p300
    %p302 = scmp.ne.s32.totalorder %s294, %s297
    %p303 = scmp.eq.s32.totalorder %s18, 0
    %p304 = por %p302, %p303
    %p305 = scmp.ne.s32.totalorder %s294, %s297
    %p306 = scmp.eq.s32.totalorder %s23, 3
    %p307 = por %p305, %p306
    %p308 = scmp.ne.s32.totalorder %s297, %s298
    %p309 = scmp.eq.s32.totalorder %s23, 0
    %p310 = por %p308, %p309
    %p311 = scmp.ne.s32.totalorder %s297, %s298
    %p312 = scmp.eq.s32.totalorder %s24, 3
    %p313 = por %p311, %p312
    %p315 = scmp.ne.s32.totalorder %s298, %s314
    %p316 = scmp.eq.s32.totalorder %s24, 0
    %p317 = por %p315, %p316
    %p318 = scmp.le.s32.totalorder 1, %s18
    %p319 = scmp.lt.s32.totalorder %s18, 5
    %p320 = pnand %p318, %p319
    %p321 = pneg %p320
    // Predicated region
    $region9: #{udfnet_forward.3} parent=5 // pred_check
      _
    $region10: #{udfnet_forward.3} parent=5 // pred_check_branch
      %323 = sbr.rel (%p320) target = $region12
    $region11: #{udfnet_forward.3} parent=5 // pred_region
      %s324 = ssub.s32 %s18, 1
      // Predicated region
      $region13: #{udfnet_forward.3} parent=11 // pred_check
        %p325 = pneg %p107
      $region14: #{udfnet_forward.3} parent=11 // pred_check_branch
        %327 = sbr.rel (%p325) target = $region16
      $region15: #{udfnet_forward.3} parent=11 // pred_region
        _
      $region16: #{udfnet_forward.3} parent=11 // pred_fallthru
        _
      // Predicated region
      $region17: #{udfnet_forward.3} parent=11 // pred_check
        %p328 = pneg %p128
      $region18: #{udfnet_forward.3} parent=11 // pred_check_branch
        %330 = sbr.rel (%p328) target = $region20
      $region19: #{udfnet_forward.3} parent=11 // pred_region
        _
      $region20: #{udfnet_forward.3} parent=11 // pred_fallthru
        _
      // Predicated region
      $region21: #{udfnet_forward.3} parent=11 // pred_check
        %p331 = pneg %p149
      $region22: #{udfnet_forward.3} parent=11 // pred_check_branch
        %333 = sbr.rel (%p331) target = $region24
      $region23: #{udfnet_forward.3} parent=11 // pred_region
        _
      $region24: #{udfnet_forward.3} parent=11 // pred_fallthru
        _
      // Predicated region
      $region25: #{udfnet_forward.3} parent=11 // pred_check
        %p334 = pneg %p170
      $region26: #{udfnet_forward.3} parent=11 // pred_check_branch
        %336 = sbr.rel (%p334) target = $region28
      $region27: #{udfnet_forward.3} parent=11 // pred_region
        _
      $region28: #{udfnet_forward.3} parent=11 // pred_fallthru
        _
      // Predicated region
      $region29: #{udfnet_forward.3} parent=11 // pred_check
        %p337 = pneg %p191
      $region30: #{udfnet_forward.3} parent=11 // pred_check_branch
        %339 = sbr.rel (%p337) target = $region32
      $region31: #{udfnet_forward.3} parent=11 // pred_region
        _
      $region32: #{udfnet_forward.3} parent=11 // pred_fallthru
        _
      // Predicated region
      $region33: #{udfnet_forward.3} parent=11 // pred_check
        %p340 = pneg %p212
      $region34: #{udfnet_forward.3} parent=11 // pred_check_branch
        %342 = sbr.rel (%p340) target = $region36
      $region35: #{udfnet_forward.3} parent=11 // pred_region
        _
      $region36: #{udfnet_forward.3} parent=11 // pred_fallthru
        _
      // Predicated region
      $region37: #{udfnet_forward.3} parent=11 // pred_check
        %p343 = pneg %p233
      $region38: #{udfnet_forward.3} parent=11 // pred_check_branch
        %345 = sbr.rel (%p343) target = $region40
      $region39: #{udfnet_forward.3} parent=11 // pred_region
        _
      $region40: #{udfnet_forward.3} parent=11 // pred_fallthru
        _
      // Predicated region
      $region41: #{udfnet_forward.3} parent=11 // pred_check
        %p346 = pneg %p254
      $region42: #{udfnet_forward.3} parent=11 // pred_check_branch
        %348 = sbr.rel (%p346) target = $region44
      $region43: #{udfnet_forward.3} parent=11 // pred_region
        _
      $region44: #{udfnet_forward.3} parent=11 // pred_fallthru
        _
    $region12: #{udfnet_forward.3} parent=5 // pred_fallthru
      _
    %p349 = scmp.lt.s32.totalorder %s18, 4
    // Predicated region
    $region45: #{udfnet_forward.3} parent=5 // pred_check
      %p350 = pneg %p349
    $region46: #{udfnet_forward.3} parent=5 // pred_check_branch
      %352 = sbr.rel (%p350) target = $region48
    $region47: #{udfnet_forward.3} parent=5 // pred_region
      // Predicated region
      $region49: #{udfnet_forward.3} parent=47 // pred_check
        %p353 = pneg %p52
      $region50: #{udfnet_forward.3} parent=47 // pred_check_branch
        %355 = sbr.rel (%p353) target = $region52
      $region51: #{udfnet_forward.3} parent=47 // pred_region
        %s356 = smul.u32 16, %s26
        %p357 = scmp.lt.s32.totalorder %s25, 1
        %s358 = scalar_select %p357, %s25, 1
        %p359 = scmp.lt.s32.totalorder %s356, 31
        %s360 = scalar_select %p359, %s356, 31
        %s361 = smul.addr %s358, 32
        %s362 = sadd.s32 %s360, %s361
        %s363 = smul.addr %s362, 4
        %s364 = scalar_lea.vmem %s0, %s363
        %s365 = smul.u32 16, %s26
      $region52: #{udfnet_forward.3} parent=47 // pred_fallthru
        _
      // Predicated region
      $region53: #{udfnet_forward.3} parent=47 // pred_check
        %p366 = pneg %p80
      $region54: #{udfnet_forward.3} parent=47 // pred_check_branch
        %368 = sbr.rel (%p366) target = $region56
      $region55: #{udfnet_forward.3} parent=47 // pred_region
        %s369 = smul.u32 16, %s26
        %p370 = scmp.lt.s32.totalorder %s25, 1
        %s371 = scalar_select %p370, %s25, 1
        %p372 = scmp.lt.s32.totalorder %s369, 31
        %s373 = scalar_select %p372, %s369, 31
        %s374 = smul.addr %s371, 32
        %s375 = sadd.s32 %s373, %s374
        %s376 = smul.addr %s375, 4
        %s377 = scalar_lea.vmem %s1, %s376
        %s378 = smul.u32 16, %s26
      $region56: #{udfnet_forward.3} parent=47 // pred_fallthru
        _
    $region48: #{udfnet_forward.3} parent=5 // pred_fallthru
      _
    %p379 = scmp.le.s32.totalorder 1, %s18
    %p380 = scmp.lt.s32.totalorder %s18, 5
    %p381 = pnand %p379, %p380
    %p382 = pneg %p381
    // Predicated region
    $region57: #{udfnet_forward.3} parent=5 // pred_check
      _
    $region58: #{udfnet_forward.3} parent=5 // pred_check_branch
      %384 = sbr.rel (%p381) target = $region60
    $region59: #{udfnet_forward.3} parent=5 // pred_region
      %s385 = ssub.s32 %s18, 1
      %s386 = smul.u32 16, %s28
      %p387 = scmp.lt.s32.totalorder %s27, 1
      %s388 = scalar_select %p387, %s27, 1
      %p389 = scmp.lt.s32.totalorder %s386, 31
      %s390 = scalar_select %p389, %s386, 31
      %s391 = smul.addr %s388, 32
      %s392 = sadd.s32 %s390, %s391
      %s393 = smul.addr %s392, 4
      %s394 = scalar_lea.vmem %s0, %s393
      %p395 = pneg %p58
      %p396 = pneg %p55
      %s397 = smul.u32 16, %s28
      %p398 = scmp.lt.s32.totalorder %s27, 1
      %s399 = scalar_select %p398, %s27, 1
      %p400 = scmp.lt.s32.totalorder %s397, 31
      %s401 = scalar_select %p400, %s397, 31
      %s402 = smul.addr %s399, 32
      %s403 = sadd.s32 %s401, %s402
      %s404 = smul.addr %s403, 4
      %s405 = scalar_lea.vmem %s1, %s404
      %p406 = pneg %p86
      %p407 = pneg %p83
      %p408 = pneg %p107
      %p409 = pneg %p104
      %p410 = pneg %p128
      %p411 = pneg %p125
      %p412 = pneg %p149
      %p413 = pneg %p146
      %p414 = pneg %p170
      %p415 = pneg %p167
      %p416 = pneg %p191
      %p417 = pneg %p188
      %p418 = pneg %p212
      %p419 = pneg %p209
      %p420 = pneg %p233
      %p421 = pneg %p230
      %p422 = pneg %p254
      %p423 = pneg %p251
      %p424 = pneg %p282
      %p425 = pneg %p279
      %s426 = smul.u32 16, %s28
      %p427 = scmp.lt.s32.totalorder %s27, 1
      %s428 = scalar_select %p427, %s27, 1
      %p429 = scmp.lt.s32.totalorder %s426, 31
      %s430 = scalar_select %p429, %s426, 31
      %s431 = smul.addr %s428, 32
      %s432 = sadd.s32 %s430, %s431
      %s433 = smul.addr %s432, 4
      %s434 = scalar_lea.vmem %s10, %s433
      %p435 = pneg %p310
      %p436 = pneg %p307
      %p437 = scmp.lt.s32.totalorder %s27, 1
      %s438 = scalar_select %p437, %s27, 1
      %p439 = scmp.lt.s32.totalorder %s28, 1
      %s440 = scalar_select %p439, %s28, 1
      %s441 = smul.addr %s438, 2
      %s442 = sadd.s32 %s440, %s441
      %s443 = scalar_lea.vmem %s11, %s442
      %s444 = smul.u32 16, %s28
      %p445 = scmp.lt.s32.totalorder %s27, 1
      %s446 = scalar_select %p445, %s27, 1
      %p447 = scmp.lt.s32.totalorder %s444, 31
      %s448 = scalar_select %p447, %s444, 31
      %s449 = smul.addr %s446, 32
      %s450 = sadd.s32 %s448, %s449
      %s451 = smul.addr %s450, 4
      %s452 = scalar_lea.vmem %s0, %s451
      %s453 = smul.u32 16, %s28
      %s454 = smul.u32 16, %s28
      %p455 = scmp.lt.s32.totalorder %s27, 1
      %s456 = scalar_select %p455, %s27, 1
      %p457 = scmp.lt.s32.totalorder %s454, 31
      %s458 = scalar_select %p457, %s454, 31
      %s459 = smul.addr %s456, 32
      %s460 = sadd.s32 %s458, %s459
      %s461 = smul.addr %s460, 4
      %s462 = scalar_lea.vmem %s1, %s461
      %s463 = smul.u32 16, %s28
      %s464 = smul.u32 16, %s28
      %p465 = scmp.lt.s32.totalorder %s27, 1
      %s466 = scalar_select %p465, %s27, 1
      %p467 = scmp.lt.s32.totalorder %s464, 31
      %s468 = scalar_select %p467, %s464, 31
      %s469 = smul.addr %s466, 32
      %s470 = sadd.s32 %s468, %s469
      %s471 = smul.addr %s470, 4
      %s472 = scalar_lea.vmem %s10, %s471
      %s473 = smul.u32 16, %s28
      %p474 = scmp.lt.s32.totalorder %s27, 1
      %s475 = scalar_select %p474, %s27, 1
      %p476 = scmp.lt.s32.totalorder %s28, 1
      %s477 = scalar_select %p476, %s28, 1
      %s478 = smul.addr %s475, 2
      %s479 = sadd.s32 %s477, %s478
      %s480 = scalar_lea.vmem %s11, %s479
      %v482 = vld [vmem:[%s452] sm:$0xf]
      %v483 = vld [vmem:[%s452 + $0x4] sm:$0xf]
      %v484 = vld [vmem:[%s452 + $0x8] sm:$0xf]
      %v485 = vld [vmem:[%s452 + $0xc] sm:$0xf]
      %v486 = vld [vmem:[%s452 + $0x10] sm:$0xf]
      %v487 = vld [vmem:[%s452 + $0x14] sm:$0xf]
      %v488 = vld [vmem:[%s452 + $0x18] sm:$0xf]
      %v489 = vld [vmem:[%s452 + $0x1c] sm:$0xf]
      %v490 = vld [vmem:[%s452 + $0x20] sm:$0xf]
      %v491 = vld [vmem:[%s452 + $0x24] sm:$0xf]
      %v492 = vld [vmem:[%s452 + $0x28] sm:$0xf]
      %v493 = vld [vmem:[%s452 + $0x2c] sm:$0xf]
      %v494 = vld [vmem:[%s452 + $0x30] sm:$0xf]
      %v495 = vld [vmem:[%s452 + $0x34] sm:$0xf]
      %v496 = vld [vmem:[%s452 + $0x38] sm:$0xf]
      %v497 = vld [vmem:[%s452 + $0x3c] sm:$0xf]
      %v498 = vld [vmem:[%s462] sm:$0xf]
      %v499 = vld [vmem:[%s462 + $0x4] sm:$0xf]
      %v500 = vld [vmem:[%s462 + $0x8] sm:$0xf]
      %v501 = vld [vmem:[%s462 + $0xc] sm:$0xf]
      %v502 = vld [vmem:[%s462 + $0x10] sm:$0xf]
      %v503 = vld [vmem:[%s462 + $0x14] sm:$0xf]
      %v504 = vld [vmem:[%s462 + $0x18] sm:$0xf]
      %v505 = vld [vmem:[%s462 + $0x1c] sm:$0xf]
      %v506 = vld [vmem:[%s462 + $0x20] sm:$0xf]
      %v507 = vld [vmem:[%s462 + $0x24] sm:$0xf]
      %v508 = vld [vmem:[%s462 + $0x28] sm:$0xf]
      %v509 = vld [vmem:[%s462 + $0x2c] sm:$0xf]
      %v510 = vld [vmem:[%s462 + $0x30] sm:$0xf]
      %v511 = vld [vmem:[%s462 + $0x34] sm:$0xf]
      %v512 = vld [vmem:[%s462 + $0x38] sm:$0xf]
      %v513 = vld [vmem:[%s462 + $0x3c] sm:$0xf]
      %v514 = vunpack.c.l.bf16 %v498
      %v515 = vunpack.c.l.bf16 %v499
      %v516 = vunpack.c.l.bf16 %v500
      %v517 = vunpack.c.l.bf16 %v501
      %v518 = vunpack.c.l.bf16 %v502
      %v519 = vunpack.c.l.bf16 %v503
      %v520 = vunpack.c.l.bf16 %v504
      %v521 = vunpack.c.l.bf16 %v505
      %v522 = vunpack.c.l.bf16 %v506
      %v523 = vunpack.c.l.bf16 %v507
      %v524 = vunpack.c.l.bf16 %v508
      %v525 = vunpack.c.l.bf16 %v509
      %v526 = vunpack.c.l.bf16 %v510
      %v527 = vunpack.c.l.bf16 %v511
      %v528 = vunpack.c.l.bf16 %v512
      %v529 = vunpack.c.l.bf16 %v513
      %v530 = vld [vmem:[%s5] sm:$0x1]
      %532 = vset.pattern.permute.xlu0 0
      %533 = vperm.xlu0 %532, %v514
      %v534 = vpop.permute.xlu0 %533
      %537 = vset.pattern.permute.xlu0 0
      %538 = vperm.xlu0 %537, %v515
      %v539 = vpop.permute.xlu0 %538
      %542 = vset.pattern.permute.xlu0 0
      %543 = vperm.xlu0 %542, %v516
      %v544 = vpop.permute.xlu0 %543
      %547 = vset.pattern.permute.xlu0 0
      %548 = vperm.xlu0 %547, %v517
      %v549 = vpop.permute.xlu0 %548
      %552 = vset.pattern.permute.xlu0 0
      %553 = vperm.xlu0 %552, %v518
      %v554 = vpop.permute.xlu0 %553
      %557 = vset.pattern.permute.xlu0 0
      %558 = vperm.xlu0 %557, %v519
      %v559 = vpop.permute.xlu0 %558
      %562 = vset.pattern.permute.xlu0 0
      %563 = vperm.xlu0 %562, %v520
      %v564 = vpop.permute.xlu0 %563
      %567 = vset.pattern.permute.xlu0 0
      %568 = vperm.xlu0 %567, %v521
      %v569 = vpop.permute.xlu0 %568
      %572 = vset.pattern.permute.xlu0 0
      %573 = vperm.xlu0 %572, %v522
      %v574 = vpop.permute.xlu0 %573
      %577 = vset.pattern.permute.xlu0 0
      %578 = vperm.xlu0 %577, %v523
      %v579 = vpop.permute.xlu0 %578
      %582 = vset.pattern.permute.xlu0 0
      %583 = vperm.xlu0 %582, %v524
      %v584 = vpop.permute.xlu0 %583
      %587 = vset.pattern.permute.xlu0 0
      %588 = vperm.xlu0 %587, %v525
      %v589 = vpop.permute.xlu0 %588
      %592 = vset.pattern.permute.xlu0 0
      %593 = vperm.xlu0 %592, %v526
      %v594 = vpop.permute.xlu0 %593
      %597 = vset.pattern.permute.xlu0 0
      %598 = vperm.xlu0 %597, %v527
      %v599 = vpop.permute.xlu0 %598
      %602 = vset.pattern.permute.xlu0 0
      %603 = vperm.xlu0 %602, %v528
      %v604 = vpop.permute.xlu0 %603
      %607 = vset.pattern.permute.xlu0 0
      %608 = vperm.xlu0 %607, %v529
      %v609 = vpop.permute.xlu0 %608
      %v611 = vperm.slane %v530, 0
      %v612 = vmul.f32 %v534, %v611
      %v613 = vmul.f32 %v539, %v611
      %v614 = vmul.f32 %v544, %v611
      %v615 = vmul.f32 %v549, %v611
      %v616 = vmul.f32 %v554, %v611
      %v617 = vmul.f32 %v559, %v611
      %v618 = vmul.f32 %v564, %v611
      %v619 = vmul.f32 %v569, %v611
      %v620 = vmul.f32 %v574, %v611
      %v621 = vmul.f32 %v579, %v611
      %v622 = vmul.f32 %v584, %v611
      %v623 = vmul.f32 %v589, %v611
      %v624 = vmul.f32 %v594, %v611
      %v625 = vmul.f32 %v599, %v611
      %v626 = vmul.f32 %v604, %v611
      %v627 = vmul.f32 %v609, %v611
      %v628 = vld [vmem:[%s5 + $0x1] sm:$0x1]
      %629 = vset.pattern.permute.xlu0 1
      %630 = vperm.xlu0 %629, %v514
      %v631 = vpop.permute.xlu0 %630
      %633 = vset.pattern.permute.xlu0 1
      %634 = vperm.xlu0 %633, %v515
      %v635 = vpop.permute.xlu0 %634
      %637 = vset.pattern.permute.xlu0 1
      %638 = vperm.xlu0 %637, %v516
      %v639 = vpop.permute.xlu0 %638
      %641 = vset.pattern.permute.xlu0 1
      %642 = vperm.xlu0 %641, %v517
      %v643 = vpop.permute.xlu0 %642
      %645 = vset.pattern.permute.xlu0 1
      %646 = vperm.xlu0 %645, %v518
      %v647 = vpop.permute.xlu0 %646
      %649 = vset.pattern.permute.xlu0 1
      %650 = vperm.xlu0 %649, %v519
      %v651 = vpop.permute.xlu0 %650
      %653 = vset.pattern.permute.xlu0 1
      %654 = vperm.xlu0 %653, %v520
      %v655 = vpop.permute.xlu0 %654
      %657 = vset.pattern.permute.xlu0 1
      %658 = vperm.xlu0 %657, %v521
      %v659 = vpop.permute.xlu0 %658
      %661 = vset.pattern.permute.xlu0 1
      %662 = vperm.xlu0 %661, %v522
      %v663 = vpop.permute.xlu0 %662
      %665 = vset.pattern.permute.xlu0 1
      %666 = vperm.xlu0 %665, %v523
      %v667 = vpop.permute.xlu0 %666
      %669 = vset.pattern.permute.xlu0 1
      %670 = vperm.xlu0 %669, %v524
      %v671 = vpop.permute.xlu0 %670
      %673 = vset.pattern.permute.xlu0 1
      %674 = vperm.xlu0 %673, %v525
      %v675 = vpop.permute.xlu0 %674
      %677 = vset.pattern.permute.xlu0 1
      %678 = vperm.xlu0 %677, %v526
      %v679 = vpop.permute.xlu0 %678
      %681 = vset.pattern.permute.xlu0 1
      %682 = vperm.xlu0 %681, %v527
      %v683 = vpop.permute.xlu0 %682
      %685 = vset.pattern.permute.xlu0 1
      %686 = vperm.xlu0 %685, %v528
      %v687 = vpop.permute.xlu0 %686
      %689 = vset.pattern.permute.xlu0 1
      %690 = vperm.xlu0 %689, %v529
      %v691 = vpop.permute.xlu0 %690
      %v693 = vperm.slane %v628, 0
      %v694 = vmul.f32 %v631, %v693
      %v695 = vmul.f32 %v635, %v693
      %v696 = vmul.f32 %v639, %v693
      %v697 = vmul.f32 %v643, %v693
      %v698 = vmul.f32 %v647, %v693
      %v699 = vmul.f32 %v651, %v693
      %v700 = vmul.f32 %v655, %v693
      %v701 = vmul.f32 %v659, %v693
      %v702 = vmul.f32 %v663, %v693
      %v703 = vmul.f32 %v667, %v693
      %v704 = vmul.f32 %v671, %v693
      %v705 = vmul.f32 %v675, %v693
      %v706 = vmul.f32 %v679, %v693
      %v707 = vmul.f32 %v683, %v693
      %v708 = vmul.f32 %v687, %v693
      %v709 = vmul.f32 %v691, %v693
      %v710 = vadd.f32 %v612, %v694
      %v711 = vadd.f32 %v613, %v695
      %v712 = vadd.f32 %v614, %v696
      %v713 = vadd.f32 %v615, %v697
      %v714 = vadd.f32 %v616, %v698
      %v715 = vadd.f32 %v617, %v699
      %v716 = vadd.f32 %v618, %v700
      %v717 = vadd.f32 %v619, %v701
      %v718 = vadd.f32 %v620, %v702
      %v719 = vadd.f32 %v621, %v703
      %v720 = vadd.f32 %v622, %v704
      %v721 = vadd.f32 %v623, %v705
      %v722 = vadd.f32 %v624, %v706
      %v723 = vadd.f32 %v625, %v707
      %v724 = vadd.f32 %v626, %v708
      %v725 = vadd.f32 %v627, %v709
      %v726 = vld [vmem:[%s6] sm:$0x1]
      %v728 = vperm.slane %v726, 0
      %v730 = vadd.f32 %v710, %v728
      %v731 = vadd.f32 %v711, %v728
      %v732 = vadd.f32 %v712, %v728
      %v733 = vadd.f32 %v713, %v728
      %v734 = vadd.f32 %v714, %v728
      %v735 = vadd.f32 %v715, %v728
      %v736 = vadd.f32 %v716, %v728
      %v737 = vadd.f32 %v717, %v728
      %v738 = vadd.f32 %v718, %v728
      %v739 = vadd.f32 %v719, %v728
      %v740 = vadd.f32 %v720, %v728
      %v741 = vadd.f32 %v721, %v728
      %v742 = vadd.f32 %v722, %v728
      %v743 = vadd.f32 %v723, %v728
      %v744 = vadd.f32 %v724, %v728
      %v745 = vadd.f32 %v725, %v728
      %v746 = vld [vmem:[%s2] sm:$0xff]
      %v747 = vld [vmem:[%s2 + $0x28] sm:$0x33]
      %v748 = vld [vmem:[%s3] sm:$0x3]
      %v750 = vperm.slane %v748, 0
      %v751 = vperm.slane %v748, 1
      %v770 = vunpack.c.l.b16 %v482
      %v771 = vunpack.c.l.b16 %v483
      %v772 = vunpack.c.l.b16 %v484
      %v773 = vunpack.c.l.b16 %v485
      %v774 = vunpack.c.l.b16 %v486
      %v775 = vunpack.c.l.b16 %v487
      %v776 = vunpack.c.l.b16 %v488
      %v777 = vunpack.c.l.b16 %v489
      %v778 = vunpack.c.l.b16 %v490
      %v779 = vunpack.c.l.b16 %v491
      %v780 = vunpack.c.l.b16 %v492
      %v781 = vunpack.c.l.b16 %v493
      %v782 = vunpack.c.l.b16 %v494
      %v783 = vunpack.c.l.b16 %v495
      %v784 = vunpack.c.l.b16 %v496
      %v785 = vunpack.c.l.b16 %v497
      %v786 = vpack.c.b16 %v771, %v770
      %v787 = vpack.c.b16 %v773, %v772
      %v788 = vpack.c.b16 %v775, %v774
      %v789 = vpack.c.b16 %v777, %v776
      %v790 = vpack.c.b16 %v779, %v778
      %v791 = vpack.c.b16 %v781, %v780
      %v792 = vpack.c.b16 %v783, %v782
      %v793 = vpack.c.b16 %v785, %v784
      %v796 = vunpack.c.l.b16 %v746
      %v797 = vunpack.c.h.b16 %v746
      %v798 = vunpack.c.l.b16 %v747
      %v799 = vunpack.c.h.b16 %v747
      %v800 = vpack.c.b16 %v798, %v796
      %v801 = vpack.c.b16 %v799, %v797
      %vm802 = vcmask 97280
      %v804 = vsel %vm802, %v786, 0
      %v807 = vsel %vm802, %v787, 0
      %v810 = vsel %vm802, %v788, 0
      %v813 = vsel %vm802, %v789, 0
      %v816 = vsel %vm802, %v790, 0
      %v819 = vsel %vm802, %v791, 0
      %v822 = vsel %vm802, %v792, 0
      %v825 = vsel %vm802, %v793, 0
      %vm827 = vcmask 1045504
      %v829 = vsel %vm827, %v800, 0
      %v832 = vsel %vm827, %v801, 0
      %834 = vmatpush.bf16.msra.mxu0 0
      %835 = vmatpush.bf16.msra.mxu0 0
      %836 = vmatpush.bf16.msra.mxu0 0
      %837 = vmatpush.bf16.msra.mxu0 0
      %838 = vmatpush.bf16.msra.mxu0 0
      %839 = vmatpush.bf16.msra.mxu0 0
      %840 = vmatpush.bf16.msra.mxu0 0
      %841 = vmatpush.bf16.msra.mxu0 %v829
      %842 = vmatmul.bf16.gmra.mxu0 %v804
      %v843 = vpop.f32.mrf.mxu0
      %v844 = vadd.f32 %v750, %v843
      %v845 = vpop.f32.mrf.mxu0
      %v846 = vadd.f32 %v750, %v845
      %847 = vmatmul.bf16.gmra.mxu0 %v807
      %v848 = vpop.f32.mrf.mxu0
      %v849 = vadd.f32 %v750, %v848
      %v850 = vpop.f32.mrf.mxu0
      %v851 = vadd.f32 %v750, %v850
      %852 = vmatmul.bf16.gmra.mxu0 %v810
      %v853 = vpop.f32.mrf.mxu0
      %v854 = vadd.f32 %v750, %v853
      %v855 = vpop.f32.mrf.mxu0
      %v856 = vadd.f32 %v750, %v855
      %857 = vmatmul.bf16.gmra.mxu0 %v813
      %v858 = vpop.f32.mrf.mxu0
      %v859 = vadd.f32 %v750, %v858
      %v860 = vpop.f32.mrf.mxu0
      %v861 = vadd.f32 %v750, %v860
      %862 = vmatmul.bf16.gmra.mxu0 %v816
      %v863 = vpop.f32.mrf.mxu0
      %v864 = vadd.f32 %v750, %v863
      %v865 = vpop.f32.mrf.mxu0
      %v866 = vadd.f32 %v750, %v865
      %867 = vmatmul.bf16.gmra.mxu0 %v819
      %v868 = vpop.f32.mrf.mxu0
      %v869 = vadd.f32 %v750, %v868
      %v870 = vpop.f32.mrf.mxu0
      %v871 = vadd.f32 %v750, %v870
      %872 = vmatmul.bf16.gmra.mxu0 %v822
      %v873 = vpop.f32.mrf.mxu0
      %v874 = vadd.f32 %v750, %v873
      %v875 = vpop.f32.mrf.mxu0
      %v876 = vadd.f32 %v750, %v875
      %877 = vmatmul.bf16.gmra.mxu0 %v825
      %v878 = vpop.f32.mrf.mxu0
      %v879 = vadd.f32 %v750, %v878
      %v880 = vpop.f32.mrf.mxu0
      %v881 = vadd.f32 %v750, %v880
      %882 = vdwg.mxu0
      %883 = vmatpush.bf16.msra.mxu0 0
      %884 = vmatpush.bf16.msra.mxu0 0
      %885 = vmatpush.bf16.msra.mxu0 0
      %886 = vmatpush.bf16.msra.mxu0 0
      %887 = vmatpush.bf16.msra.mxu0 0
      %888 = vmatpush.bf16.msra.mxu0 0
      %889 = vmatpush.bf16.msra.mxu0 0
      %890 = vmatpush.bf16.msra.mxu0 %v832
      %891 = vmatmul.bf16.gmra.mxu0 %v804
      %v892 = vpop.f32.mrf.mxu0
      %v893 = vadd.f32 %v751, %v892
      %v894 = vpop.f32.mrf.mxu0
      %v895 = vadd.f32 %v751, %v894
      %896 = vmatmul.bf16.gmra.mxu0 %v807
      %v897 = vpop.f32.mrf.mxu0
      %v898 = vadd.f32 %v751, %v897
      %v899 = vpop.f32.mrf.mxu0
      %v900 = vadd.f32 %v751, %v899
      %901 = vmatmul.bf16.gmra.mxu0 %v810
      %v902 = vpop.f32.mrf.mxu0
      %v903 = vadd.f32 %v751, %v902
      %v904 = vpop.f32.mrf.mxu0
      %v905 = vadd.f32 %v751, %v904
      %906 = vmatmul.bf16.gmra.mxu0 %v813
      %v907 = vpop.f32.mrf.mxu0
      %v908 = vadd.f32 %v751, %v907
      %v909 = vpop.f32.mrf.mxu0
      %v910 = vadd.f32 %v751, %v909
      %911 = vmatmul.bf16.gmra.mxu0 %v816
      %v912 = vpop.f32.mrf.mxu0
      %v913 = vadd.f32 %v751, %v912
      %v914 = vpop.f32.mrf.mxu0
      %v915 = vadd.f32 %v751, %v914
      %916 = vmatmul.bf16.gmra.mxu0 %v819
      %v917 = vpop.f32.mrf.mxu0
      %v918 = vadd.f32 %v751, %v917
      %v919 = vpop.f32.mrf.mxu0
      %v920 = vadd.f32 %v751, %v919
      %921 = vmatmul.bf16.gmra.mxu0 %v822
      %v922 = vpop.f32.mrf.mxu0
      %v923 = vadd.f32 %v751, %v922
      %v924 = vpop.f32.mrf.mxu0
      %v925 = vadd.f32 %v751, %v924
      %926 = vmatmul.bf16.gmra.mxu0 %v825
      %v927 = vpop.f32.mrf.mxu0
      %v928 = vadd.f32 %v751, %v927
      %v929 = vpop.f32.mrf.mxu0
      %v930 = vadd.f32 %v751, %v929
      %931 = vdwg.mxu0
      %v932 = vmax.f32 %v844, 0.0
      %v933 = vmax.f32 %v893, 0.0
      %v934 = vmax.f32 %v846, 0.0
      %v935 = vmax.f32 %v895, 0.0
      %v936 = vmax.f32 %v849, 0.0
      %v937 = vmax.f32 %v898, 0.0
      %v938 = vmax.f32 %v851, 0.0
      %v939 = vmax.f32 %v900, 0.0
      %v940 = vmax.f32 %v854, 0.0
      %v941 = vmax.f32 %v903, 0.0
      %v942 = vmax.f32 %v856, 0.0
      %v943 = vmax.f32 %v905, 0.0
      %v944 = vmax.f32 %v859, 0.0
      %v945 = vmax.f32 %v908, 0.0
      %v946 = vmax.f32 %v861, 0.0
      %v947 = vmax.f32 %v910, 0.0
      %v948 = vmax.f32 %v864, 0.0
      %v949 = vmax.f32 %v913, 0.0
      %v950 = vmax.f32 %v866, 0.0
      %v951 = vmax.f32 %v915, 0.0
      %v952 = vmax.f32 %v869, 0.0
      %v953 = vmax.f32 %v918, 0.0
      %v954 = vmax.f32 %v871, 0.0
      %v955 = vmax.f32 %v920, 0.0
      %v956 = vmax.f32 %v874, 0.0
      %v957 = vmax.f32 %v923, 0.0
      %v958 = vmax.f32 %v876, 0.0
      %v959 = vmax.f32 %v925, 0.0
      %v960 = vmax.f32 %v879, 0.0
      %v961 = vmax.f32 %v928, 0.0
      %v962 = vmax.f32 %v881, 0.0
      %v963 = vmax.f32 %v930, 0.0
      %v964 = vpack.c.bf16 %v934, %v932
      %v965 = vpack.c.bf16 %v935, %v933
      %v966 = vpack.c.bf16 %v938, %v936
      %v967 = vpack.c.bf16 %v939, %v937
      %v968 = vpack.c.bf16 %v942, %v940
      %v969 = vpack.c.bf16 %v943, %v941
      %v970 = vpack.c.bf16 %v946, %v944
      %v971 = vpack.c.bf16 %v947, %v945
      %v972 = vpack.c.bf16 %v950, %v948
      %v973 = vpack.c.bf16 %v951, %v949
      %v974 = vpack.c.bf16 %v954, %v952
      %v975 = vpack.c.bf16 %v955, %v953
      %v976 = vpack.c.bf16 %v958, %v956
      %v977 = vpack.c.bf16 %v959, %v957
      %v978 = vpack.c.bf16 %v962, %v960
      %v979 = vpack.c.bf16 %v963, %v961
      %v980 = vld [vmem:[%s4] sm:$0xf]
      %v981 = vld [vmem:[%s4 + $0x4] sm:$0xf]
      %v982 = vld [vmem:[%s4 + $0x8] sm:$0xf]
      %v983 = vld [vmem:[%s4 + $0xc] sm:$0xf]
      %v984 = vld [vmem:[%s4 + $0x10] sm:$0xf]
      %v985 = vld [vmem:[%s4 + $0x14] sm:$0xf]
      %v986 = vld [vmem:[%s4 + $0x18] sm:$0xf]
      %v987 = vld [vmem:[%s4 + $0x1c] sm:$0xf]
      %v988 = vld [vmem:[%s4 + $0x20] sm:$0xf]
      %v989 = vld [vmem:[%s4 + $0x24] sm:$0xf]
      %v990 = vld [vmem:[%s4 + $0x28] sm:$0xf]
      %v991 = vld [vmem:[%s4 + $0x2c] sm:$0xf]
      %v992 = vld [vmem:[%s4 + $0x30] sm:$0xf]
      %v993 = vld [vmem:[%s4 + $0x34] sm:$0xf]
      %v994 = vld [vmem:[%s4 + $0x38] sm:$0xf]
      %v995 = vld [vmem:[%s4 + $0x3c] sm:$0xf]
      %v996 = vld [vmem:[%s4 + $0x40] sm:$0xf]
      %v997 = vld [vmem:[%s4 + $0x44] sm:$0xf]
      %v998 = vld [vmem:[%s4 + $0x48] sm:$0xf]
      %v999 = vld [vmem:[%s4 + $0x4c] sm:$0xf]
      %v1000 = vld [vmem:[%s4 + $0x50] sm:$0xf]
      %v1001 = vld [vmem:[%s4 + $0x54] sm:$0xf]
      %v1002 = vld [vmem:[%s4 + $0x58] sm:$0xf]
      %v1003 = vld [vmem:[%s4 + $0x5c] sm:$0xf]
      %v1004 = vld [vmem:[%s4 + $0x60] sm:$0xf]
      %v1005 = vld [vmem:[%s4 + $0x64] sm:$0xf]
      %v1006 = vld [vmem:[%s4 + $0x68] sm:$0xf]
      %v1007 = vld [vmem:[%s4 + $0x6c] sm:$0xf]
      %v1008 = vld [vmem:[%s4 + $0x70] sm:$0xf]
      %v1009 = vld [vmem:[%s4 + $0x74] sm:$0xf]
      %v1010 = vld [vmem:[%s4 + $0x78] sm:$0xf]
      %v1011 = vld [vmem:[%s4 + $0x7c] sm:$0xf]
      %v1044 = vunpack.c.l.b16 %v980
      %v1045 = vunpack.c.l.b16 %v981
      %v1046 = vunpack.c.l.b16 %v982
      %v1047 = vunpack.c.l.b16 %v983
      %v1048 = vunpack.c.l.b16 %v984
      %v1049 = vunpack.c.l.b16 %v985
      %v1050 = vunpack.c.l.b16 %v986
      %v1051 = vunpack.c.l.b16 %v987
      %v1052 = vunpack.c.l.b16 %v988
      %v1053 = vunpack.c.l.b16 %v989
      %v1054 = vunpack.c.l.b16 %v990
      %v1055 = vunpack.c.l.b16 %v991
      %v1056 = vunpack.c.l.b16 %v992
      %v1057 = vunpack.c.l.b16 %v993
      %v1058 = vunpack.c.l.b16 %v994
      %v1059 = vunpack.c.l.b16 %v995
      %v1060 = vunpack.c.l.b16 %v996
      %v1061 = vunpack.c.l.b16 %v997
      %v1062 = vunpack.c.l.b16 %v998
      %v1063 = vunpack.c.l.b16 %v999
      %v1064 = vunpack.c.l.b16 %v1000
      %v1065 = vunpack.c.l.b16 %v1001
      %v1066 = vunpack.c.l.b16 %v1002
      %v1067 = vunpack.c.l.b16 %v1003
      %v1068 = vunpack.c.l.b16 %v1004
      %v1069 = vunpack.c.l.b16 %v1005
      %v1070 = vunpack.c.l.b16 %v1006
      %v1071 = vunpack.c.l.b16 %v1007
      %v1072 = vunpack.c.l.b16 %v1008
      %v1073 = vunpack.c.l.b16 %v1009
      %v1074 = vunpack.c.l.b16 %v1010
      %v1075 = vunpack.c.l.b16 %v1011
      %v1076 = vpack.c.b16 %v1045, %v1044
      %v1077 = vpack.c.b16 %v1047, %v1046
      %v1078 = vpack.c.b16 %v1049, %v1048
      %v1079 = vpack.c.b16 %v1051, %v1050
      %v1080 = vpack.c.b16 %v1053, %v1052
      %v1081 = vpack.c.b16 %v1055, %v1054
      %v1082 = vpack.c.b16 %v1057, %v1056
      %v1083 = vpack.c.b16 %v1059, %v1058
      %v1084 = vpack.c.b16 %v1061, %v1060
      %v1085 = vpack.c.b16 %v1063, %v1062
      %v1086 = vpack.c.b16 %v1065, %v1064
      %v1087 = vpack.c.b16 %v1067, %v1066
      %v1088 = vpack.c.b16 %v1069, %v1068
      %v1089 = vpack.c.b16 %v1071, %v1070
      %v1090 = vpack.c.b16 %v1073, %v1072
      %v1091 = vpack.c.b16 %v1075, %v1074
      %1108 = vmatpush.bf16.msra.mxu0 %v1083
      %1109 = vmatpush.bf16.msra.mxu0 %v1082
      %1110 = vmatpush.bf16.msra.mxu0 %v1081
      %1111 = vmatpush.bf16.msra.mxu0 %v1080
      %1112 = vmatpush.bf16.msra.mxu0 %v1079
      %1113 = vmatpush.bf16.msra.mxu0 %v1078
      %1114 = vmatpush.bf16.msra.mxu0 %v1077
      %1115 = vmatpush.bf16.msra.mxu0 %v1076
      %1116 = vmatmul.bf16.gmra.mxu0 %v964
      %v1117 = vpop.f32.mrf.mxu0
      %v1118 = vadd.f32 0.0, %v1117
      %v1119 = vpop.f32.mrf.mxu0
      %v1120 = vadd.f32 0.0, %v1119
      %1121 = vmatmul.bf16.gmra.mxu0 %v966
      %v1122 = vpop.f32.mrf.mxu0
      %v1123 = vadd.f32 0.0, %v1122
      %v1124 = vpop.f32.mrf.mxu0
      %v1125 = vadd.f32 0.0, %v1124
      %1126 = vmatmul.bf16.gmra.mxu0 %v968
      %v1127 = vpop.f32.mrf.mxu0
      %v1128 = vadd.f32 0.0, %v1127
      %v1129 = vpop.f32.mrf.mxu0
      %v1130 = vadd.f32 0.0, %v1129
      %1131 = vmatmul.bf16.gmra.mxu0 %v970
      %v1132 = vpop.f32.mrf.mxu0
      %v1133 = vadd.f32 0.0, %v1132
      %v1134 = vpop.f32.mrf.mxu0
      %v1135 = vadd.f32 0.0, %v1134
      %1136 = vmatmul.bf16.gmra.mxu0 %v972
      %v1137 = vpop.f32.mrf.mxu0
      %v1138 = vadd.f32 0.0, %v1137
      %v1139 = vpop.f32.mrf.mxu0
      %v1140 = vadd.f32 0.0, %v1139
      %1141 = vmatmul.bf16.gmra.mxu0 %v974
      %v1142 = vpop.f32.mrf.mxu0
      %v1143 = vadd.f32 0.0, %v1142
      %v1144 = vpop.f32.mrf.mxu0
      %v1145 = vadd.f32 0.0, %v1144
      %1146 = vmatmul.bf16.gmra.mxu0 %v976
      %v1147 = vpop.f32.mrf.mxu0
      %v1148 = vadd.f32 0.0, %v1147
      %v1149 = vpop.f32.mrf.mxu0
      %v1150 = vadd.f32 0.0, %v1149
      %1151 = vmatmul.bf16.gmra.mxu0 %v978
      %v1152 = vpop.f32.mrf.mxu0
      %v1153 = vadd.f32 0.0, %v1152
      %v1154 = vpop.f32.mrf.mxu0
      %v1155 = vadd.f32 0.0, %v1154
      %1156 = vdwg.mxu0
      %1157 = vmatpush.bf16.msra.mxu0 %v1091
      %1158 = vmatpush.bf16.msra.mxu0 %v1090
      %1159 = vmatpush.bf16.msra.mxu0 %v1089
      %1160 = vmatpush.bf16.msra.mxu0 %v1088
      %1161 = vmatpush.bf16.msra.mxu0 %v1087
      %1162 = vmatpush.bf16.msra.mxu0 %v1086
      %1163 = vmatpush.bf16.msra.mxu0 %v1085
      %1164 = vmatpush.bf16.msra.mxu0 %v1084
      %1165 = vmatmul.bf16.gmra.mxu0 %v965
      %v1166 = vpop.f32.mrf.mxu0
      %v1167 = vadd.f32 %v1118, %v1166
      %v1168 = vpop.f32.mrf.mxu0
      %v1169 = vadd.f32 %v1120, %v1168
      %1170 = vmatmul.bf16.gmra.mxu0 %v967
      %v1171 = vpop.f32.mrf.mxu0
      %v1172 = vadd.f32 %v1123, %v1171
      %v1173 = vpop.f32.mrf.mxu0
      %v1174 = vadd.f32 %v1125, %v1173
      %1175 = vmatmul.bf16.gmra.mxu0 %v969
      %v1176 = vpop.f32.mrf.mxu0
      %v1177 = vadd.f32 %v1128, %v1176
      %v1178 = vpop.f32.mrf.mxu0
      %v1179 = vadd.f32 %v1130, %v1178
      %1180 = vmatmul.bf16.gmra.mxu0 %v971
      %v1181 = vpop.f32.mrf.mxu0
      %v1182 = vadd.f32 %v1133, %v1181
      %v1183 = vpop.f32.mrf.mxu0
      %v1184 = vadd.f32 %v1135, %v1183
      %1185 = vmatmul.bf16.gmra.mxu0 %v973
      %v1186 = vpop.f32.mrf.mxu0
      %v1187 = vadd.f32 %v1138, %v1186
      %v1188 = vpop.f32.mrf.mxu0
      %v1189 = vadd.f32 %v1140, %v1188
      %1190 = vmatmul.bf16.gmra.mxu0 %v975
      %v1191 = vpop.f32.mrf.mxu0
      %v1192 = vadd.f32 %v1143, %v1191
      %v1193 = vpop.f32.mrf.mxu0
      %v1194 = vadd.f32 %v1145, %v1193
      %1195 = vmatmul.bf16.gmra.mxu0 %v977
      %v1196 = vpop.f32.mrf.mxu0
      %v1197 = vadd.f32 %v1148, %v1196
      %v1198 = vpop.f32.mrf.mxu0
      %v1199 = vadd.f32 %v1150, %v1198
      %1200 = vmatmul.bf16.gmra.mxu0 %v979
      %v1201 = vpop.f32.mrf.mxu0
      %v1202 = vadd.f32 %v1153, %v1201
      %v1203 = vpop.f32.mrf.mxu0
      %v1204 = vadd.f32 %v1155, %v1203
      %1205 = vdwg.mxu0
      %v1206 = vadd.f32 %v730, %v1167
      %v1207 = vadd.f32 %v731, %v1169
      %v1208 = vadd.f32 %v732, %v1172
      %v1209 = vadd.f32 %v733, %v1174
      %v1210 = vadd.f32 %v734, %v1177
      %v1211 = vadd.f32 %v735, %v1179
      %v1212 = vadd.f32 %v736, %v1182
      %v1213 = vadd.f32 %v737, %v1184
      %v1214 = vadd.f32 %v738, %v1187
      %v1215 = vadd.f32 %v739, %v1189
      %v1216 = vadd.f32 %v740, %v1192
      %v1217 = vadd.f32 %v741, %v1194
      %v1218 = vadd.f32 %v742, %v1197
      %v1219 = vadd.f32 %v743, %v1199
      %v1220 = vadd.f32 %v744, %v1202
      %v1221 = vadd.f32 %v745, %v1204
      %v1222 = vld [vmem:[%s2 + $0x8] sm:$0xff]
      %v1223 = vld [vmem:[%s2 + $0x30] sm:$0x33]
      %v1224 = vld [vmem:[%s3 + $0x2] sm:$0x3]
      %v1226 = vperm.slane %v1224, 0
      %v1227 = vperm.slane %v1224, 1
      %v1232 = vunpack.c.l.b16 %v1222
      %v1233 = vunpack.c.h.b16 %v1222
      %v1234 = vunpack.c.l.b16 %v1223
      %v1235 = vunpack.c.h.b16 %v1223
      %v1236 = vpack.c.b16 %v1234, %v1232
      %v1237 = vpack.c.b16 %v1235, %v1233
      %v1239 = vsel %vm827, %v1236, 0
      %v1242 = vsel %vm827, %v1237, 0
      %1244 = vmatpush.bf16.msra.mxu0 0
      %1245 = vmatpush.bf16.msra.mxu0 0
      %1246 = vmatpush.bf16.msra.mxu0 0
      %1247 = vmatpush.bf16.msra.mxu0 0
      %1248 = vmatpush.bf16.msra.mxu0 0
      %1249 = vmatpush.bf16.msra.mxu0 0
      %1250 = vmatpush.bf16.msra.mxu0 0
      %1251 = vmatpush.bf16.msra.mxu0 %v1239
      %1252 = vmatmul.bf16.gmra.mxu0 %v804
      %v1253 = vpop.f32.mrf.mxu0
      %v1254 = vadd.f32 %v1226, %v1253
      %v1255 = vpop.f32.mrf.mxu0
      %v1256 = vadd.f32 %v1226, %v1255
      %1257 = vmatmul.bf16.gmra.mxu0 %v807
      %v1258 = vpop.f32.mrf.mxu0
      %v1259 = vadd.f32 %v1226, %v1258
      %v1260 = vpop.f32.mrf.mxu0
      %v1261 = vadd.f32 %v1226, %v1260
      %1262 = vmatmul.bf16.gmra.mxu0 %v810
      %v1263 = vpop.f32.mrf.mxu0
      %v1264 = vadd.f32 %v1226, %v1263
      %v1265 = vpop.f32.mrf.mxu0
      %v1266 = vadd.f32 %v1226, %v1265
      %1267 = vmatmul.bf16.gmra.mxu0 %v813
      %v1268 = vpop.f32.mrf.mxu0
      %v1269 = vadd.f32 %v1226, %v1268
      %v1270 = vpop.f32.mrf.mxu0
      %v1271 = vadd.f32 %v1226, %v1270
      %1272 = vmatmul.bf16.gmra.mxu0 %v816
      %v1273 = vpop.f32.mrf.mxu0
      %v1274 = vadd.f32 %v1226, %v1273
      %v1275 = vpop.f32.mrf.mxu0
      %v1276 = vadd.f32 %v1226, %v1275
      %1277 = vmatmul.bf16.gmra.mxu0 %v819
      %v1278 = vpop.f32.mrf.mxu0
      %v1279 = vadd.f32 %v1226, %v1278
      %v1280 = vpop.f32.mrf.mxu0
      %v1281 = vadd.f32 %v1226, %v1280
      %1282 = vmatmul.bf16.gmra.mxu0 %v822
      %v1283 = vpop.f32.mrf.mxu0
      %v1284 = vadd.f32 %v1226, %v1283
      %v1285 = vpop.f32.mrf.mxu0
      %v1286 = vadd.f32 %v1226, %v1285
      %1287 = vmatmul.bf16.gmra.mxu0 %v825
      %v1288 = vpop.f32.mrf.mxu0
      %v1289 = vadd.f32 %v1226, %v1288
      %v1290 = vpop.f32.mrf.mxu0
      %v1291 = vadd.f32 %v1226, %v1290
      %1292 = vdwg.mxu0
      %1293 = vmatpush.bf16.msra.mxu0 0
      %1294 = vmatpush.bf16.msra.mxu0 0
      %1295 = vmatpush.bf16.msra.mxu0 0
      %1296 = vmatpush.bf16.msra.mxu0 0
      %1297 = vmatpush.bf16.msra.mxu0 0
      %1298 = vmatpush.bf16.msra.mxu0 0
      %1299 = vmatpush.bf16.msra.mxu0 0
      %1300 = vmatpush.bf16.msra.mxu0 %v1242
      %1301 = vmatmul.bf16.gmra.mxu0 %v804
      %v1302 = vpop.f32.mrf.mxu0
      %v1303 = vadd.f32 %v1227, %v1302
      %v1304 = vpop.f32.mrf.mxu0
      %v1305 = vadd.f32 %v1227, %v1304
      %1306 = vmatmul.bf16.gmra.mxu0 %v807
      %v1307 = vpop.f32.mrf.mxu0
      %v1308 = vadd.f32 %v1227, %v1307
      %v1309 = vpop.f32.mrf.mxu0
      %v1310 = vadd.f32 %v1227, %v1309
      %1311 = vmatmul.bf16.gmra.mxu0 %v810
      %v1312 = vpop.f32.mrf.mxu0
      %v1313 = vadd.f32 %v1227, %v1312
      %v1314 = vpop.f32.mrf.mxu0
      %v1315 = vadd.f32 %v1227, %v1314
      %1316 = vmatmul.bf16.gmra.mxu0 %v813
      %v1317 = vpop.f32.mrf.mxu0
      %v1318 = vadd.f32 %v1227, %v1317
      %v1319 = vpop.f32.mrf.mxu0
      %v1320 = vadd.f32 %v1227, %v1319
      %1321 = vmatmul.bf16.gmra.mxu0 %v816
      %v1322 = vpop.f32.mrf.mxu0
      %v1323 = vadd.f32 %v1227, %v1322
      %v1324 = vpop.f32.mrf.mxu0
      %v1325 = vadd.f32 %v1227, %v1324
      %1326 = vmatmul.bf16.gmra.mxu0 %v819
      %v1327 = vpop.f32.mrf.mxu0
      %v1328 = vadd.f32 %v1227, %v1327
      %v1329 = vpop.f32.mrf.mxu0
      %v1330 = vadd.f32 %v1227, %v1329
      %1331 = vmatmul.bf16.gmra.mxu0 %v822
      %v1332 = vpop.f32.mrf.mxu0
      %v1333 = vadd.f32 %v1227, %v1332
      %v1334 = vpop.f32.mrf.mxu0
      %v1335 = vadd.f32 %v1227, %v1334
      %1336 = vmatmul.bf16.gmra.mxu0 %v825
      %v1337 = vpop.f32.mrf.mxu0
      %v1338 = vadd.f32 %v1227, %v1337
      %v1339 = vpop.f32.mrf.mxu0
      %v1340 = vadd.f32 %v1227, %v1339
      %1341 = vdwg.mxu0
      %v1342 = vmax.f32 %v1254, 0.0
      %v1343 = vmax.f32 %v1303, 0.0
      %v1344 = vmax.f32 %v1256, 0.0
      %v1345 = vmax.f32 %v1305, 0.0
      %v1346 = vmax.f32 %v1259, 0.0
      %v1347 = vmax.f32 %v1308, 0.0
      %v1348 = vmax.f32 %v1261, 0.0
      %v1349 = vmax.f32 %v1310, 0.0
      %v1350 = vmax.f32 %v1264, 0.0
      %v1351 = vmax.f32 %v1313, 0.0
      %v1352 = vmax.f32 %v1266, 0.0
      %v1353 = vmax.f32 %v1315, 0.0
      %v1354 = vmax.f32 %v1269, 0.0
      %v1355 = vmax.f32 %v1318, 0.0
      %v1356 = vmax.f32 %v1271, 0.0
      %v1357 = vmax.f32 %v1320, 0.0
      %v1358 = vmax.f32 %v1274, 0.0
      %v1359 = vmax.f32 %v1323, 0.0
      %v1360 = vmax.f32 %v1276, 0.0
      %v1361 = vmax.f32 %v1325, 0.0
      %v1362 = vmax.f32 %v1279, 0.0
      %v1363 = vmax.f32 %v1328, 0.0
      %v1364 = vmax.f32 %v1281, 0.0
      %v1365 = vmax.f32 %v1330, 0.0
      %v1366 = vmax.f32 %v1284, 0.0
      %v1367 = vmax.f32 %v1333, 0.0
      %v1368 = vmax.f32 %v1286, 0.0
      %v1369 = vmax.f32 %v1335, 0.0
      %v1370 = vmax.f32 %v1289, 0.0
      %v1371 = vmax.f32 %v1338, 0.0
      %v1372 = vmax.f32 %v1291, 0.0
      %v1373 = vmax.f32 %v1340, 0.0
      %v1374 = vpack.c.bf16 %v1344, %v1342
      %v1375 = vpack.c.bf16 %v1345, %v1343
      %v1376 = vpack.c.bf16 %v1348, %v1346
      %v1377 = vpack.c.bf16 %v1349, %v1347
      %v1378 = vpack.c.bf16 %v1352, %v1350
      %v1379 = vpack.c.bf16 %v1353, %v1351
      %v1380 = vpack.c.bf16 %v1356, %v1354
      %v1381 = vpack.c.bf16 %v1357, %v1355
      %v1382 = vpack.c.bf16 %v1360, %v1358
      %v1383 = vpack.c.bf16 %v1361, %v1359
      %v1384 = vpack.c.bf16 %v1364, %v1362
      %v1385 = vpack.c.bf16 %v1365, %v1363
      %v1386 = vpack.c.bf16 %v1368, %v1366
      %v1387 = vpack.c.bf16 %v1369, %v1367
      %v1388 = vpack.c.bf16 %v1372, %v1370
      %v1389 = vpack.c.bf16 %v1373, %v1371
      %v1390 = vld [vmem:[%s4 + $0x80] sm:$0xf]
      %v1391 = vld [vmem:[%s4 + $0x84] sm:$0xf]
      %v1392 = vld [vmem:[%s4 + $0x88] sm:$0xf]
      %v1393 = vld [vmem:[%s4 + $0x8c] sm:$0xf]
      %v1394 = vld [vmem:[%s4 + $0x90] sm:$0xf]
      %v1395 = vld [vmem:[%s4 + $0x94] sm:$0xf]
      %v1396 = vld [vmem:[%s4 + $0x98] sm:$0xf]
      %v1397 = vld [vmem:[%s4 + $0x9c] sm:$0xf]
      %v1398 = vld [vmem:[%s4 + $0xa0] sm:$0xf]
      %v1399 = vld [vmem:[%s4 + $0xa4] sm:$0xf]
      %v1400 = vld [vmem:[%s4 + $0xa8] sm:$0xf]
      %v1401 = vld [vmem:[%s4 + $0xac] sm:$0xf]
      %v1402 = vld [vmem:[%s4 + $0xb0] sm:$0xf]
      %v1403 = vld [vmem:[%s4 + $0xb4] sm:$0xf]
      %v1404 = vld [vmem:[%s4 + $0xb8] sm:$0xf]
      %v1405 = vld [vmem:[%s4 + $0xbc] sm:$0xf]
      %v1406 = vld [vmem:[%s4 + $0xc0] sm:$0xf]
      %v1407 = vld [vmem:[%s4 + $0xc4] sm:$0xf]
      %v1408 = vld [vmem:[%s4 + $0xc8] sm:$0xf]
      %v1409 = vld [vmem:[%s4 + $0xcc] sm:$0xf]
      %v1410 = vld [vmem:[%s4 + $0xd0] sm:$0xf]
      %v1411 = vld [vmem:[%s4 + $0xd4] sm:$0xf]
      %v1412 = vld [vmem:[%s4 + $0xd8] sm:$0xf]
      %v1413 = vld [vmem:[%s4 + $0xdc] sm:$0xf]
      %v1414 = vld [vmem:[%s4 + $0xe0] sm:$0xf]
      %v1415 = vld [vmem:[%s4 + $0xe4] sm:$0xf]
      %v1416 = vld [vmem:[%s4 + $0xe8] sm:$0xf]
      %v1417 = vld [vmem:[%s4 + $0xec] sm:$0xf]
      %v1418 = vld [vmem:[%s4 + $0xf0] sm:$0xf]
      %v1419 = vld [vmem:[%s4 + $0xf4] sm:$0xf]
      %v1420 = vld [vmem:[%s4 + $0xf8] sm:$0xf]
      %v1421 = vld [vmem:[%s4 + $0xfc] sm:$0xf]
      %v1454 = vunpack.c.l.b16 %v1390
      %v1455 = vunpack.c.l.b16 %v1391
      %v1456 = vunpack.c.l.b16 %v1392
      %v1457 = vunpack.c.l.b16 %v1393
      %v1458 = vunpack.c.l.b16 %v1394
      %v1459 = vunpack.c.l.b16 %v1395
      %v1460 = vunpack.c.l.b16 %v1396
      %v1461 = vunpack.c.l.b16 %v1397
      %v1462 = vunpack.c.l.b16 %v1398
      %v1463 = vunpack.c.l.b16 %v1399
      %v1464 = vunpack.c.l.b16 %v1400
      %v1465 = vunpack.c.l.b16 %v1401
      %v1466 = vunpack.c.l.b16 %v1402
      %v1467 = vunpack.c.l.b16 %v1403
      %v1468 = vunpack.c.l.b16 %v1404
      %v1469 = vunpack.c.l.b16 %v1405
      %v1470 = vunpack.c.l.b16 %v1406
      %v1471 = vunpack.c.l.b16 %v1407
      %v1472 = vunpack.c.l.b16 %v1408
      %v1473 = vunpack.c.l.b16 %v1409
      %v1474 = vunpack.c.l.b16 %v1410
      %v1475 = vunpack.c.l.b16 %v1411
      %v1476 = vunpack.c.l.b16 %v1412
      %v1477 = vunpack.c.l.b16 %v1413
      %v1478 = vunpack.c.l.b16 %v1414
      %v1479 = vunpack.c.l.b16 %v1415
      %v1480 = vunpack.c.l.b16 %v1416
      %v1481 = vunpack.c.l.b16 %v1417
      %v1482 = vunpack.c.l.b16 %v1418
      %v1483 = vunpack.c.l.b16 %v1419
      %v1484 = vunpack.c.l.b16 %v1420
      %v1485 = vunpack.c.l.b16 %v1421
      %v1486 = vpack.c.b16 %v1455, %v1454
      %v1487 = vpack.c.b16 %v1457, %v1456
      %v1488 = vpack.c.b16 %v1459, %v1458
      %v1489 = vpack.c.b16 %v1461, %v1460
      %v1490 = vpack.c.b16 %v1463, %v1462
      %v1491 = vpack.c.b16 %v1465, %v1464
      %v1492 = vpack.c.b16 %v1467, %v1466
      %v1493 = vpack.c.b16 %v1469, %v1468
      %v1494 = vpack.c.b16 %v1471, %v1470
      %v1495 = vpack.c.b16 %v1473, %v1472
      %v1496 = vpack.c.b16 %v1475, %v1474
      %v1497 = vpack.c.b16 %v1477, %v1476
      %v1498 = vpack.c.b16 %v1479, %v1478
      %v1499 = vpack.c.b16 %v1481, %v1480
      %v1500 = vpack.c.b16 %v1483, %v1482
      %v1501 = vpack.c.b16 %v1485, %v1484
      %1518 = vmatpush.bf16.msra.mxu0 %v1493
      %1519 = vmatpush.bf16.msra.mxu0 %v1492
      %1520 = vmatpush.bf16.msra.mxu0 %v1491
      %1521 = vmatpush.bf16.msra.mxu0 %v1490
      %1522 = vmatpush.bf16.msra.mxu0 %v1489
      %1523 = vmatpush.bf16.msra.mxu0 %v1488
      %1524 = vmatpush.bf16.msra.mxu0 %v1487
      %1525 = vmatpush.bf16.msra.mxu0 %v1486
      %1526 = vmatmul.bf16.gmra.mxu0 %v1374
      %v1527 = vpop.f32.mrf.mxu0
      %v1528 = vadd.f32 0.0, %v1527
      %v1529 = vpop.f32.mrf.mxu0
      %v1530 = vadd.f32 0.0, %v1529
      %1531 = vmatmul.bf16.gmra.mxu0 %v1376
      %v1532 = vpop.f32.mrf.mxu0
      %v1533 = vadd.f32 0.0, %v1532
      %v1534 = vpop.f32.mrf.mxu0
      %v1535 = vadd.f32 0.0, %v1534
      %1536 = vmatmul.bf16.gmra.mxu0 %v1378
      %v1537 = vpop.f32.mrf.mxu0
      %v1538 = vadd.f32 0.0, %v1537
      %v1539 = vpop.f32.mrf.mxu0
      %v1540 = vadd.f32 0.0, %v1539
      %1541 = vmatmul.bf16.gmra.mxu0 %v1380
      %v1542 = vpop.f32.mrf.mxu0
      %v1543 = vadd.f32 0.0, %v1542
      %v1544 = vpop.f32.mrf.mxu0
      %v1545 = vadd.f32 0.0, %v1544
      %1546 = vmatmul.bf16.gmra.mxu0 %v1382
      %v1547 = vpop.f32.mrf.mxu0
      %v1548 = vadd.f32 0.0, %v1547
      %v1549 = vpop.f32.mrf.mxu0
      %v1550 = vadd.f32 0.0, %v1549
      %1551 = vmatmul.bf16.gmra.mxu0 %v1384
      %v1552 = vpop.f32.mrf.mxu0
      %v1553 = vadd.f32 0.0, %v1552
      %v1554 = vpop.f32.mrf.mxu0
      %v1555 = vadd.f32 0.0, %v1554
      %1556 = vmatmul.bf16.gmra.mxu0 %v1386
      %v1557 = vpop.f32.mrf.mxu0
      %v1558 = vadd.f32 0.0, %v1557
      %v1559 = vpop.f32.mrf.mxu0
      %v1560 = vadd.f32 0.0, %v1559
      %1561 = vmatmul.bf16.gmra.mxu0 %v1388
      %v1562 = vpop.f32.mrf.mxu0
      %v1563 = vadd.f32 0.0, %v1562
      %v1564 = vpop.f32.mrf.mxu0
      %v1565 = vadd.f32 0.0, %v1564
      %1566 = vdwg.mxu0
      %1567 = vmatpush.bf16.msra.mxu0 %v1501
      %1568 = vmatpush.bf16.msra.mxu0 %v1500
      %1569 = vmatpush.bf16.msra.mxu0 %v1499
      %1570 = vmatpush.bf16.msra.mxu0 %v1498
      %1571 = vmatpush.bf16.msra.mxu0 %v1497
      %1572 = vmatpush.bf16.msra.mxu0 %v1496
      %1573 = vmatpush.bf16.msra.mxu0 %v1495
      %1574 = vmatpush.bf16.msra.mxu0 %v1494
      %1575 = vmatmul.bf16.gmra.mxu0 %v1375
      %v1576 = vpop.f32.mrf.mxu0
      %v1577 = vadd.f32 %v1528, %v1576
      %v1578 = vpop.f32.mrf.mxu0
      %v1579 = vadd.f32 %v1530, %v1578
      %1580 = vmatmul.bf16.gmra.mxu0 %v1377
      %v1581 = vpop.f32.mrf.mxu0
      %v1582 = vadd.f32 %v1533, %v1581
      %v1583 = vpop.f32.mrf.mxu0
      %v1584 = vadd.f32 %v1535, %v1583
      %1585 = vmatmul.bf16.gmra.mxu0 %v1379
      %v1586 = vpop.f32.mrf.mxu0
      %v1587 = vadd.f32 %v1538, %v1586
      %v1588 = vpop.f32.mrf.mxu0
      %v1589 = vadd.f32 %v1540, %v1588
      %1590 = vmatmul.bf16.gmra.mxu0 %v1381
      %v1591 = vpop.f32.mrf.mxu0
      %v1592 = vadd.f32 %v1543, %v1591
      %v1593 = vpop.f32.mrf.mxu0
      %v1594 = vadd.f32 %v1545, %v1593
      %1595 = vmatmul.bf16.gmra.mxu0 %v1383
      %v1596 = vpop.f32.mrf.mxu0
      %v1597 = vadd.f32 %v1548, %v1596
      %v1598 = vpop.f32.mrf.mxu0
      %v1599 = vadd.f32 %v1550, %v1598
      %1600 = vmatmul.bf16.gmra.mxu0 %v1385
      %v1601 = vpop.f32.mrf.mxu0
      %v1602 = vadd.f32 %v1553, %v1601
      %v1603 = vpop.f32.mrf.mxu0
      %v1604 = vadd.f32 %v1555, %v1603
      %1605 = vmatmul.bf16.gmra.mxu0 %v1387
      %v1606 = vpop.f32.mrf.mxu0
      %v1607 = vadd.f32 %v1558, %v1606
      %v1608 = vpop.f32.mrf.mxu0
      %v1609 = vadd.f32 %v1560, %v1608
      %1610 = vmatmul.bf16.gmra.mxu0 %v1389
      %v1611 = vpop.f32.mrf.mxu0
      %v1612 = vadd.f32 %v1563, %v1611
      %v1613 = vpop.f32.mrf.mxu0
      %v1614 = vadd.f32 %v1565, %v1613
      %1615 = vdwg.mxu0
      %v1616 = vadd.f32 %v1206, %v1577
      %v1617 = vadd.f32 %v1207, %v1579
      %v1618 = vadd.f32 %v1208, %v1582
      %v1619 = vadd.f32 %v1209, %v1584
      %v1620 = vadd.f32 %v1210, %v1587
      %v1621 = vadd.f32 %v1211, %v1589
      %v1622 = vadd.f32 %v1212, %v1592
      %v1623 = vadd.f32 %v1213, %v1594
      %v1624 = vadd.f32 %v1214, %v1597
      %v1625 = vadd.f32 %v1215, %v1599
      %v1626 = vadd.f32 %v1216, %v1602
      %v1627 = vadd.f32 %v1217, %v1604
      %v1628 = vadd.f32 %v1218, %v1607
      %v1629 = vadd.f32 %v1219, %v1609
      %v1630 = vadd.f32 %v1220, %v1612
      %v1631 = vadd.f32 %v1221, %v1614
      %v1632 = vld [vmem:[%s2 + $0x10] sm:$0xff]
      %v1633 = vld [vmem:[%s2 + $0x38] sm:$0x33]
      %v1634 = vld [vmem:[%s3 + $0x4] sm:$0x3]
      %v1636 = vperm.slane %v1634, 0
      %v1637 = vperm.slane %v1634, 1
      %v1642 = vunpack.c.l.b16 %v1632
      %v1643 = vunpack.c.h.b16 %v1632
      %v1644 = vunpack.c.l.b16 %v1633
      %v1645 = vunpack.c.h.b16 %v1633
      %v1646 = vpack.c.b16 %v1644, %v1642
      %v1647 = vpack.c.b16 %v1645, %v1643
      %v1649 = vsel %vm827, %v1646, 0
      %v1652 = vsel %vm827, %v1647, 0
      %1654 = vmatpush.bf16.msra.mxu0 0
      %1655 = vmatpush.bf16.msra.mxu0 0
      %1656 = vmatpush.bf16.msra.mxu0 0
      %1657 = vmatpush.bf16.msra.mxu0 0
      %1658 = vmatpush.bf16.msra.mxu0 0
      %1659 = vmatpush.bf16.msra.mxu0 0
      %1660 = vmatpush.bf16.msra.mxu0 0
      %1661 = vmatpush.bf16.msra.mxu0 %v1649
      %1662 = vmatmul.bf16.gmra.mxu0 %v804
      %v1663 = vpop.f32.mrf.mxu0
      %v1664 = vadd.f32 %v1636, %v1663
      %v1665 = vpop.f32.mrf.mxu0
      %v1666 = vadd.f32 %v1636, %v1665
      %1667 = vmatmul.bf16.gmra.mxu0 %v807
      %v1668 = vpop.f32.mrf.mxu0
      %v1669 = vadd.f32 %v1636, %v1668
      %v1670 = vpop.f32.mrf.mxu0
      %v1671 = vadd.f32 %v1636, %v1670
      %1672 = vmatmul.bf16.gmra.mxu0 %v810
      %v1673 = vpop.f32.mrf.mxu0
      %v1674 = vadd.f32 %v1636, %v1673
      %v1675 = vpop.f32.mrf.mxu0
      %v1676 = vadd.f32 %v1636, %v1675
      %1677 = vmatmul.bf16.gmra.mxu0 %v813
      %v1678 = vpop.f32.mrf.mxu0
      %v1679 = vadd.f32 %v1636, %v1678
      %v1680 = vpop.f32.mrf.mxu0
      %v1681 = vadd.f32 %v1636, %v1680
      %1682 = vmatmul.bf16.gmra.mxu0 %v816
      %v1683 = vpop.f32.mrf.mxu0
      %v1684 = vadd.f32 %v1636, %v1683
      %v1685 = vpop.f32.mrf.mxu0
      %v1686 = vadd.f32 %v1636, %v1685
      %1687 = vmatmul.bf16.gmra.mxu0 %v819
      %v1688 = vpop.f32.mrf.mxu0
      %v1689 = vadd.f32 %v1636, %v1688
      %v1690 = vpop.f32.mrf.mxu0
      %v1691 = vadd.f32 %v1636, %v1690
      %1692 = vmatmul.bf16.gmra.mxu0 %v822
      %v1693 = vpop.f32.mrf.mxu0
      %v1694 = vadd.f32 %v1636, %v1693
      %v1695 = vpop.f32.mrf.mxu0
      %v1696 = vadd.f32 %v1636, %v1695
      %1697 = vmatmul.bf16.gmra.mxu0 %v825
      %v1698 = vpop.f32.mrf.mxu0
      %v1699 = vadd.f32 %v1636, %v1698
      %v1700 = vpop.f32.mrf.mxu0
      %v1701 = vadd.f32 %v1636, %v1700
      %1702 = vdwg.mxu0
      %1703 = vmatpush.bf16.msra.mxu0 0
      %1704 = vmatpush.bf16.msra.mxu0 0
      %1705 = vmatpush.bf16.msra.mxu0 0
      %1706 = vmatpush.bf16.msra.mxu0 0
      %1707 = vmatpush.bf16.msra.mxu0 0
      %1708 = vmatpush.bf16.msra.mxu0 0
      %1709 = vmatpush.bf16.msra.mxu0 0
      %1710 = vmatpush.bf16.msra.mxu0 %v1652
      %1711 = vmatmul.bf16.gmra.mxu0 %v804
      %v1712 = vpop.f32.mrf.mxu0
      %v1713 = vadd.f32 %v1637, %v1712
      %v1714 = vpop.f32.mrf.mxu0
      %v1715 = vadd.f32 %v1637, %v1714
      %1716 = vmatmul.bf16.gmra.mxu0 %v807
      %v1717 = vpop.f32.mrf.mxu0
      %v1718 = vadd.f32 %v1637, %v1717
      %v1719 = vpop.f32.mrf.mxu0
      %v1720 = vadd.f32 %v1637, %v1719
      %1721 = vmatmul.bf16.gmra.mxu0 %v810
      %v1722 = vpop.f32.mrf.mxu0
      %v1723 = vadd.f32 %v1637, %v1722
      %v1724 = vpop.f32.mrf.mxu0
      %v1725 = vadd.f32 %v1637, %v1724
      %1726 = vmatmul.bf16.gmra.mxu0 %v813
      %v1727 = vpop.f32.mrf.mxu0
      %v1728 = vadd.f32 %v1637, %v1727
      %v1729 = vpop.f32.mrf.mxu0
      %v1730 = vadd.f32 %v1637, %v1729
      %1731 = vmatmul.bf16.gmra.mxu0 %v816
      %v1732 = vpop.f32.mrf.mxu0
      %v1733 = vadd.f32 %v1637, %v1732
      %v1734 = vpop.f32.mrf.mxu0
      %v1735 = vadd.f32 %v1637, %v1734
      %1736 = vmatmul.bf16.gmra.mxu0 %v819
      %v1737 = vpop.f32.mrf.mxu0
      %v1738 = vadd.f32 %v1637, %v1737
      %v1739 = vpop.f32.mrf.mxu0
      %v1740 = vadd.f32 %v1637, %v1739
      %1741 = vmatmul.bf16.gmra.mxu0 %v822
      %v1742 = vpop.f32.mrf.mxu0
      %v1743 = vadd.f32 %v1637, %v1742
      %v1744 = vpop.f32.mrf.mxu0
      %v1745 = vadd.f32 %v1637, %v1744
      %1746 = vmatmul.bf16.gmra.mxu0 %v825
      %v1747 = vpop.f32.mrf.mxu0
      %v1748 = vadd.f32 %v1637, %v1747
      %v1749 = vpop.f32.mrf.mxu0
      %v1750 = vadd.f32 %v1637, %v1749
      %1751 = vdwg.mxu0
      %v1752 = vmax.f32 %v1664, 0.0
      %v1753 = vmax.f32 %v1713, 0.0
      %v1754 = vmax.f32 %v1666, 0.0
      %v1755 = vmax.f32 %v1715, 0.0
      %v1756 = vmax.f32 %v1669, 0.0
      %v1757 = vmax.f32 %v1718, 0.0
      %v1758 = vmax.f32 %v1671, 0.0
      %v1759 = vmax.f32 %v1720, 0.0
      %v1760 = vmax.f32 %v1674, 0.0
      %v1761 = vmax.f32 %v1723, 0.0
      %v1762 = vmax.f32 %v1676, 0.0
      %v1763 = vmax.f32 %v1725, 0.0
      %v1764 = vmax.f32 %v1679, 0.0
      %v1765 = vmax.f32 %v1728, 0.0
      %v1766 = vmax.f32 %v1681, 0.0
      %v1767 = vmax.f32 %v1730, 0.0
      %v1768 = vmax.f32 %v1684, 0.0
      %v1769 = vmax.f32 %v1733, 0.0
      %v1770 = vmax.f32 %v1686, 0.0
      %v1771 = vmax.f32 %v1735, 0.0
      %v1772 = vmax.f32 %v1689, 0.0
      %v1773 = vmax.f32 %v1738, 0.0
      %v1774 = vmax.f32 %v1691, 0.0
      %v1775 = vmax.f32 %v1740, 0.0
      %v1776 = vmax.f32 %v1694, 0.0
      %v1777 = vmax.f32 %v1743, 0.0
      %v1778 = vmax.f32 %v1696, 0.0
      %v1779 = vmax.f32 %v1745, 0.0
      %v1780 = vmax.f32 %v1699, 0.0
      %v1781 = vmax.f32 %v1748, 0.0
      %v1782 = vmax.f32 %v1701, 0.0
      %v1783 = vmax.f32 %v1750, 0.0
      %v1784 = vpack.c.bf16 %v1754, %v1752
      %v1785 = vpack.c.bf16 %v1755, %v1753
      %v1786 = vpack.c.bf16 %v1758, %v1756
      %v1787 = vpack.c.bf16 %v1759, %v1757
      %v1788 = vpack.c.bf16 %v1762, %v1760
      %v1789 = vpack.c.bf16 %v1763, %v1761
      %v1790 = vpack.c.bf16 %v1766, %v1764
      %v1791 = vpack.c.bf16 %v1767, %v1765
      %v1792 = vpack.c.bf16 %v1770, %v1768
      %v1793 = vpack.c.bf16 %v1771, %v1769
      %v1794 = vpack.c.bf16 %v1774, %v1772
      %v1795 = vpack.c.bf16 %v1775, %v1773
      %v1796 = vpack.c.bf16 %v1778, %v1776
      %v1797 = vpack.c.bf16 %v1779, %v1777
      %v1798 = vpack.c.bf16 %v1782, %v1780
      %v1799 = vpack.c.bf16 %v1783, %v1781
      %v1800 = vld [vmem:[%s4 + $0x100] sm:$0xf]
      %v1801 = vld [vmem:[%s4 + $0x104] sm:$0xf]
      %v1802 = vld [vmem:[%s4 + $0x108] sm:$0xf]
      %v1803 = vld [vmem:[%s4 + $0x10c] sm:$0xf]
      %v1804 = vld [vmem:[%s4 + $0x110] sm:$0xf]
      %v1805 = vld [vmem:[%s4 + $0x114] sm:$0xf]
      %v1806 = vld [vmem:[%s4 + $0x118] sm:$0xf]
      %v1807 = vld [vmem:[%s4 + $0x11c] sm:$0xf]
      %v1808 = vld [vmem:[%s4 + $0x120] sm:$0xf]
      %v1809 = vld [vmem:[%s4 + $0x124] sm:$0xf]
      %v1810 = vld [vmem:[%s4 + $0x128] sm:$0xf]
      %v1811 = vld [vmem:[%s4 + $0x12c] sm:$0xf]
      %v1812 = vld [vmem:[%s4 + $0x130] sm:$0xf]
      %v1813 = vld [vmem:[%s4 + $0x134] sm:$0xf]
      %v1814 = vld [vmem:[%s4 + $0x138] sm:$0xf]
      %v1815 = vld [vmem:[%s4 + $0x13c] sm:$0xf]
      %v1816 = vld [vmem:[%s4 + $0x140] sm:$0xf]
      %v1817 = vld [vmem:[%s4 + $0x144] sm:$0xf]
      %v1818 = vld [vmem:[%s4 + $0x148] sm:$0xf]
      %v1819 = vld [vmem:[%s4 + $0x14c] sm:$0xf]
      %v1820 = vld [vmem:[%s4 + $0x150] sm:$0xf]
      %v1821 = vld [vmem:[%s4 + $0x154] sm:$0xf]
      %v1822 = vld [vmem:[%s4 + $0x158] sm:$0xf]
      %v1823 = vld [vmem:[%s4 + $0x15c] sm:$0xf]
      %v1824 = vld [vmem:[%s4 + $0x160] sm:$0xf]
      %v1825 = vld [vmem:[%s4 + $0x164] sm:$0xf]
      %v1826 = vld [vmem:[%s4 + $0x168] sm:$0xf]
      %v1827 = vld [vmem:[%s4 + $0x16c] sm:$0xf]
      %v1828 = vld [vmem:[%s4 + $0x170] sm:$0xf]
      %v1829 = vld [vmem:[%s4 + $0x174] sm:$0xf]
      %v1830 = vld [vmem:[%s4 + $0x178] sm:$0xf]
      %v1831 = vld [vmem:[%s4 + $0x17c] sm:$0xf]
      %v1864 = vunpack.c.l.b16 %v1800
      %v1865 = vunpack.c.l.b16 %v1801
      %v1866 = vunpack.c.l.b16 %v1802
      %v1867 = vunpack.c.l.b16 %v1803
      %v1868 = vunpack.c.l.b16 %v1804
      %v1869 = vunpack.c.l.b16 %v1805
      %v1870 = vunpack.c.l.b16 %v1806
      %v1871 = vunpack.c.l.b16 %v1807
      %v1872 = vunpack.c.l.b16 %v1808
      %v1873 = vunpack.c.l.b16 %v1809
      %v1874 = vunpack.c.l.b16 %v1810
      %v1875 = vunpack.c.l.b16 %v1811
      %v1876 = vunpack.c.l.b16 %v1812
      %v1877 = vunpack.c.l.b16 %v1813
      %v1878 = vunpack.c.l.b16 %v1814
      %v1879 = vunpack.c.l.b16 %v1815
      %v1880 = vunpack.c.l.b16 %v1816
      %v1881 = vunpack.c.l.b16 %v1817
      %v1882 = vunpack.c.l.b16 %v1818
      %v1883 = vunpack.c.l.b16 %v1819
      %v1884 = vunpack.c.l.b16 %v1820
      %v1885 = vunpack.c.l.b16 %v1821
      %v1886 = vunpack.c.l.b16 %v1822
      %v1887 = vunpack.c.l.b16 %v1823
      %v1888 = vunpack.c.l.b16 %v1824
      %v1889 = vunpack.c.l.b16 %v1825
      %v1890 = vunpack.c.l.b16 %v1826
      %v1891 = vunpack.c.l.b16 %v1827
      %v1892 = vunpack.c.l.b16 %v1828
      %v1893 = vunpack.c.l.b16 %v1829
      %v1894 = vunpack.c.l.b16 %v1830
      %v1895 = vunpack.c.l.b16 %v1831
      %v1896 = vpack.c.b16 %v1865, %v1864
      %v1897 = vpack.c.b16 %v1867, %v1866
      %v1898 = vpack.c.b16 %v1869, %v1868
      %v1899 = vpack.c.b16 %v1871, %v1870
      %v1900 = vpack.c.b16 %v1873, %v1872
      %v1901 = vpack.c.b16 %v1875, %v1874
      %v1902 = vpack.c.b16 %v1877, %v1876
      %v1903 = vpack.c.b16 %v1879, %v1878
      %v1904 = vpack.c.b16 %v1881, %v1880
      %v1905 = vpack.c.b16 %v1883, %v1882
      %v1906 = vpack.c.b16 %v1885, %v1884
      %v1907 = vpack.c.b16 %v1887, %v1886
      %v1908 = vpack.c.b16 %v1889, %v1888
      %v1909 = vpack.c.b16 %v1891, %v1890
      %v1910 = vpack.c.b16 %v1893, %v1892
      %v1911 = vpack.c.b16 %v1895, %v1894
      %1928 = vmatpush.bf16.msra.mxu0 %v1903
      %1929 = vmatpush.bf16.msra.mxu0 %v1902
      %1930 = vmatpush.bf16.msra.mxu0 %v1901
      %1931 = vmatpush.bf16.msra.mxu0 %v1900
      %1932 = vmatpush.bf16.msra.mxu0 %v1899
      %1933 = vmatpush.bf16.msra.mxu0 %v1898
      %1934 = vmatpush.bf16.msra.mxu0 %v1897
      %1935 = vmatpush.bf16.msra.mxu0 %v1896
      %1936 = vmatmul.bf16.gmra.mxu0 %v1784
      %v1937 = vpop.f32.mrf.mxu0
      %v1938 = vadd.f32 0.0, %v1937
      %v1939 = vpop.f32.mrf.mxu0
      %v1940 = vadd.f32 0.0, %v1939
      %1941 = vmatmul.bf16.gmra.mxu0 %v1786
      %v1942 = vpop.f32.mrf.mxu0
      %v1943 = vadd.f32 0.0, %v1942
      %v1944 = vpop.f32.mrf.mxu0
      %v1945 = vadd.f32 0.0, %v1944
      %1946 = vmatmul.bf16.gmra.mxu0 %v1788
      %v1947 = vpop.f32.mrf.mxu0
      %v1948 = vadd.f32 0.0, %v1947
      %v1949 = vpop.f32.mrf.mxu0
      %v1950 = vadd.f32 0.0, %v1949
      %1951 = vmatmul.bf16.gmra.mxu0 %v1790
      %v1952 = vpop.f32.mrf.mxu0
      %v1953 = vadd.f32 0.0, %v1952
      %v1954 = vpop.f32.mrf.mxu0
      %v1955 = vadd.f32 0.0, %v1954
      %1956 = vmatmul.bf16.gmra.mxu0 %v1792
      %v1957 = vpop.f32.mrf.mxu0
      %v1958 = vadd.f32 0.0, %v1957
      %v1959 = vpop.f32.mrf.mxu0
      %v1960 = vadd.f32 0.0, %v1959
      %1961 = vmatmul.bf16.gmra.mxu0 %v1794
      %v1962 = vpop.f32.mrf.mxu0
      %v1963 = vadd.f32 0.0, %v1962
      %v1964 = vpop.f32.mrf.mxu0
      %v1965 = vadd.f32 0.0, %v1964
      %1966 = vmatmul.bf16.gmra.mxu0 %v1796
      %v1967 = vpop.f32.mrf.mxu0
      %v1968 = vadd.f32 0.0, %v1967
      %v1969 = vpop.f32.mrf.mxu0
      %v1970 = vadd.f32 0.0, %v1969
      %1971 = vmatmul.bf16.gmra.mxu0 %v1798
      %v1972 = vpop.f32.mrf.mxu0
      %v1973 = vadd.f32 0.0, %v1972
      %v1974 = vpop.f32.mrf.mxu0
      %v1975 = vadd.f32 0.0, %v1974
      %1976 = vdwg.mxu0
      %1977 = vmatpush.bf16.msra.mxu0 %v1911
      %1978 = vmatpush.bf16.msra.mxu0 %v1910
      %1979 = vmatpush.bf16.msra.mxu0 %v1909
      %1980 = vmatpush.bf16.msra.mxu0 %v1908
      %1981 = vmatpush.bf16.msra.mxu0 %v1907
      %1982 = vmatpush.bf16.msra.mxu0 %v1906
      %1983 = vmatpush.bf16.msra.mxu0 %v1905
      %1984 = vmatpush.bf16.msra.mxu0 %v1904
      %1985 = vmatmul.bf16.gmra.mxu0 %v1785
      %v1986 = vpop.f32.mrf.mxu0
      %v1987 = vadd.f32 %v1938, %v1986
      %v1988 = vpop.f32.mrf.mxu0
      %v1989 = vadd.f32 %v1940, %v1988
      %1990 = vmatmul.bf16.gmra.mxu0 %v1787
      %v1991 = vpop.f32.mrf.mxu0
      %v1992 = vadd.f32 %v1943, %v1991
      %v1993 = vpop.f32.mrf.mxu0
      %v1994 = vadd.f32 %v1945, %v1993
      %1995 = vmatmul.bf16.gmra.mxu0 %v1789
      %v1996 = vpop.f32.mrf.mxu0
      %v1997 = vadd.f32 %v1948, %v1996
      %v1998 = vpop.f32.mrf.mxu0
      %v1999 = vadd.f32 %v1950, %v1998
      %2000 = vmatmul.bf16.gmra.mxu0 %v1791
      %v2001 = vpop.f32.mrf.mxu0
      %v2002 = vadd.f32 %v1953, %v2001
      %v2003 = vpop.f32.mrf.mxu0
      %v2004 = vadd.f32 %v1955, %v2003
      %2005 = vmatmul.bf16.gmra.mxu0 %v1793
      %v2006 = vpop.f32.mrf.mxu0
      %v2007 = vadd.f32 %v1958, %v2006
      %v2008 = vpop.f32.mrf.mxu0
      %v2009 = vadd.f32 %v1960, %v2008
      %2010 = vmatmul.bf16.gmra.mxu0 %v1795
      %v2011 = vpop.f32.mrf.mxu0
      %v2012 = vadd.f32 %v1963, %v2011
      %v2013 = vpop.f32.mrf.mxu0
      %v2014 = vadd.f32 %v1965, %v2013
      %2015 = vmatmul.bf16.gmra.mxu0 %v1797
      %v2016 = vpop.f32.mrf.mxu0
      %v2017 = vadd.f32 %v1968, %v2016
      %v2018 = vpop.f32.mrf.mxu0
      %v2019 = vadd.f32 %v1970, %v2018
      %2020 = vmatmul.bf16.gmra.mxu0 %v1799
      %v2021 = vpop.f32.mrf.mxu0
      %v2022 = vadd.f32 %v1973, %v2021
      %v2023 = vpop.f32.mrf.mxu0
      %v2024 = vadd.f32 %v1975, %v2023
      %2025 = vdwg.mxu0
      %v2026 = vadd.f32 %v1616, %v1987
      %v2027 = vadd.f32 %v1617, %v1989
      %v2028 = vadd.f32 %v1618, %v1992
      %v2029 = vadd.f32 %v1619, %v1994
      %v2030 = vadd.f32 %v1620, %v1997
      %v2031 = vadd.f32 %v1621, %v1999
      %v2032 = vadd.f32 %v1622, %v2002
      %v2033 = vadd.f32 %v1623, %v2004
      %v2034 = vadd.f32 %v1624, %v2007
      %v2035 = vadd.f32 %v1625, %v2009
      %v2036 = vadd.f32 %v1626, %v2012
      %v2037 = vadd.f32 %v1627, %v2014
      %v2038 = vadd.f32 %v1628, %v2017
      %v2039 = vadd.f32 %v1629, %v2019
      %v2040 = vadd.f32 %v1630, %v2022
      %v2041 = vadd.f32 %v1631, %v2024
      %v2042 = vld [vmem:[%s2 + $0x18] sm:$0xff]
      %v2043 = vld [vmem:[%s2 + $0x40] sm:$0x33]
      %v2044 = vld [vmem:[%s3 + $0x6] sm:$0x3]
      %v2046 = vperm.slane %v2044, 0
      %v2047 = vperm.slane %v2044, 1
      %v2052 = vunpack.c.l.b16 %v2042
      %v2053 = vunpack.c.h.b16 %v2042
      %v2054 = vunpack.c.l.b16 %v2043
      %v2055 = vunpack.c.h.b16 %v2043
      %v2056 = vpack.c.b16 %v2054, %v2052
      %v2057 = vpack.c.b16 %v2055, %v2053
      %v2059 = vsel %vm827, %v2056, 0
      %v2062 = vsel %vm827, %v2057, 0
      %2064 = vmatpush.bf16.msra.mxu0 0
      %2065 = vmatpush.bf16.msra.mxu0 0
      %2066 = vmatpush.bf16.msra.mxu0 0
      %2067 = vmatpush.bf16.msra.mxu0 0
      %2068 = vmatpush.bf16.msra.mxu0 0
      %2069 = vmatpush.bf16.msra.mxu0 0
      %2070 = vmatpush.bf16.msra.mxu0 0
      %2071 = vmatpush.bf16.msra.mxu0 %v2059
      %2072 = vmatmul.bf16.gmra.mxu0 %v804
      %v2073 = vpop.f32.mrf.mxu0
      %v2074 = vadd.f32 %v2046, %v2073
      %v2075 = vpop.f32.mrf.mxu0
      %v2076 = vadd.f32 %v2046, %v2075
      %2077 = vmatmul.bf16.gmra.mxu0 %v807
      %v2078 = vpop.f32.mrf.mxu0
      %v2079 = vadd.f32 %v2046, %v2078
      %v2080 = vpop.f32.mrf.mxu0
      %v2081 = vadd.f32 %v2046, %v2080
      %2082 = vmatmul.bf16.gmra.mxu0 %v810
      %v2083 = vpop.f32.mrf.mxu0
      %v2084 = vadd.f32 %v2046, %v2083
      %v2085 = vpop.f32.mrf.mxu0
      %v2086 = vadd.f32 %v2046, %v2085
      %2087 = vmatmul.bf16.gmra.mxu0 %v813
      %v2088 = vpop.f32.mrf.mxu0
      %v2089 = vadd.f32 %v2046, %v2088
      %v2090 = vpop.f32.mrf.mxu0
      %v2091 = vadd.f32 %v2046, %v2090
      %2092 = vmatmul.bf16.gmra.mxu0 %v816
      %v2093 = vpop.f32.mrf.mxu0
      %v2094 = vadd.f32 %v2046, %v2093
      %v2095 = vpop.f32.mrf.mxu0
      %v2096 = vadd.f32 %v2046, %v2095
      %2097 = vmatmul.bf16.gmra.mxu0 %v819
      %v2098 = vpop.f32.mrf.mxu0
      %v2099 = vadd.f32 %v2046, %v2098
      %v2100 = vpop.f32.mrf.mxu0
      %v2101 = vadd.f32 %v2046, %v2100
      %2102 = vmatmul.bf16.gmra.mxu0 %v822
      %v2103 = vpop.f32.mrf.mxu0
      %v2104 = vadd.f32 %v2046, %v2103
      %v2105 = vpop.f32.mrf.mxu0
      %v2106 = vadd.f32 %v2046, %v2105
      %2107 = vmatmul.bf16.gmra.mxu0 %v825
      %v2108 = vpop.f32.mrf.mxu0
      %v2109 = vadd.f32 %v2046, %v2108
      %v2110 = vpop.f32.mrf.mxu0
      %v2111 = vadd.f32 %v2046, %v2110
      %2112 = vdwg.mxu0
      %2113 = vmatpush.bf16.msra.mxu0 0
      %2114 = vmatpush.bf16.msra.mxu0 0
      %2115 = vmatpush.bf16.msra.mxu0 0
      %2116 = vmatpush.bf16.msra.mxu0 0
      %2117 = vmatpush.bf16.msra.mxu0 0
      %2118 = vmatpush.bf16.msra.mxu0 0
      %2119 = vmatpush.bf16.msra.mxu0 0
      %2120 = vmatpush.bf16.msra.mxu0 %v2062
      %2121 = vmatmul.bf16.gmra.mxu0 %v804
      %v2122 = vpop.f32.mrf.mxu0
      %v2123 = vadd.f32 %v2047, %v2122
      %v2124 = vpop.f32.mrf.mxu0
      %v2125 = vadd.f32 %v2047, %v2124
      %2126 = vmatmul.bf16.gmra.mxu0 %v807
      %v2127 = vpop.f32.mrf.mxu0
      %v2128 = vadd.f32 %v2047, %v2127
      %v2129 = vpop.f32.mrf.mxu0
      %v2130 = vadd.f32 %v2047, %v2129
      %2131 = vmatmul.bf16.gmra.mxu0 %v810
      %v2132 = vpop.f32.mrf.mxu0
      %v2133 = vadd.f32 %v2047, %v2132
      %v2134 = vpop.f32.mrf.mxu0
      %v2135 = vadd.f32 %v2047, %v2134
      %2136 = vmatmul.bf16.gmra.mxu0 %v813
      %v2137 = vpop.f32.mrf.mxu0
      %v2138 = vadd.f32 %v2047, %v2137
      %v2139 = vpop.f32.mrf.mxu0
      %v2140 = vadd.f32 %v2047, %v2139
      %2141 = vmatmul.bf16.gmra.mxu0 %v816
      %v2142 = vpop.f32.mrf.mxu0
      %v2143 = vadd.f32 %v2047, %v2142
      %v2144 = vpop.f32.mrf.mxu0
      %v2145 = vadd.f32 %v2047, %v2144
      %2146 = vmatmul.bf16.gmra.mxu0 %v819
      %v2147 = vpop.f32.mrf.mxu0
      %v2148 = vadd.f32 %v2047, %v2147
      %v2149 = vpop.f32.mrf.mxu0
      %v2150 = vadd.f32 %v2047, %v2149
      %2151 = vmatmul.bf16.gmra.mxu0 %v822
      %v2152 = vpop.f32.mrf.mxu0
      %v2153 = vadd.f32 %v2047, %v2152
      %v2154 = vpop.f32.mrf.mxu0
      %v2155 = vadd.f32 %v2047, %v2154
      %2156 = vmatmul.bf16.gmra.mxu0 %v825
      %v2157 = vpop.f32.mrf.mxu0
      %v2158 = vadd.f32 %v2047, %v2157
      %v2159 = vpop.f32.mrf.mxu0
      %v2160 = vadd.f32 %v2047, %v2159
      %2161 = vdwg.mxu0
      %v2162 = vmax.f32 %v2074, 0.0
      %v2163 = vmax.f32 %v2123, 0.0
      %v2164 = vmax.f32 %v2076, 0.0
      %v2165 = vmax.f32 %v2125, 0.0
      %v2166 = vmax.f32 %v2079, 0.0
      %v2167 = vmax.f32 %v2128, 0.0
      %v2168 = vmax.f32 %v2081, 0.0
      %v2169 = vmax.f32 %v2130, 0.0
      %v2170 = vmax.f32 %v2084, 0.0
      %v2171 = vmax.f32 %v2133, 0.0
      %v2172 = vmax.f32 %v2086, 0.0
      %v2173 = vmax.f32 %v2135, 0.0
      %v2174 = vmax.f32 %v2089, 0.0
      %v2175 = vmax.f32 %v2138, 0.0
      %v2176 = vmax.f32 %v2091, 0.0
      %v2177 = vmax.f32 %v2140, 0.0
      %v2178 = vmax.f32 %v2094, 0.0
      %v2179 = vmax.f32 %v2143, 0.0
      %v2180 = vmax.f32 %v2096, 0.0
      %v2181 = vmax.f32 %v2145, 0.0
      %v2182 = vmax.f32 %v2099, 0.0
      %v2183 = vmax.f32 %v2148, 0.0
      %v2184 = vmax.f32 %v2101, 0.0
      %v2185 = vmax.f32 %v2150, 0.0
      %v2186 = vmax.f32 %v2104, 0.0
      %v2187 = vmax.f32 %v2153, 0.0
      %v2188 = vmax.f32 %v2106, 0.0
      %v2189 = vmax.f32 %v2155, 0.0
      %v2190 = vmax.f32 %v2109, 0.0
      %v2191 = vmax.f32 %v2158, 0.0
      %v2192 = vmax.f32 %v2111, 0.0
      %v2193 = vmax.f32 %v2160, 0.0
      %v2194 = vpack.c.bf16 %v2164, %v2162
      %v2195 = vpack.c.bf16 %v2165, %v2163
      %v2196 = vpack.c.bf16 %v2168, %v2166
      %v2197 = vpack.c.bf16 %v2169, %v2167
      %v2198 = vpack.c.bf16 %v2172, %v2170
      %v2199 = vpack.c.bf16 %v2173, %v2171
      %v2200 = vpack.c.bf16 %v2176, %v2174
      %v2201 = vpack.c.bf16 %v2177, %v2175
      %v2202 = vpack.c.bf16 %v2180, %v2178
      %v2203 = vpack.c.bf16 %v2181, %v2179
      %v2204 = vpack.c.bf16 %v2184, %v2182
      %v2205 = vpack.c.bf16 %v2185, %v2183
      %v2206 = vpack.c.bf16 %v2188, %v2186
      %v2207 = vpack.c.bf16 %v2189, %v2187
      %v2208 = vpack.c.bf16 %v2192, %v2190
      %v2209 = vpack.c.bf16 %v2193, %v2191
      %v2210 = vld [vmem:[%s4 + $0x180] sm:$0xf]
      %v2211 = vld [vmem:[%s4 + $0x184] sm:$0xf]
      %v2212 = vld [vmem:[%s4 + $0x188] sm:$0xf]
      %v2213 = vld [vmem:[%s4 + $0x18c] sm:$0xf]
      %v2214 = vld [vmem:[%s4 + $0x190] sm:$0xf]
      %v2215 = vld [vmem:[%s4 + $0x194] sm:$0xf]
      %v2216 = vld [vmem:[%s4 + $0x198] sm:$0xf]
      %v2217 = vld [vmem:[%s4 + $0x19c] sm:$0xf]
      %v2218 = vld [vmem:[%s4 + $0x1a0] sm:$0xf]
      %v2219 = vld [vmem:[%s4 + $0x1a4] sm:$0xf]
      %v2220 = vld [vmem:[%s4 + $0x1a8] sm:$0xf]
      %v2221 = vld [vmem:[%s4 + $0x1ac] sm:$0xf]
      %v2222 = vld [vmem:[%s4 + $0x1b0] sm:$0xf]
      %v2223 = vld [vmem:[%s4 + $0x1b4] sm:$0xf]
      %v2224 = vld [vmem:[%s4 + $0x1b8] sm:$0xf]
      %v2225 = vld [vmem:[%s4 + $0x1bc] sm:$0xf]
      %v2226 = vld [vmem:[%s4 + $0x1c0] sm:$0xf]
      %v2227 = vld [vmem:[%s4 + $0x1c4] sm:$0xf]
      %v2228 = vld [vmem:[%s4 + $0x1c8] sm:$0xf]
      %v2229 = vld [vmem:[%s4 + $0x1cc] sm:$0xf]
      %v2230 = vld [vmem:[%s4 + $0x1d0] sm:$0xf]
      %v2231 = vld [vmem:[%s4 + $0x1d4] sm:$0xf]
      %v2232 = vld [vmem:[%s4 + $0x1d8] sm:$0xf]
      %v2233 = vld [vmem:[%s4 + $0x1dc] sm:$0xf]
      %v2234 = vld [vmem:[%s4 + $0x1e0] sm:$0xf]
      %v2235 = vld [vmem:[%s4 + $0x1e4] sm:$0xf]
      %v2236 = vld [vmem:[%s4 + $0x1e8] sm:$0xf]
      %v2237 = vld [vmem:[%s4 + $0x1ec] sm:$0xf]
      %v2238 = vld [vmem:[%s4 + $0x1f0] sm:$0xf]
      %v2239 = vld [vmem:[%s4 + $0x1f4] sm:$0xf]
      %v2240 = vld [vmem:[%s4 + $0x1f8] sm:$0xf]
      %v2241 = vld [vmem:[%s4 + $0x1fc] sm:$0xf]
      %v2274 = vunpack.c.l.b16 %v2210
      %v2275 = vunpack.c.l.b16 %v2211
      %v2276 = vunpack.c.l.b16 %v2212
      %v2277 = vunpack.c.l.b16 %v2213
      %v2278 = vunpack.c.l.b16 %v2214
      %v2279 = vunpack.c.l.b16 %v2215
      %v2280 = vunpack.c.l.b16 %v2216
      %v2281 = vunpack.c.l.b16 %v2217
      %v2282 = vunpack.c.l.b16 %v2218
      %v2283 = vunpack.c.l.b16 %v2219
      %v2284 = vunpack.c.l.b16 %v2220
      %v2285 = vunpack.c.l.b16 %v2221
      %v2286 = vunpack.c.l.b16 %v2222
      %v2287 = vunpack.c.l.b16 %v2223
      %v2288 = vunpack.c.l.b16 %v2224
      %v2289 = vunpack.c.l.b16 %v2225
      %v2290 = vunpack.c.l.b16 %v2226
      %v2291 = vunpack.c.l.b16 %v2227
      %v2292 = vunpack.c.l.b16 %v2228
      %v2293 = vunpack.c.l.b16 %v2229
      %v2294 = vunpack.c.l.b16 %v2230
      %v2295 = vunpack.c.l.b16 %v2231
      %v2296 = vunpack.c.l.b16 %v2232
      %v2297 = vunpack.c.l.b16 %v2233
      %v2298 = vunpack.c.l.b16 %v2234
      %v2299 = vunpack.c.l.b16 %v2235
      %v2300 = vunpack.c.l.b16 %v2236
      %v2301 = vunpack.c.l.b16 %v2237
      %v2302 = vunpack.c.l.b16 %v2238
      %v2303 = vunpack.c.l.b16 %v2239
      %v2304 = vunpack.c.l.b16 %v2240
      %v2305 = vunpack.c.l.b16 %v2241
      %v2306 = vpack.c.b16 %v2275, %v2274
      %v2307 = vpack.c.b16 %v2277, %v2276
      %v2308 = vpack.c.b16 %v2279, %v2278
      %v2309 = vpack.c.b16 %v2281, %v2280
      %v2310 = vpack.c.b16 %v2283, %v2282
      %v2311 = vpack.c.b16 %v2285, %v2284
      %v2312 = vpack.c.b16 %v2287, %v2286
      %v2313 = vpack.c.b16 %v2289, %v2288
      %v2314 = vpack.c.b16 %v2291, %v2290
      %v2315 = vpack.c.b16 %v2293, %v2292
      %v2316 = vpack.c.b16 %v2295, %v2294
      %v2317 = vpack.c.b16 %v2297, %v2296
      %v2318 = vpack.c.b16 %v2299, %v2298
      %v2319 = vpack.c.b16 %v2301, %v2300
      %v2320 = vpack.c.b16 %v2303, %v2302
      %v2321 = vpack.c.b16 %v2305, %v2304
      %2338 = vmatpush.bf16.msra.mxu0 %v2313
      %2339 = vmatpush.bf16.msra.mxu0 %v2312
      %2340 = vmatpush.bf16.msra.mxu0 %v2311
      %2341 = vmatpush.bf16.msra.mxu0 %v2310
      %2342 = vmatpush.bf16.msra.mxu0 %v2309
      %2343 = vmatpush.bf16.msra.mxu0 %v2308
      %2344 = vmatpush.bf16.msra.mxu0 %v2307
      %2345 = vmatpush.bf16.msra.mxu0 %v2306
      %2346 = vmatmul.bf16.gmra.mxu0 %v2194
      %v2347 = vpop.f32.mrf.mxu0
      %v2348 = vadd.f32 0.0, %v2347
      %v2349 = vpop.f32.mrf.mxu0
      %v2350 = vadd.f32 0.0, %v2349
      %2351 = vmatmul.bf16.gmra.mxu0 %v2196
      %v2352 = vpop.f32.mrf.mxu0
      %v2353 = vadd.f32 0.0, %v2352
      %v2354 = vpop.f32.mrf.mxu0
      %v2355 = vadd.f32 0.0, %v2354
      %2356 = vmatmul.bf16.gmra.mxu0 %v2198
      %v2357 = vpop.f32.mrf.mxu0
      %v2358 = vadd.f32 0.0, %v2357
      %v2359 = vpop.f32.mrf.mxu0
      %v2360 = vadd.f32 0.0, %v2359
      %2361 = vmatmul.bf16.gmra.mxu0 %v2200
      %v2362 = vpop.f32.mrf.mxu0
      %v2363 = vadd.f32 0.0, %v2362
      %v2364 = vpop.f32.mrf.mxu0
      %v2365 = vadd.f32 0.0, %v2364
      %2366 = vmatmul.bf16.gmra.mxu0 %v2202
      %v2367 = vpop.f32.mrf.mxu0
      %v2368 = vadd.f32 0.0, %v2367
      %v2369 = vpop.f32.mrf.mxu0
      %v2370 = vadd.f32 0.0, %v2369
      %2371 = vmatmul.bf16.gmra.mxu0 %v2204
      %v2372 = vpop.f32.mrf.mxu0
      %v2373 = vadd.f32 0.0, %v2372
      %v2374 = vpop.f32.mrf.mxu0
      %v2375 = vadd.f32 0.0, %v2374
      %2376 = vmatmul.bf16.gmra.mxu0 %v2206
      %v2377 = vpop.f32.mrf.mxu0
      %v2378 = vadd.f32 0.0, %v2377
      %v2379 = vpop.f32.mrf.mxu0
      %v2380 = vadd.f32 0.0, %v2379
      %2381 = vmatmul.bf16.gmra.mxu0 %v2208
      %v2382 = vpop.f32.mrf.mxu0
      %v2383 = vadd.f32 0.0, %v2382
      %v2384 = vpop.f32.mrf.mxu0
      %v2385 = vadd.f32 0.0, %v2384
      %2386 = vdwg.mxu0
      %2387 = vmatpush.bf16.msra.mxu0 %v2321
      %2388 = vmatpush.bf16.msra.mxu0 %v2320
      %2389 = vmatpush.bf16.msra.mxu0 %v2319
      %2390 = vmatpush.bf16.msra.mxu0 %v2318
      %2391 = vmatpush.bf16.msra.mxu0 %v2317
      %2392 = vmatpush.bf16.msra.mxu0 %v2316
      %2393 = vmatpush.bf16.msra.mxu0 %v2315
      %2394 = vmatpush.bf16.msra.mxu0 %v2314
      %2395 = vmatmul.bf16.gmra.mxu0 %v2195
      %v2396 = vpop.f32.mrf.mxu0
      %v2397 = vadd.f32 %v2348, %v2396
      %v2398 = vpop.f32.mrf.mxu0
      %v2399 = vadd.f32 %v2350, %v2398
      %2400 = vmatmul.bf16.gmra.mxu0 %v2197
      %v2401 = vpop.f32.mrf.mxu0
      %v2402 = vadd.f32 %v2353, %v2401
      %v2403 = vpop.f32.mrf.mxu0
      %v2404 = vadd.f32 %v2355, %v2403
      %2405 = vmatmul.bf16.gmra.mxu0 %v2199
      %v2406 = vpop.f32.mrf.mxu0
      %v2407 = vadd.f32 %v2358, %v2406
      %v2408 = vpop.f32.mrf.mxu0
      %v2409 = vadd.f32 %v2360, %v2408
      %2410 = vmatmul.bf16.gmra.mxu0 %v2201
      %v2411 = vpop.f32.mrf.mxu0
      %v2412 = vadd.f32 %v2363, %v2411
      %v2413 = vpop.f32.mrf.mxu0
      %v2414 = vadd.f32 %v2365, %v2413
      %2415 = vmatmul.bf16.gmra.mxu0 %v2203
      %v2416 = vpop.f32.mrf.mxu0
      %v2417 = vadd.f32 %v2368, %v2416
      %v2418 = vpop.f32.mrf.mxu0
      %v2419 = vadd.f32 %v2370, %v2418
      %2420 = vmatmul.bf16.gmra.mxu0 %v2205
      %v2421 = vpop.f32.mrf.mxu0
      %v2422 = vadd.f32 %v2373, %v2421
      %v2423 = vpop.f32.mrf.mxu0
      %v2424 = vadd.f32 %v2375, %v2423
      %2425 = vmatmul.bf16.gmra.mxu0 %v2207
      %v2426 = vpop.f32.mrf.mxu0
      %v2427 = vadd.f32 %v2378, %v2426
      %v2428 = vpop.f32.mrf.mxu0
      %v2429 = vadd.f32 %v2380, %v2428
      %2430 = vmatmul.bf16.gmra.mxu0 %v2209
      %v2431 = vpop.f32.mrf.mxu0
      %v2432 = vadd.f32 %v2383, %v2431
      %v2433 = vpop.f32.mrf.mxu0
      %v2434 = vadd.f32 %v2385, %v2433
      %2435 = vdwg.mxu0
      %v2436 = vadd.f32 %v2026, %v2397
      %v2437 = vadd.f32 %v2027, %v2399
      %v2438 = vadd.f32 %v2028, %v2402
      %v2439 = vadd.f32 %v2029, %v2404
      %v2440 = vadd.f32 %v2030, %v2407
      %v2441 = vadd.f32 %v2031, %v2409
      %v2442 = vadd.f32 %v2032, %v2412
      %v2443 = vadd.f32 %v2033, %v2414
      %v2444 = vadd.f32 %v2034, %v2417
      %v2445 = vadd.f32 %v2035, %v2419
      %v2446 = vadd.f32 %v2036, %v2422
      %v2447 = vadd.f32 %v2037, %v2424
      %v2448 = vadd.f32 %v2038, %v2427
      %v2449 = vadd.f32 %v2039, %v2429
      %v2450 = vadd.f32 %v2040, %v2432
      %v2451 = vadd.f32 %v2041, %v2434
      %v2452 = vld [vmem:[%s2 + $0x20] sm:$0xff]
      %v2453 = vld [vmem:[%s2 + $0x48] sm:$0x33]
      %v2454 = vld [vmem:[%s3 + $0x8] sm:$0x3]
      %v2456 = vperm.slane %v2454, 0
      %v2457 = vperm.slane %v2454, 1
      %v2462 = vunpack.c.l.b16 %v2452
      %v2463 = vunpack.c.h.b16 %v2452
      %v2464 = vunpack.c.l.b16 %v2453
      %v2465 = vunpack.c.h.b16 %v2453
      %v2466 = vpack.c.b16 %v2464, %v2462
      %v2467 = vpack.c.b16 %v2465, %v2463
      %v2469 = vsel %vm827, %v2466, 0
      %v2472 = vsel %vm827, %v2467, 0
      %2474 = vmatpush.bf16.msra.mxu0 0
      %2475 = vmatpush.bf16.msra.mxu0 0
      %2476 = vmatpush.bf16.msra.mxu0 0
      %2477 = vmatpush.bf16.msra.mxu0 0
      %2478 = vmatpush.bf16.msra.mxu0 0
      %2479 = vmatpush.bf16.msra.mxu0 0
      %2480 = vmatpush.bf16.msra.mxu0 0
      %2481 = vmatpush.bf16.msra.mxu0 %v2469
      %2482 = vmatmul.bf16.gmra.mxu0 %v804
      %v2483 = vpop.f32.mrf.mxu0
      %v2484 = vadd.f32 %v2456, %v2483
      %v2485 = vpop.f32.mrf.mxu0
      %v2486 = vadd.f32 %v2456, %v2485
      %2487 = vmatmul.bf16.gmra.mxu0 %v807
      %v2488 = vpop.f32.mrf.mxu0
      %v2489 = vadd.f32 %v2456, %v2488
      %v2490 = vpop.f32.mrf.mxu0
      %v2491 = vadd.f32 %v2456, %v2490
      %2492 = vmatmul.bf16.gmra.mxu0 %v810
      %v2493 = vpop.f32.mrf.mxu0
      %v2494 = vadd.f32 %v2456, %v2493
      %v2495 = vpop.f32.mrf.mxu0
      %v2496 = vadd.f32 %v2456, %v2495
      %2497 = vmatmul.bf16.gmra.mxu0 %v813
      %v2498 = vpop.f32.mrf.mxu0
      %v2499 = vadd.f32 %v2456, %v2498
      %v2500 = vpop.f32.mrf.mxu0
      %v2501 = vadd.f32 %v2456, %v2500
      %2502 = vmatmul.bf16.gmra.mxu0 %v816
      %v2503 = vpop.f32.mrf.mxu0
      %v2504 = vadd.f32 %v2456, %v2503
      %v2505 = vpop.f32.mrf.mxu0
      %v2506 = vadd.f32 %v2456, %v2505
      %2507 = vmatmul.bf16.gmra.mxu0 %v819
      %v2508 = vpop.f32.mrf.mxu0
      %v2509 = vadd.f32 %v2456, %v2508
      %v2510 = vpop.f32.mrf.mxu0
      %v2511 = vadd.f32 %v2456, %v2510
      %2512 = vmatmul.bf16.gmra.mxu0 %v822
      %v2513 = vpop.f32.mrf.mxu0
      %v2514 = vadd.f32 %v2456, %v2513
      %v2515 = vpop.f32.mrf.mxu0
      %v2516 = vadd.f32 %v2456, %v2515
      %2517 = vmatmul.bf16.gmra.mxu0 %v825
      %v2518 = vpop.f32.mrf.mxu0
      %v2519 = vadd.f32 %v2456, %v2518
      %v2520 = vpop.f32.mrf.mxu0
      %v2521 = vadd.f32 %v2456, %v2520
      %2522 = vdwg.mxu0
      %2523 = vmatpush.bf16.msra.mxu0 0
      %2524 = vmatpush.bf16.msra.mxu0 0
      %2525 = vmatpush.bf16.msra.mxu0 0
      %2526 = vmatpush.bf16.msra.mxu0 0
      %2527 = vmatpush.bf16.msra.mxu0 0
      %2528 = vmatpush.bf16.msra.mxu0 0
      %2529 = vmatpush.bf16.msra.mxu0 0
      %2530 = vmatpush.bf16.msra.mxu0 %v2472
      %2531 = vmatmul.bf16.gmra.mxu0 %v804
      %v2532 = vpop.f32.mrf.mxu0
      %v2533 = vadd.f32 %v2457, %v2532
      %v2534 = vpop.f32.mrf.mxu0
      %v2535 = vadd.f32 %v2457, %v2534
      %2536 = vmatmul.bf16.gmra.mxu0 %v807
      %v2537 = vpop.f32.mrf.mxu0
      %v2538 = vadd.f32 %v2457, %v2537
      %v2539 = vpop.f32.mrf.mxu0
      %v2540 = vadd.f32 %v2457, %v2539
      %2541 = vmatmul.bf16.gmra.mxu0 %v810
      %v2542 = vpop.f32.mrf.mxu0
      %v2543 = vadd.f32 %v2457, %v2542
      %v2544 = vpop.f32.mrf.mxu0
      %v2545 = vadd.f32 %v2457, %v2544
      %2546 = vmatmul.bf16.gmra.mxu0 %v813
      %v2547 = vpop.f32.mrf.mxu0
      %v2548 = vadd.f32 %v2457, %v2547
      %v2549 = vpop.f32.mrf.mxu0
      %v2550 = vadd.f32 %v2457, %v2549
      %2551 = vmatmul.bf16.gmra.mxu0 %v816
      %v2552 = vpop.f32.mrf.mxu0
      %v2553 = vadd.f32 %v2457, %v2552
      %v2554 = vpop.f32.mrf.mxu0
      %v2555 = vadd.f32 %v2457, %v2554
      %2556 = vmatmul.bf16.gmra.mxu0 %v819
      %v2557 = vpop.f32.mrf.mxu0
      %v2558 = vadd.f32 %v2457, %v2557
      %v2559 = vpop.f32.mrf.mxu0
      %v2560 = vadd.f32 %v2457, %v2559
      %2561 = vmatmul.bf16.gmra.mxu0 %v822
      %v2562 = vpop.f32.mrf.mxu0
      %v2563 = vadd.f32 %v2457, %v2562
      %v2564 = vpop.f32.mrf.mxu0
      %v2565 = vadd.f32 %v2457, %v2564
      %2566 = vmatmul.bf16.gmra.mxu0 %v825
      %v2567 = vpop.f32.mrf.mxu0
      %v2568 = vadd.f32 %v2457, %v2567
      %v2569 = vpop.f32.mrf.mxu0
      %v2570 = vadd.f32 %v2457, %v2569
      %2571 = vdwg.mxu0
      %v2572 = vmax.f32 %v2484, 0.0
      %v2573 = vmax.f32 %v2533, 0.0
      %v2574 = vmax.f32 %v2486, 0.0
      %v2575 = vmax.f32 %v2535, 0.0
      %v2576 = vmax.f32 %v2489, 0.0
      %v2577 = vmax.f32 %v2538, 0.0
      %v2578 = vmax.f32 %v2491, 0.0
      %v2579 = vmax.f32 %v2540, 0.0
      %v2580 = vmax.f32 %v2494, 0.0
      %v2581 = vmax.f32 %v2543, 0.0
      %v2582 = vmax.f32 %v2496, 0.0
      %v2583 = vmax.f32 %v2545, 0.0
      %v2584 = vmax.f32 %v2499, 0.0
      %v2585 = vmax.f32 %v2548, 0.0
      %v2586 = vmax.f32 %v2501, 0.0
      %v2587 = vmax.f32 %v2550, 0.0
      %v2588 = vmax.f32 %v2504, 0.0
      %v2589 = vmax.f32 %v2553, 0.0
      %v2590 = vmax.f32 %v2506, 0.0
      %v2591 = vmax.f32 %v2555, 0.0
      %v2592 = vmax.f32 %v2509, 0.0
      %v2593 = vmax.f32 %v2558, 0.0
      %v2594 = vmax.f32 %v2511, 0.0
      %v2595 = vmax.f32 %v2560, 0.0
      %v2596 = vmax.f32 %v2514, 0.0
      %v2597 = vmax.f32 %v2563, 0.0
      %v2598 = vmax.f32 %v2516, 0.0
      %v2599 = vmax.f32 %v2565, 0.0
      %v2600 = vmax.f32 %v2519, 0.0
      %v2601 = vmax.f32 %v2568, 0.0
      %v2602 = vmax.f32 %v2521, 0.0
      %v2603 = vmax.f32 %v2570, 0.0
      %v2604 = vpack.c.bf16 %v2574, %v2572
      %v2605 = vpack.c.bf16 %v2575, %v2573
      %v2606 = vpack.c.bf16 %v2578, %v2576
      %v2607 = vpack.c.bf16 %v2579, %v2577
      %v2608 = vpack.c.bf16 %v2582, %v2580
      %v2609 = vpack.c.bf16 %v2583, %v2581
      %v2610 = vpack.c.bf16 %v2586, %v2584
      %v2611 = vpack.c.bf16 %v2587, %v2585
      %v2612 = vpack.c.bf16 %v2590, %v2588
      %v2613 = vpack.c.bf16 %v2591, %v2589
      %v2614 = vpack.c.bf16 %v2594, %v2592
      %v2615 = vpack.c.bf16 %v2595, %v2593
      %v2616 = vpack.c.bf16 %v2598, %v2596
      %v2617 = vpack.c.bf16 %v2599, %v2597
      %v2618 = vpack.c.bf16 %v2602, %v2600
      %v2619 = vpack.c.bf16 %v2603, %v2601
      %v2620 = vld [vmem:[%s4 + $0x200] sm:$0xf]
      %v2621 = vld [vmem:[%s4 + $0x204] sm:$0xf]
      %v2622 = vld [vmem:[%s4 + $0x208] sm:$0xf]
      %v2623 = vld [vmem:[%s4 + $0x20c] sm:$0xf]
      %v2624 = vld [vmem:[%s4 + $0x210] sm:$0xf]
      %v2625 = vld [vmem:[%s4 + $0x214] sm:$0xf]
      %v2626 = vld [vmem:[%s4 + $0x218] sm:$0xf]
      %v2627 = vld [vmem:[%s4 + $0x21c] sm:$0xf]
      %v2628 = vld [vmem:[%s4 + $0x220] sm:$0xf]
      %v2629 = vld [vmem:[%s4 + $0x224] sm:$0xf]
      %v2630 = vld [vmem:[%s4 + $0x228] sm:$0xf]
      %v2631 = vld [vmem:[%s4 + $0x22c] sm:$0xf]
      %v2632 = vld [vmem:[%s4 + $0x230] sm:$0xf]
      %v2633 = vld [vmem:[%s4 + $0x234] sm:$0xf]
      %v2634 = vld [vmem:[%s4 + $0x238] sm:$0xf]
      %v2635 = vld [vmem:[%s4 + $0x23c] sm:$0xf]
      %v2636 = vld [vmem:[%s4 + $0x240] sm:$0xf]
      %v2637 = vld [vmem:[%s4 + $0x244] sm:$0xf]
      %v2638 = vld [vmem:[%s4 + $0x248] sm:$0xf]
      %v2639 = vld [vmem:[%s4 + $0x24c] sm:$0xf]
      %v2640 = vld [vmem:[%s4 + $0x250] sm:$0xf]
      %v2641 = vld [vmem:[%s4 + $0x254] sm:$0xf]
      %v2642 = vld [vmem:[%s4 + $0x258] sm:$0xf]
      %v2643 = vld [vmem:[%s4 + $0x25c] sm:$0xf]
      %v2644 = vld [vmem:[%s4 + $0x260] sm:$0xf]
      %v2645 = vld [vmem:[%s4 + $0x264] sm:$0xf]
      %v2646 = vld [vmem:[%s4 + $0x268] sm:$0xf]
      %v2647 = vld [vmem:[%s4 + $0x26c] sm:$0xf]
      %v2648 = vld [vmem:[%s4 + $0x270] sm:$0xf]
      %v2649 = vld [vmem:[%s4 + $0x274] sm:$0xf]
      %v2650 = vld [vmem:[%s4 + $0x278] sm:$0xf]
      %v2651 = vld [vmem:[%s4 + $0x27c] sm:$0xf]
      %v2684 = vunpack.c.l.b16 %v2620
      %v2685 = vunpack.c.l.b16 %v2621
      %v2686 = vunpack.c.l.b16 %v2622
      %v2687 = vunpack.c.l.b16 %v2623
      %v2688 = vunpack.c.l.b16 %v2624
      %v2689 = vunpack.c.l.b16 %v2625
      %v2690 = vunpack.c.l.b16 %v2626
      %v2691 = vunpack.c.l.b16 %v2627
      %v2692 = vunpack.c.l.b16 %v2628
      %v2693 = vunpack.c.l.b16 %v2629
      %v2694 = vunpack.c.l.b16 %v2630
      %v2695 = vunpack.c.l.b16 %v2631
      %v2696 = vunpack.c.l.b16 %v2632
      %v2697 = vunpack.c.l.b16 %v2633
      %v2698 = vunpack.c.l.b16 %v2634
      %v2699 = vunpack.c.l.b16 %v2635
      %v2700 = vunpack.c.l.b16 %v2636
      %v2701 = vunpack.c.l.b16 %v2637
      %v2702 = vunpack.c.l.b16 %v2638
      %v2703 = vunpack.c.l.b16 %v2639
      %v2704 = vunpack.c.l.b16 %v2640
      %v2705 = vunpack.c.l.b16 %v2641
      %v2706 = vunpack.c.l.b16 %v2642
      %v2707 = vunpack.c.l.b16 %v2643
      %v2708 = vunpack.c.l.b16 %v2644
      %v2709 = vunpack.c.l.b16 %v2645
      %v2710 = vunpack.c.l.b16 %v2646
      %v2711 = vunpack.c.l.b16 %v2647
      %v2712 = vunpack.c.l.b16 %v2648
      %v2713 = vunpack.c.l.b16 %v2649
      %v2714 = vunpack.c.l.b16 %v2650
      %v2715 = vunpack.c.l.b16 %v2651
      %v2716 = vpack.c.b16 %v2685, %v2684
      %v2717 = vpack.c.b16 %v2687, %v2686
      %v2718 = vpack.c.b16 %v2689, %v2688
      %v2719 = vpack.c.b16 %v2691, %v2690
      %v2720 = vpack.c.b16 %v2693, %v2692
      %v2721 = vpack.c.b16 %v2695, %v2694
      %v2722 = vpack.c.b16 %v2697, %v2696
      %v2723 = vpack.c.b16 %v2699, %v2698
      %v2724 = vpack.c.b16 %v2701, %v2700
      %v2725 = vpack.c.b16 %v2703, %v2702
      %v2726 = vpack.c.b16 %v2705, %v2704
      %v2727 = vpack.c.b16 %v2707, %v2706
      %v2728 = vpack.c.b16 %v2709, %v2708
      %v2729 = vpack.c.b16 %v2711, %v2710
      %v2730 = vpack.c.b16 %v2713, %v2712
      %v2731 = vpack.c.b16 %v2715, %v2714
      %2748 = vmatpush.bf16.msra.mxu0 %v2723
      %2749 = vmatpush.bf16.msra.mxu0 %v2722
      %2750 = vmatpush.bf16.msra.mxu0 %v2721
      %2751 = vmatpush.bf16.msra.mxu0 %v2720
      %2752 = vmatpush.bf16.msra.mxu0 %v2719
      %2753 = vmatpush.bf16.msra.mxu0 %v2718
      %2754 = vmatpush.bf16.msra.mxu0 %v2717
      %2755 = vmatpush.bf16.msra.mxu0 %v2716
      %2756 = vmatmul.bf16.gmra.mxu0 %v2604
      %v2757 = vpop.f32.mrf.mxu0
      %v2758 = vadd.f32 0.0, %v2757
      %v2759 = vpop.f32.mrf.mxu0
      %v2760 = vadd.f32 0.0, %v2759
      %2761 = vmatmul.bf16.gmra.mxu0 %v2606
      %v2762 = vpop.f32.mrf.mxu0
      %v2763 = vadd.f32 0.0, %v2762
      %v2764 = vpop.f32.mrf.mxu0
      %v2765 = vadd.f32 0.0, %v2764
      %2766 = vmatmul.bf16.gmra.mxu0 %v2608
      %v2767 = vpop.f32.mrf.mxu0
      %v2768 = vadd.f32 0.0, %v2767
      %v2769 = vpop.f32.mrf.mxu0
      %v2770 = vadd.f32 0.0, %v2769
      %2771 = vmatmul.bf16.gmra.mxu0 %v2610
      %v2772 = vpop.f32.mrf.mxu0
      %v2773 = vadd.f32 0.0, %v2772
      %v2774 = vpop.f32.mrf.mxu0
      %v2775 = vadd.f32 0.0, %v2774
      %2776 = vmatmul.bf16.gmra.mxu0 %v2612
      %v2777 = vpop.f32.mrf.mxu0
      %v2778 = vadd.f32 0.0, %v2777
      %v2779 = vpop.f32.mrf.mxu0
      %v2780 = vadd.f32 0.0, %v2779
      %2781 = vmatmul.bf16.gmra.mxu0 %v2614
      %v2782 = vpop.f32.mrf.mxu0
      %v2783 = vadd.f32 0.0, %v2782
      %v2784 = vpop.f32.mrf.mxu0
      %v2785 = vadd.f32 0.0, %v2784
      %2786 = vmatmul.bf16.gmra.mxu0 %v2616
      %v2787 = vpop.f32.mrf.mxu0
      %v2788 = vadd.f32 0.0, %v2787
      %v2789 = vpop.f32.mrf.mxu0
      %v2790 = vadd.f32 0.0, %v2789
      %2791 = vmatmul.bf16.gmra.mxu0 %v2618
      %v2792 = vpop.f32.mrf.mxu0
      %v2793 = vadd.f32 0.0, %v2792
      %v2794 = vpop.f32.mrf.mxu0
      %v2795 = vadd.f32 0.0, %v2794
      %2796 = vdwg.mxu0
      %2797 = vmatpush.bf16.msra.mxu0 %v2731
      %2798 = vmatpush.bf16.msra.mxu0 %v2730
      %2799 = vmatpush.bf16.msra.mxu0 %v2729
      %2800 = vmatpush.bf16.msra.mxu0 %v2728
      %2801 = vmatpush.bf16.msra.mxu0 %v2727
      %2802 = vmatpush.bf16.msra.mxu0 %v2726
      %2803 = vmatpush.bf16.msra.mxu0 %v2725
      %2804 = vmatpush.bf16.msra.mxu0 %v2724
      %2805 = vmatmul.bf16.gmra.mxu0 %v2605
      %v2806 = vpop.f32.mrf.mxu0
      %v2807 = vadd.f32 %v2758, %v2806
      %v2808 = vpop.f32.mrf.mxu0
      %v2809 = vadd.f32 %v2760, %v2808
      %2810 = vmatmul.bf16.gmra.mxu0 %v2607
      %v2811 = vpop.f32.mrf.mxu0
      %v2812 = vadd.f32 %v2763, %v2811
      %v2813 = vpop.f32.mrf.mxu0
      %v2814 = vadd.f32 %v2765, %v2813
      %2815 = vmatmul.bf16.gmra.mxu0 %v2609
      %v2816 = vpop.f32.mrf.mxu0
      %v2817 = vadd.f32 %v2768, %v2816
      %v2818 = vpop.f32.mrf.mxu0
      %v2819 = vadd.f32 %v2770, %v2818
      %2820 = vmatmul.bf16.gmra.mxu0 %v2611
      %v2821 = vpop.f32.mrf.mxu0
      %v2822 = vadd.f32 %v2773, %v2821
      %v2823 = vpop.f32.mrf.mxu0
      %v2824 = vadd.f32 %v2775, %v2823
      %2825 = vmatmul.bf16.gmra.mxu0 %v2613
      %v2826 = vpop.f32.mrf.mxu0
      %v2827 = vadd.f32 %v2778, %v2826
      %v2828 = vpop.f32.mrf.mxu0
      %v2829 = vadd.f32 %v2780, %v2828
      %2830 = vmatmul.bf16.gmra.mxu0 %v2615
      %v2831 = vpop.f32.mrf.mxu0
      %v2832 = vadd.f32 %v2783, %v2831
      %v2833 = vpop.f32.mrf.mxu0
      %v2834 = vadd.f32 %v2785, %v2833
      %2835 = vmatmul.bf16.gmra.mxu0 %v2617
      %v2836 = vpop.f32.mrf.mxu0
      %v2837 = vadd.f32 %v2788, %v2836
      %v2838 = vpop.f32.mrf.mxu0
      %v2839 = vadd.f32 %v2790, %v2838
      %2840 = vmatmul.bf16.gmra.mxu0 %v2619
      %v2841 = vpop.f32.mrf.mxu0
      %v2842 = vadd.f32 %v2793, %v2841
      %v2843 = vpop.f32.mrf.mxu0
      %v2844 = vadd.f32 %v2795, %v2843
      %2845 = vdwg.mxu0
      %v2846 = vadd.f32 %v2436, %v2807
      %v2847 = vadd.f32 %v2437, %v2809
      %v2848 = vadd.f32 %v2438, %v2812
      %v2849 = vadd.f32 %v2439, %v2814
      %v2850 = vadd.f32 %v2440, %v2817
      %v2851 = vadd.f32 %v2441, %v2819
      %v2852 = vadd.f32 %v2442, %v2822
      %v2853 = vadd.f32 %v2443, %v2824
      %v2854 = vadd.f32 %v2444, %v2827
      %v2855 = vadd.f32 %v2445, %v2829
      %v2856 = vadd.f32 %v2446, %v2832
      %v2857 = vadd.f32 %v2447, %v2834
      %v2858 = vadd.f32 %v2448, %v2837
      %v2859 = vadd.f32 %v2449, %v2839
      %v2860 = vadd.f32 %v2450, %v2842
      %v2861 = vadd.f32 %v2451, %v2844
      %v2862 = vmax.f32 %v2846, 0.0
      %v2863 = vmax.f32 %v2847, 0.0
      %v2864 = vmax.f32 %v2848, 0.0
      %v2865 = vmax.f32 %v2849, 0.0
      %v2866 = vmax.f32 %v2850, 0.0
      %v2867 = vmax.f32 %v2851, 0.0
      %v2868 = vmax.f32 %v2852, 0.0
      %v2869 = vmax.f32 %v2853, 0.0
      %v2870 = vmax.f32 %v2854, 0.0
      %v2871 = vmax.f32 %v2855, 0.0
      %v2872 = vmax.f32 %v2856, 0.0
      %v2873 = vmax.f32 %v2857, 0.0
      %v2874 = vmax.f32 %v2858, 0.0
      %v2875 = vmax.f32 %v2859, 0.0
      %v2876 = vmax.f32 %v2860, 0.0
      %v2877 = vmax.f32 %v2861, 0.0
      %v2878 = vpack.c.bf16 %v2862, %v2862
      %v2879 = vpack.c.bf16 %v2863, %v2863
      %v2880 = vpack.c.bf16 %v2864, %v2864
      %v2881 = vpack.c.bf16 %v2865, %v2865
      %v2882 = vpack.c.bf16 %v2866, %v2866
      %v2883 = vpack.c.bf16 %v2867, %v2867
      %v2884 = vpack.c.bf16 %v2868, %v2868
      %v2885 = vpack.c.bf16 %v2869, %v2869
      %v2886 = vpack.c.bf16 %v2870, %v2870
      %v2887 = vpack.c.bf16 %v2871, %v2871
      %v2888 = vpack.c.bf16 %v2872, %v2872
      %v2889 = vpack.c.bf16 %v2873, %v2873
      %v2890 = vpack.c.bf16 %v2874, %v2874
      %v2891 = vpack.c.bf16 %v2875, %v2875
      %v2892 = vpack.c.bf16 %v2876, %v2876
      %v2893 = vpack.c.bf16 %v2877, %v2877
      %vm2894 = vcmask 371712
      %2895 = vst.msk [vmem:[%s472] sm:$0xf] %vm2894, %v2878
      %2896 = vst.msk [vmem:[%s472 + $0x4] sm:$0xf] %vm2894, %v2879
      %2897 = vst.msk [vmem:[%s472 + $0x8] sm:$0xf] %vm2894, %v2880
      %2898 = vst.msk [vmem:[%s472 + $0xc] sm:$0xf] %vm2894, %v2881
      %2899 = vst.msk [vmem:[%s472 + $0x10] sm:$0xf] %vm2894, %v2882
      %2900 = vst.msk [vmem:[%s472 + $0x14] sm:$0xf] %vm2894, %v2883
      %2901 = vst.msk [vmem:[%s472 + $0x18] sm:$0xf] %vm2894, %v2884
      %2902 = vst.msk [vmem:[%s472 + $0x1c] sm:$0xf] %vm2894, %v2885
      %2903 = vst.msk [vmem:[%s472 + $0x20] sm:$0xf] %vm2894, %v2886
      %2904 = vst.msk [vmem:[%s472 + $0x24] sm:$0xf] %vm2894, %v2887
      %2905 = vst.msk [vmem:[%s472 + $0x28] sm:$0xf] %vm2894, %v2888
      %2906 = vst.msk [vmem:[%s472 + $0x2c] sm:$0xf] %vm2894, %v2889
      %2907 = vst.msk [vmem:[%s472 + $0x30] sm:$0xf] %vm2894, %v2890
      %2908 = vst.msk [vmem:[%s472 + $0x34] sm:$0xf] %vm2894, %v2891
      %2909 = vst.msk [vmem:[%s472 + $0x38] sm:$0xf] %vm2894, %v2892
      %2910 = vst.msk [vmem:[%s472 + $0x3c] sm:$0xf] %vm2894, %v2893
      %v2911 = vld [vmem:[%s7] sm:$0xf]
      %v2912 = vld [vmem:[%s7 + $0x4] sm:$0xf]
      %v2913 = vld [vmem:[%s7 + $0x8] sm:$0xf]
      %v2914 = vld [vmem:[%s7 + $0xc] sm:$0xf]
      %v2915 = vld [vmem:[%s7 + $0x10] sm:$0xf]
      %v2916 = vld [vmem:[%s7 + $0x14] sm:$0x7]
      %v2917 = vld [vmem:[%s8] sm:$0x1]
      %v2918 = vperm.slane %v2917, 0
      %v2919 = vmul.f32 %v534, %v2918
      %v2920 = vmul.f32 %v539, %v2918
      %v2921 = vmul.f32 %v544, %v2918
      %v2922 = vmul.f32 %v549, %v2918
      %v2923 = vmul.f32 %v554, %v2918
      %v2924 = vmul.f32 %v559, %v2918
      %v2925 = vmul.f32 %v564, %v2918
      %v2926 = vmul.f32 %v569, %v2918
      %v2927 = vmul.f32 %v574, %v2918
      %v2928 = vmul.f32 %v579, %v2918
      %v2929 = vmul.f32 %v584, %v2918
      %v2930 = vmul.f32 %v589, %v2918
      %v2931 = vmul.f32 %v594, %v2918
      %v2932 = vmul.f32 %v599, %v2918
      %v2933 = vmul.f32 %v604, %v2918
      %v2934 = vmul.f32 %v609, %v2918
      %v2951 = vunpack.c.l.b16 %v2878
      %v2952 = vunpack.c.l.b16 %v2879
      %v2953 = vunpack.c.l.b16 %v2880
      %v2954 = vunpack.c.l.b16 %v2881
      %v2955 = vunpack.c.l.b16 %v2882
      %v2956 = vunpack.c.l.b16 %v2883
      %v2957 = vunpack.c.l.b16 %v2884
      %v2958 = vunpack.c.l.b16 %v2885
      %v2959 = vunpack.c.l.b16 %v2886
      %v2960 = vunpack.c.l.b16 %v2887
      %v2961 = vunpack.c.l.b16 %v2888
      %v2962 = vunpack.c.l.b16 %v2889
      %v2963 = vunpack.c.l.b16 %v2890
      %v2964 = vunpack.c.l.b16 %v2891
      %v2965 = vunpack.c.l.b16 %v2892
      %v2966 = vunpack.c.l.b16 %v2893
      %v2967 = vpack.c.b16 %v2952, %v2951
      %v2968 = vpack.c.b16 %v2954, %v2953
      %v2969 = vpack.c.b16 %v2956, %v2955
      %v2970 = vpack.c.b16 %v2958, %v2957
      %v2971 = vpack.c.b16 %v2960, %v2959
      %v2972 = vpack.c.b16 %v2962, %v2961
      %v2973 = vpack.c.b16 %v2964, %v2963
      %v2974 = vpack.c.b16 %v2966, %v2965
      %v2981 = vunpack.c.l.b16 %v2911
      %v2982 = vunpack.c.l.b16 %v2912
      %v2983 = vunpack.c.l.b16 %v2913
      %v2984 = vunpack.c.l.b16 %v2914
      %v2985 = vunpack.c.l.b16 %v2915
      %v2986 = vunpack.c.l.b16 %v2916
      %v2987 = vpack.c.b16 %v2982, %v2981
      %v2988 = vpack.c.b16 %v2984, %v2983
      %v2989 = vpack.c.b16 %v2986, %v2985
      %vm2992 = vcmask 375808
      %v2994 = vsel %vm2992, %v2967, 0
      %v2997 = vsel %vm2992, %v2968, 0
      %v3000 = vsel %vm2992, %v2969, 0
      %v3003 = vsel %vm2992, %v2970, 0
      %v3006 = vsel %vm2992, %v2971, 0
      %v3009 = vsel %vm2992, %v2972, 0
      %v3012 = vsel %vm2992, %v2973, 0
      %v3015 = vsel %vm2992, %v2974, 0
      %vm3017 = vcmask 1046528
      %v3019 = vsel %vm3017, %v2989, 0
      %3021 = vmatpush.bf16.msra.mxu0 0
      %3022 = vmatpush.bf16.msra.mxu0 0
      %3023 = vmatpush.bf16.msra.mxu0 0
      %3024 = vmatpush.bf16.msra.mxu0 0
      %3025 = vmatpush.bf16.msra.mxu0 0
      %3026 = vmatpush.bf16.msra.mxu0 %v3019
      %3027 = vmatpush.bf16.msra.mxu0 %v2988
      %3028 = vmatpush.bf16.msra.mxu0 %v2987
      %3029 = vmatmul.bf16.gmra.mxu0 %v2994
      %v3030 = vpop.f32.mrf.mxu0
      %v3031 = vadd.f32 %v2919, %v3030
      %v3032 = vpop.f32.mrf.mxu0
      %v3033 = vadd.f32 %v2920, %v3032
      %3034 = vmatmul.bf16.gmra.mxu0 %v2997
      %v3035 = vpop.f32.mrf.mxu0
      %v3036 = vadd.f32 %v2921, %v3035
      %v3037 = vpop.f32.mrf.mxu0
      %v3038 = vadd.f32 %v2922, %v3037
      %3039 = vmatmul.bf16.gmra.mxu0 %v3000
      %v3040 = vpop.f32.mrf.mxu0
      %v3041 = vadd.f32 %v2923, %v3040
      %v3042 = vpop.f32.mrf.mxu0
      %v3043 = vadd.f32 %v2924, %v3042
      %3044 = vmatmul.bf16.gmra.mxu0 %v3003
      %v3045 = vpop.f32.mrf.mxu0
      %v3046 = vadd.f32 %v2925, %v3045
      %v3047 = vpop.f32.mrf.mxu0
      %v3048 = vadd.f32 %v2926, %v3047
      %3049 = vmatmul.bf16.gmra.mxu0 %v3006
      %v3050 = vpop.f32.mrf.mxu0
      %v3051 = vadd.f32 %v2927, %v3050
      %v3052 = vpop.f32.mrf.mxu0
      %v3053 = vadd.f32 %v2928, %v3052
      %3054 = vmatmul.bf16.gmra.mxu0 %v3009
      %v3055 = vpop.f32.mrf.mxu0
      %v3056 = vadd.f32 %v2929, %v3055
      %v3057 = vpop.f32.mrf.mxu0
      %v3058 = vadd.f32 %v2930, %v3057
      %3059 = vmatmul.bf16.gmra.mxu0 %v3012
      %v3060 = vpop.f32.mrf.mxu0
      %v3061 = vadd.f32 %v2931, %v3060
      %v3062 = vpop.f32.mrf.mxu0
      %v3063 = vadd.f32 %v2932, %v3062
      %3064 = vmatmul.bf16.gmra.mxu0 %v3015
      %v3065 = vpop.f32.mrf.mxu0
      %v3066 = vadd.f32 %v2933, %v3065
      %v3067 = vpop.f32.mrf.mxu0
      %v3068 = vadd.f32 %v2934, %v3067
      %3069 = vdwg.mxu0
      %v3070 = vld [vmem:[%s8 + $0x1] sm:$0x1]
      %v3071 = vperm.slane %v3070, 0
      %v3072 = vmul.f32 %v631, %v3071
      %v3073 = vmul.f32 %v635, %v3071
      %v3074 = vmul.f32 %v639, %v3071
      %v3075 = vmul.f32 %v643, %v3071
      %v3076 = vmul.f32 %v647, %v3071
      %v3077 = vmul.f32 %v651, %v3071
      %v3078 = vmul.f32 %v655, %v3071
      %v3079 = vmul.f32 %v659, %v3071
      %v3080 = vmul.f32 %v663, %v3071
      %v3081 = vmul.f32 %v667, %v3071
      %v3082 = vmul.f32 %v671, %v3071
      %v3083 = vmul.f32 %v675, %v3071
      %v3084 = vmul.f32 %v679, %v3071
      %v3085 = vmul.f32 %v683, %v3071
      %v3086 = vmul.f32 %v687, %v3071
      %v3087 = vmul.f32 %v691, %v3071
      %v3088 = vadd.f32 %v3031, %v3072
      %v3089 = vadd.f32 %v3033, %v3073
      %v3090 = vadd.f32 %v3036, %v3074
      %v3091 = vadd.f32 %v3038, %v3075
      %v3092 = vadd.f32 %v3041, %v3076
      %v3093 = vadd.f32 %v3043, %v3077
      %v3094 = vadd.f32 %v3046, %v3078
      %v3095 = vadd.f32 %v3048, %v3079
      %v3096 = vadd.f32 %v3051, %v3080
      %v3097 = vadd.f32 %v3053, %v3081
      %v3098 = vadd.f32 %v3056, %v3082
      %v3099 = vadd.f32 %v3058, %v3083
      %v3100 = vadd.f32 %v3061, %v3084
      %v3101 = vadd.f32 %v3063, %v3085
      %v3102 = vadd.f32 %v3066, %v3086
      %v3103 = vadd.f32 %v3068, %v3087
      %v3104 = vld [vmem:[%s9] sm:$0x1]
      %v3106 = vperm.slane %v3104, 0
      %v3108 = vadd.f32 %v3088, %v3106
      %v3109 = vadd.f32 %v3089, %v3106
      %v3110 = vadd.f32 %v3090, %v3106
      %v3111 = vadd.f32 %v3091, %v3106
      %v3112 = vadd.f32 %v3092, %v3106
      %v3113 = vadd.f32 %v3093, %v3106
      %v3114 = vadd.f32 %v3094, %v3106
      %v3115 = vadd.f32 %v3095, %v3106
      %v3116 = vadd.f32 %v3096, %v3106
      %v3117 = vadd.f32 %v3097, %v3106
      %v3118 = vadd.f32 %v3098, %v3106
      %v3119 = vadd.f32 %v3099, %v3106
      %v3120 = vadd.f32 %v3100, %v3106
      %v3121 = vadd.f32 %v3101, %v3106
      %v3122 = vadd.f32 %v3102, %v3106
      %v3123 = vadd.f32 %v3103, %v3106
      %v3124 = vmax.f32 %v3108, 0.0
      %v3125 = vmax.f32 %v3109, 0.0
      %v3126 = vmax.f32 %v3110, 0.0
      %v3127 = vmax.f32 %v3111, 0.0
      %v3128 = vmax.f32 %v3112, 0.0
      %v3129 = vmax.f32 %v3113, 0.0
      %v3130 = vmax.f32 %v3114, 0.0
      %v3131 = vmax.f32 %v3115, 0.0
      %v3132 = vmax.f32 %v3116, 0.0
      %v3133 = vmax.f32 %v3117, 0.0
      %v3134 = vmax.f32 %v3118, 0.0
      %v3135 = vmax.f32 %v3119, 0.0
      %v3136 = vmax.f32 %v3120, 0.0
      %v3137 = vmax.f32 %v3121, 0.0
      %v3138 = vmax.f32 %v3122, 0.0
      %v3139 = vmax.f32 %v3123, 0.0
      %vm3140 = vcmask 392192
      %v3141 = vsel %vm3140, %v3124, 0.0
      %v3142 = vsel %vm3140, %v3125, 0.0
      %v3143 = vadd.f32 %v3141, %v3142
      %v3144 = vsel %vm3140, %v3126, 0.0
      %v3145 = vadd.f32 %v3143, %v3144
      %v3146 = vsel %vm3140, %v3127, 0.0
      %v3147 = vadd.f32 %v3145, %v3146
      %v3148 = vsel %vm3140, %v3128, 0.0
      %v3149 = vadd.f32 %v3147, %v3148
      %v3150 = vsel %vm3140, %v3129, 0.0
      %v3151 = vadd.f32 %v3149, %v3150
      %v3152 = vsel %vm3140, %v3130, 0.0
      %v3153 = vadd.f32 %v3151, %v3152
      %v3154 = vsel %vm3140, %v3131, 0.0
      %v3155 = vadd.f32 %v3153, %v3154
      %v3156 = vsel %vm3140, %v3132, 0.0
      %v3157 = vadd.f32 %v3155, %v3156
      %v3158 = vsel %vm3140, %v3133, 0.0
      %v3159 = vadd.f32 %v3157, %v3158
      %v3160 = vsel %vm3140, %v3134, 0.0
      %v3161 = vadd.f32 %v3159, %v3160
      %v3162 = vsel %vm3140, %v3135, 0.0
      %v3163 = vadd.f32 %v3161, %v3162
      %v3164 = vsel %vm3140, %v3136, 0.0
      %v3165 = vadd.f32 %v3163, %v3164
      %v3166 = vsel %vm3140, %v3137, 0.0
      %v3167 = vadd.f32 %v3165, %v3166
      %v3168 = vsel %vm3140, %v3138, 0.0
      %v3169 = vadd.f32 %v3167, %v3168
      %v3170 = vsel %vm3140, %v3139, 0.0
      %v3171 = vadd.f32 %v3169, %v3170
      %v3172 = vrot.slane %v3171, 4
      %v3173 = vadd.f32 %v3171, %v3172
      %v3174 = vrot.slane %v3173, 2
      %v3175 = vadd.f32 %v3173, %v3174
      %v3176 = vrot.slane %v3175, 1
      %v3177 = vadd.f32 %v3175, %v3176
      %vm3178 = vcmask 385024
      %3179 = vst.msk [vmem:[%s480] sm:$0x1] %vm3178, %v3177
      %s3180 = smul.u32 16, %s28
      %p3181 = scmp.lt.s32.totalorder %s27, 1
      %s3182 = scalar_select %p3181, %s27, 1
      %p3183 = scmp.lt.s32.totalorder %s3180, 31
      %s3184 = scalar_select %p3183, %s3180, 31
      %s3185 = smul.addr %s3182, 32
      %s3186 = sadd.s32 %s3184, %s3185
      %s3187 = smul.addr %s3186, 4
      %s3188 = scalar_lea.vmem %s10, %s3187
      %p3189 = scmp.lt.s32.totalorder %s27, 1
      %s3190 = scalar_select %p3189, %s27, 1
      %p3191 = scmp.lt.s32.totalorder %s28, 1
      %s3192 = scalar_select %p3191, %s28, 1
      %s3193 = smul.addr %s3190, 2
      %s3194 = sadd.s32 %s3192, %s3193
      %s3195 = scalar_lea.vmem %s11, %s3194
      // Predicated region
      $region61: #{udfnet_forward.3} parent=59 // pred_check
        %p3196 = pneg %p279
      $region62: #{udfnet_forward.3} parent=59 // pred_check_branch
        %3198 = sbr.rel (%p3196) target = $region64
      $region63: #{udfnet_forward.3} parent=59 // pred_region
        %s3199 = smul.u32 16, %s28
      $region64: #{udfnet_forward.3} parent=59 // pred_fallthru
        _
      // Predicated region
      $region65: #{udfnet_forward.3} parent=59 // pred_check
        %p3200 = pneg %p307
      $region66: #{udfnet_forward.3} parent=59 // pred_check_branch
        %3202 = sbr.rel (%p3200) target = $region68
      $region67: #{udfnet_forward.3} parent=59 // pred_region
        _
      $region68: #{udfnet_forward.3} parent=59 // pred_fallthru
        _
    $region60: #{udfnet_forward.3} parent=5 // pred_fallthru
      _
    %p3203 = scmp.le.s32.totalorder 2, %s18
    // Predicated region
    $region69: #{udfnet_forward.3} parent=5 // pred_check
      %p3204 = pneg %p3203
    $region70: #{udfnet_forward.3} parent=5 // pred_check_branch
      %3206 = sbr.rel (%p3204) target = $region72
    $region71: #{udfnet_forward.3} parent=5 // pred_region
      %s3207 = ssub.s32 %s18, 2
      // Predicated region
      $region73: #{udfnet_forward.3} parent=71 // pred_check
        %p3208 = pneg %p285
      $region74: #{udfnet_forward.3} parent=71 // pred_check_branch
        %3210 = sbr.rel (%p3208) target = $region76
      $region75: #{udfnet_forward.3} parent=71 // pred_region
        %s3211 = smul.u32 16, %s30
        %p3212 = scmp.lt.s32.totalorder %s29, 1
        %s3213 = scalar_select %p3212, %s29, 1
        %p3214 = scmp.lt.s32.totalorder %s3211, 31
        %s3215 = scalar_select %p3214, %s3211, 31
        %s3216 = smul.addr %s3213, 32
        %s3217 = sadd.s32 %s3215, %s3216
        %s3218 = smul.addr %s3217, 4
        %s3219 = scalar_lea.vmem %s10, %s3218
      $region76: #{udfnet_forward.3} parent=71 // pred_fallthru
        _
      // Predicated region
      $region77: #{udfnet_forward.3} parent=71 // pred_check
        %p3220 = pneg %p313
      $region78: #{udfnet_forward.3} parent=71 // pred_check_branch
        %3222 = sbr.rel (%p3220) target = $region80
      $region79: #{udfnet_forward.3} parent=71 // pred_region
        %p3223 = scmp.lt.s32.totalorder %s29, 1
        %s3224 = scalar_select %p3223, %s29, 1
        %p3225 = scmp.lt.s32.totalorder %s30, 1
        %s3226 = scalar_select %p3225, %s30, 1
        %s3227 = smul.addr %s3224, 2
        %s3228 = sadd.s32 %s3226, %s3227
        %s3229 = scalar_lea.vmem %s11, %s3228
      $region80: #{udfnet_forward.3} parent=71 // pred_fallthru
        _
    $region72: #{udfnet_forward.3} parent=5 // pred_fallthru
      _
  $region6: #{udfnet_forward.3} parent=0 // loop_footer
    %s22 = sadd.s32 1, %s18
  $region7: #{udfnet_forward.3} parent=0 // loop_footer_branch
    %17 = sbr.rel target = $region3
  $region8: #{udfnet_forward.3} parent=0 // loop_exit
    _

</llo_original>
